<compile_context>
chip_gen: v7x
topology: tpu7x:2x2x1
jax: 0.10.0
libtpu: 0.0.40
codegen_flags: <defaults>
</compile_context>

<pallas_src>
import functools
import math

import jax
import jax.numpy as jnp
from jax.experimental import pallas as pl
from jax.experimental.pallas import tpu as pltpu

LN_EPS = 1e-5  # nn.LayerNorm default eps


def _round_up(x, m):
    return (x + m - 1) // m * m


def _choose_tile(dim, prefs):
    """Largest preferred tile that evenly divides `dim` (falls back to dim)."""
    for p in prefs:
        if dim % p == 0:
            return p
    return dim


# --------------------------- LayerNorm kernel ---------------------------

def _ln_kernel(x_ref, g_ref, b_ref, o_ref, *, eps):
    x = x_ref[...].astype(jnp.float32)                 # (tm, H)
    mean = jnp.mean(x, axis=-1, keepdims=True)
    xc = x - mean
    var = jnp.mean(xc * xc, axis=-1, keepdims=True)    # biased var (PyTorch LN)
    y = xc * jax.lax.rsqrt(var + eps)
    o_ref[...] = (y * g_ref[...] + b_ref[...]).astype(o_ref.dtype)


def pallas_layernorm(x, gamma, beta, eps=LN_EPS):
    """x: (M, H) -> LayerNorm over last axis, elementwise affine."""
    M, H = x.shape
    g = gamma.reshape(1, H).astype(jnp.float32)
    b = beta.reshape(1, H).astype(jnp.float32)
    tm = _choose_tile(M, (512, 256, 128, 64, 32, 16, 8))
    kern = functools.partial(_ln_kernel, eps=eps)
    return pl.pallas_call(
        kern,
        out_shape=jax.ShapeDtypeStruct((M, H), jnp.float32),
        grid=(M // tm,),
        in_specs=[
            pl.BlockSpec((tm, H), lambda i: (i, 0)),
            pl.BlockSpec((1, H), lambda i: (0, 0)),
            pl.BlockSpec((1, H), lambda i: (0, 0)),
        ],
        out_specs=pl.BlockSpec((tm, H), lambda i: (i, 0)),
        compiler_params=pltpu.CompilerParams(dimension_semantics=("parallel",)),
    )(x, g, b)


# ------------------- Tiled matmul + fused epilogue kernel -------------------

def _linear_kernel(*refs, activation, has_residual, nsteps):
    if has_residual:
        a_ref, w_ref, b_ref, r_ref, o_ref, acc_ref = refs
    else:
        a_ref, w_ref, b_ref, o_ref, acc_ref = refs
        r_ref = None
    k = pl.program_id(2)

    @pl.when(k == 0)
    def _():
        acc_ref[...] = jnp.zeros_like(acc_ref)

    acc_ref[...] += jnp.dot(a_ref[...], w_ref[...],
                            preferred_element_type=jnp.float32)

    @pl.when(k == nsteps - 1)
    def _():
        y = acc_ref[...] + b_ref[...]
        if activation == "gelu":
            # tanh-approximate GELU (tanh goes to the EUP slot)
            y = 0.5 * y * (1.0 + jnp.tanh(0.7978845608028654 *
                                          (y + 0.044715 * y * y * y)))
        if r_ref is not None:
            y = y + r_ref[...]
        o_ref[...] = y.astype(o_ref.dtype)


def pallas_linear(a, w, bias, *, activation=None, residual=None):
    """y = act(a @ w + bias) (+ residual).  a: (M,K), w: (K,N), bias: (N,)."""
    M, K = a.shape
    K2, N = w.shape
    assert K == K2, (K, K2)

    Mp, Kp, Np = _round_up(M, 8), _round_up(K, 128), _round_up(N, 128)
    if (Mp, Kp) != (M, K):
        a = jnp.zeros((Mp, Kp), a.dtype).at[:M, :K].set(a)
    if (Kp, Np) != (K, N):
        w = jnp.zeros((Kp, Np), w.dtype).at[:K, :N].set(w)
    if Np != N:
        b = jnp.zeros((1, Np), jnp.float32).at[0, :N].set(bias)
    else:
        b = bias.reshape(1, N).astype(jnp.float32)

    has_res = residual is not None
    if has_res and residual.shape != (Mp, Np):
        residual = jnp.zeros((Mp, Np), residual.dtype).at[:M, :N].set(residual)

    tm = _choose_tile(Mp, (256, 128, 64, 32, 16, 8))
    tn = _choose_tile(Np, (256, 128))
    tk = _choose_tile(Kp, (512, 256, 128))
    grid = (Mp // tm, Np // tn, Kp // tk)

    in_specs = [
        pl.BlockSpec((tm, tk), lambda i, j, k: (i, k)),
        pl.BlockSpec((tk, tn), lambda i, j, k: (k, j)),
        pl.BlockSpec((1, tn), lambda i, j, k: (0, j)),
    ]
    args = [a, w, b]
    if has_res:
        in_specs.append(pl.BlockSpec((tm, tn), lambda i, j, k: (i, j)))
        args.append(residual)

    kern = functools.partial(_linear_kernel, activation=activation,
                             has_residual=has_res, nsteps=grid[2])
    out = pl.pallas_call(
        kern,
        out_shape=jax.ShapeDtypeStruct((Mp, Np), jnp.float32),
        grid_spec=pltpu.PrefetchScalarGridSpec(
            num_scalar_prefetch=0,
            grid=grid,
            in_specs=in_specs,
            out_specs=pl.BlockSpec((tm, tn), lambda i, j, k: (i, j)),
            scratch_shapes=[pltpu.VMEM((tm, tn), jnp.float32)],
        ),
        compiler_params=pltpu.CompilerParams(
            dimension_semantics=("parallel", "parallel", "arbitrary")),
    )(*args)

    if (Mp, Np) != (M, N):
        out = out[:M, :N]
    return out


# --------------------------- Attention core kernel ---------------------------

def _attn_kernel(q_ref, k_ref, v_ref, o_ref, *, scale):
    q = q_ref[0].astype(jnp.float32)                    # (S, dh)
    k = k_ref[0].astype(jnp.float32)
    v = v_ref[0].astype(jnp.float32)
    s = jax.lax.dot_general(q, k, (((1,), (1,)), ((), ())),
                            preferred_element_type=jnp.float32) * scale  # (S, S)
    m = jnp.max(s, axis=-1, keepdims=True)
    p = jnp.exp(s - m)
    l = jnp.sum(p, axis=-1, keepdims=True)
    ctx = jnp.dot(p, v, preferred_element_type=jnp.float32)              # (S, dh)
    o_ref[0] = (ctx * pl.reciprocal(l, approx=False)).astype(o_ref.dtype)


def pallas_attention(q, k, v, *, scale):
    """q,k,v: (B*heads, S, dh) -> softmax(q k^T * scale) v."""
    BH, S, Dh = q.shape
    kern = functools.partial(_attn_kernel, scale=scale)
    spec = pl.BlockSpec((1, S, Dh), lambda i: (i, 0, 0))
    return pl.pallas_call(
        kern,
        out_shape=jax.ShapeDtypeStruct((BH, S, Dh), jnp.float32),
        grid=(BH,),
        in_specs=[spec, spec, spec],
        out_specs=spec,
        compiler_params=pltpu.CompilerParams(dimension_semantics=("parallel",)),
    )(q, k, v)


# ------------------------------ Transformer fwd ------------------------------

def init_params(key, hidden, num_heads, mlp_dim):
    assert hidden % num_heads == 0
    ks = jax.random.split(key, 8)
    s_h = 1.0 / math.sqrt(hidden)
    s_m = 1.0 / math.sqrt(mlp_dim)
    return {
        # LayerNorms (PyTorch defaults: weight=1, bias=0)
        "ln_att_g": jnp.ones((hidden,), jnp.float32),
        "ln_att_b": jnp.zeros((hidden,), jnp.float32),
        "ln_mlp_g": jnp.ones((hidden,), jnp.float32),
        "ln_mlp_b": jnp.zeros((hidden,), jnp.float32),
        # Attention: fused Q/K/V projection, stored as (in, out) so y = x @ W + b
        "w_qkv": s_h * jax.random.normal(ks[0], (hidden, 3 * hidden), jnp.float32),
        "b_qkv": 0.02 * jax.random.normal(ks[1], (3 * hidden,), jnp.float32),
        "w_out": s_h * jax.random.normal(ks[2], (hidden, hidden), jnp.float32),
        "b_out": 0.02 * jax.random.normal(ks[3], (hidden,), jnp.float32),
        # MLP
        "w_fc1": s_h * jax.random.normal(ks[4], (hidden, mlp_dim), jnp.float32),
        "b_fc1": 1e-6 * jax.random.normal(ks[5], (mlp_dim,), jnp.float32),
        "w_fc2": s_m * jax.random.normal(ks[6], (mlp_dim, hidden), jnp.float32),
        "b_fc2": 1e-6 * jax.random.normal(ks[7], (hidden,), jnp.float32),
    }


def transformer_forward(x, params, *, num_heads):
    """x: (B, S, H) -> (B, S, H).  Pre-norm transformer block."""
    B, S, H = x.shape
    dh = H // num_heads
    M = B * S
    x2 = x.reshape(M, H).astype(jnp.float32)

    # --- attention sub-block ---
    h = pallas_layernorm(x2, params["ln_att_g"], params["ln_att_b"])
    qkv = pallas_linear(h, params["w_qkv"], params["b_qkv"])            # (M, 3H)
    q, k, v = jnp.split(qkv, 3, axis=-1)

    def to_heads(t):
        return (t.reshape(B, S, num_heads, dh)
                 .transpose(0, 2, 1, 3)
                 .reshape(B * num_heads, S, dh))

    ctx = pallas_attention(to_heads(q), to_heads(k), to_heads(v),
                           scale=1.0 / math.sqrt(dh))                   # (B*nh,S,dh)
    ctx = (ctx.reshape(B, num_heads, S, dh)
              .transpose(0, 2, 1, 3)
              .reshape(M, H))
    # output projection with residual add fused into the matmul epilogue
    x2 = pallas_linear(ctx, params["w_out"], params["b_out"], residual=x2)

    # --- MLP sub-block ---
    h = pallas_layernorm(x2, params["ln_mlp_g"], params["ln_mlp_b"])
    h = pallas_linear(h, params["w_fc1"], params["b_fc1"], activation="gelu")
    x2 = pallas_linear(h, params["w_fc2"], params["b_fc2"], residual=x2)

    return x2.reshape(B, S, H)


if __name__ == "__main__":
    B, S, H = 2, 16, 256          # batch, sequence, hidden_size
    NUM_HEADS, MLP_DIM = 8, 512   # transformer__num_heads, transformer__mlp_dim

    key = jax.random.PRNGKey(0)
    kx, kp = jax.random.split(key)
    x = jax.random.normal(kx, (B, S, H), jnp.float32)
    params = init_params(kp, H, NUM_HEADS, MLP_DIM)

    fwd = jax.jit(functools.partial(transformer_forward, num_heads=NUM_HEADS))
    out = jax.block_until_ready(fwd(x, params))

    assert out.shape == (B, S, H), out.shape
    assert bool(jnp.all(jnp.isfinite(out)))
    print("KERNEL_OK")
</pallas_src>

<mosaic_0001>
module attributes {stable_mosaic.version = 11 : i64} {
  func.func @_ln_kernel(%arg0: i32, %arg1: memref<32x256xf32, #tpu.memory_space<vmem>>, %arg2: memref<1x256xf32, #tpu.memory_space<vmem>>, %arg3: memref<1x256xf32, #tpu.memory_space<vmem>>, %arg4: memref<32x256xf32, #tpu.memory_space<vmem>>) attributes {dimension_semantics = [#tpu.dimension_semantics<parallel>], iteration_bounds = array<i64: 1>, scalar_prefetch = 0 : i64, scratch_operands = 0 : i64, tpu.core_type = #tpu.core_type<tc>, window_params = [{transform_indices = @transform_0, window_bounds = array<i64: 32, 256>}, {pipeline_mode = #tpu.pipeline_mode<synchronous>, transform_indices = @transform_1, window_bounds = array<i64: 1, 256>}, {pipeline_mode = #tpu.pipeline_mode<synchronous>, transform_indices = @transform_2, window_bounds = array<i64: 1, 256>}, {transform_indices = @transform_3, window_bounds = array<i64: 32, 256>}]} {
    %c0 = arith.constant 0 : index
    %c0_0 = arith.constant 0 : index
    %0 = vector.load %arg1[%c0, %c0_0] : memref<32x256xf32, #tpu.memory_space<vmem>>, vector<32x256xf32>
    %cst = arith.constant dense<0.000000e+00> : vector<32xf32>
    %1 = vector.multi_reduction <add>, %0, %cst [1] : vector<32x256xf32> to vector<32xf32>
    %2 = vector.shape_cast %1 : vector<32xf32> to vector<32x1xf32>
    %cst_1 = arith.constant 2.560000e+02 : f32
    %3 = vector.broadcast %cst_1 : f32 to vector<32x1xf32>
    %4 = arith.divf %2, %3 : vector<32x1xf32>
    %5 = vector.broadcast %4 : vector<32x1xf32> to vector<32x256xf32>
    %6 = arith.subf %0, %5 : vector<32x256xf32>
    %7 = arith.mulf %6, %6 : vector<32x256xf32>
    %cst_2 = arith.constant dense<0.000000e+00> : vector<32xf32>
    %8 = vector.multi_reduction <add>, %7, %cst_2 [1] : vector<32x256xf32> to vector<32xf32>
    %9 = vector.shape_cast %8 : vector<32xf32> to vector<32x1xf32>
    %cst_3 = arith.constant 2.560000e+02 : f32
    %10 = vector.broadcast %cst_3 : f32 to vector<32x1xf32>
    %11 = arith.divf %9, %10 : vector<32x1xf32>
    %cst_4 = arith.constant 9.99999974E-6 : f32
    %12 = vector.broadcast %cst_4 : f32 to vector<32x1xf32>
    %13 = arith.addf %11, %12 : vector<32x1xf32>
    %14 = math.rsqrt %13 : vector<32x1xf32>
    %15 = vector.broadcast %14 : vector<32x1xf32> to vector<32x256xf32>
    %16 = arith.mulf %6, %15 : vector<32x256xf32>
    %c0_5 = arith.constant 0 : index
    %c0_6 = arith.constant 0 : index
    %17 = vector.load %arg2[%c0_5, %c0_6] : memref<1x256xf32, #tpu.memory_space<vmem>>, vector<1x256xf32>
    %18 = vector.broadcast %17 : vector<1x256xf32> to vector<32x256xf32>
    %19 = arith.mulf %16, %18 : vector<32x256xf32>
    %c0_7 = arith.constant 0 : index
    %c0_8 = arith.constant 0 : index
    %20 = vector.load %arg3[%c0_7, %c0_8] : memref<1x256xf32, #tpu.memory_space<vmem>>, vector<1x256xf32>
    %21 = vector.broadcast %20 : vector<1x256xf32> to vector<32x256xf32>
    %22 = arith.addf %19, %21 : vector<32x256xf32>
    %c0_9 = arith.constant 0 : index
    %c0_10 = arith.constant 0 : index
    %23 = vector.load %arg4[%c0_9, %c0_10] : memref<32x256xf32, #tpu.memory_space<vmem>>, vector<32x256xf32>
    tpu.vector_store %arg4[%c0_9, %c0_10], %22 {strides = array<i32>} : memref<32x256xf32, #tpu.memory_space<vmem>>, vector<32x256xf32>,
    return
  }
  func.func @transform_0(%arg0: i32) -> (i32, i32) {
    %c0_i32 = arith.constant 0 : i32
    %c0_i32_0 = arith.constant 0 : i32
    return %arg0, %c0_i32 : i32, i32
  }
  func.func @transform_1(%arg0: i32) -> (i32, i32) {
    %c0_i32 = arith.constant 0 : i32
    %c0_i32_0 = arith.constant 0 : i32
    %c0_i32_1 = arith.constant 0 : i32
    return %c0_i32, %c0_i32_0 : i32, i32
  }
  func.func @transform_2(%arg0: i32) -> (i32, i32) {
    %c0_i32 = arith.constant 0 : i32
    %c0_i32_0 = arith.constant 0 : i32
    %c0_i32_1 = arith.constant 0 : i32
    return %c0_i32, %c0_i32_0 : i32, i32
  }
  func.func @transform_3(%arg0: i32) -> (i32, i32) {
    %c0_i32 = arith.constant 0 : i32
    %c0_i32_0 = arith.constant 0 : i32
    return %arg0, %c0_i32 : i32, i32
  }
}

module attributes {stable_mosaic.version = 11 : i64} {
  func.func @_linear_kernel(%arg0: i32, %arg1: i32, %arg2: i32, %arg3: memref<32x256xf32, #tpu.memory_space<vmem>>, %arg4: memref<256x256xf32, #tpu.memory_space<vmem>>, %arg5: memref<1x256xf32, #tpu.memory_space<vmem>>, %arg6: memref<32x256xf32, #tpu.memory_space<vmem>>, %arg7: memref<32x256xf32, #tpu.memory_space<vmem>>) attributes {dimension_semantics = [#tpu.dimension_semantics<parallel>, #tpu.dimension_semantics<parallel>, #tpu.dimension_semantics<arbitrary>], iteration_bounds = array<i64: 1, 3, 1>, scalar_prefetch = 0 : i64, scratch_operands = 1 : i64, tpu.core_type = #tpu.core_type<tc>, window_params = [{transform_indices = @transform_0, window_bounds = array<i64: 32, 256>}, {transform_indices = @transform_1, window_bounds = array<i64: 256, 256>}, {transform_indices = @transform_2, window_bounds = array<i64: 1, 256>}, {transform_indices = @transform_3, window_bounds = array<i64: 32, 256>}]} {
    %c0_i32 = arith.constant 0 : i32
    %0 = arith.cmpi eq, %arg2, %c0_i32 : i32
    %1 = arith.extui %0 : i1 to i32
    %c0_i32_0 = arith.constant 0 : i32
    %2 = arith.cmpi ne, %1, %c0_i32_0 : i32
    scf.if %2 {
      %cst_10 = arith.constant 0.000000e+00 : f32
      %12 = vector.broadcast %cst_10 : f32 to vector<32x256xf32>
      %c0_11 = arith.constant 0 : index
      %c0_12 = arith.constant 0 : index
      %13 = vector.load %arg7[%c0_11, %c0_12] : memref<32x256xf32, #tpu.memory_space<vmem>>, vector<32x256xf32>
      tpu.vector_store %arg7[%c0_11, %c0_12], %12 {strides = array<i32>} : memref<32x256xf32, #tpu.memory_space<vmem>>, vector<32x256xf32>,
    } else {
    }
    %c0 = arith.constant 0 : index
    %c0_1 = arith.constant 0 : index
    %3 = vector.load %arg7[%c0, %c0_1] : memref<32x256xf32, #tpu.memory_space<vmem>>, vector<32x256xf32>
    %c0_2 = arith.constant 0 : index
    %c0_3 = arith.constant 0 : index
    %4 = vector.load %arg3[%c0_2, %c0_3] : memref<32x256xf32, #tpu.memory_space<vmem>>, vector<32x256xf32>
    %c0_4 = arith.constant 0 : index
    %c0_5 = arith.constant 0 : index
    %5 = vector.load %arg4[%c0_4, %c0_5] : memref<256x256xf32, #tpu.memory_space<vmem>>, vector<256x256xf32>
    %cst = arith.constant dense<0.000000e+00> : vector<32x256xf32>
    %6 = tpu.matmul %4, %5, %cst {dimension_numbers = #tpu.dot_dimension_numbers<[1], [0], [0], [1], [0, 0, 1, 1], [], []>} : vector<32x256xf32>, vector<256x256xf32>, vector<32x256xf32> -> vector<32x256xf32>
    %7 = arith.addf %3, %6 : vector<32x256xf32>
    %c0_6 = arith.constant 0 : index
    %c0_7 = arith.constant 0 : index
    %8 = vector.load %arg7[%c0_6, %c0_7] : memref<32x256xf32, #tpu.memory_space<vmem>>, vector<32x256xf32>
    tpu.vector_store %arg7[%c0_6, %c0_7], %7 {strides = array<i32>} : memref<32x256xf32, #tpu.memory_space<vmem>>, vector<32x256xf32>,
    %c0_i32_8 = arith.constant 0 : i32
    %9 = arith.cmpi eq, %arg2, %c0_i32_8 : i32
    %10 = arith.extui %9 : i1 to i32
    %c0_i32_9 = arith.constant 0 : i32
    %11 = arith.cmpi ne, %10, %c0_i32_9 : i32
    scf.if %11 {
      %c0_10 = arith.constant 0 : index
      %c0_11 = arith.constant 0 : index
      %12 = vector.load %arg7[%c0_10, %c0_11] : memref<32x256xf32, #tpu.memory_space<vmem>>, vector<32x256xf32>
      %c0_12 = arith.constant 0 : index
      %c0_13 = arith.constant 0 : index
      %13 = vector.load %arg5[%c0_12, %c0_13] : memref<1x256xf32, #tpu.memory_space<vmem>>, vector<1x256xf32>
      %14 = vector.broadcast %13 : vector<1x256xf32> to vector<32x256xf32>
      %15 = arith.addf %12, %14 : vector<32x256xf32>
      %c0_14 = arith.constant 0 : index
      %c0_15 = arith.constant 0 : index
      %16 = vector.load %arg6[%c0_14, %c0_15] : memref<32x256xf32, #tpu.memory_space<vmem>>, vector<32x256xf32>
      tpu.vector_store %arg6[%c0_14, %c0_15], %15 {strides = array<i32>} : memref<32x256xf32, #tpu.memory_space<vmem>>, vector<32x256xf32>,
    } else {
    }
    return
  }
  func.func @transform_0(%arg0: i32, %arg1: i32, %arg2: i32) -> (i32, i32) {
    %c0_i32 = arith.constant 0 : i32
    return %arg0, %arg2 : i32, i32
  }
  func.func @transform_1(%arg0: i32, %arg1: i32, %arg2: i32) -> (i32, i32) {
    %c0_i32 = arith.constant 0 : i32
    return %arg2, %arg1 : i32, i32
  }
  func.func @transform_2(%arg0: i32, %arg1: i32, %arg2: i32) -> (i32, i32) {
    %c0_i32 = arith.constant 0 : i32
    %c0_i32_0 = arith.constant 0 : i32
    return %c0_i32, %arg1 : i32, i32
  }
  func.func @transform_3(%arg0: i32, %arg1: i32, %arg2: i32) -> (i32, i32) {
    %c0_i32 = arith.constant 0 : i32
    return %arg0, %arg1 : i32, i32
  }
}

module attributes {stable_mosaic.version = 11 : i64} {
  func.func @_attn_kernel(%arg0: i32, %arg1: memref<1x16x32xf32, #tpu.memory_space<vmem>>, %arg2: memref<1x16x32xf32, #tpu.memory_space<vmem>>, %arg3: memref<1x16x32xf32, #tpu.memory_space<vmem>>, %arg4: memref<1x16x32xf32, #tpu.memory_space<vmem>>) attributes {dimension_semantics = [#tpu.dimension_semantics<parallel>], iteration_bounds = array<i64: 16>, scalar_prefetch = 0 : i64, scratch_operands = 0 : i64, tpu.core_type = #tpu.core_type<tc>, window_params = [{transform_indices = @transform_0, window_bounds = array<i64: 1, 16, 32>}, {transform_indices = @transform_1, window_bounds = array<i64: 1, 16, 32>}, {transform_indices = @transform_2, window_bounds = array<i64: 1, 16, 32>}, {transform_indices = @transform_3, window_bounds = array<i64: 1, 16, 32>}]} {
    %c0 = arith.constant 0 : index
    %c0_0 = arith.constant 0 : index
    %c0_1 = arith.constant 0 : index
    %0 = vector.load %arg1[%c0, %c0_0, %c0_1] : memref<1x16x32xf32, #tpu.memory_space<vmem>>, vector<1x16x32xf32>
    %1 = vector.shape_cast %0 : vector<1x16x32xf32> to vector<16x32xf32>
    %c0_2 = arith.constant 0 : index
    %c0_3 = arith.constant 0 : index
    %c0_4 = arith.constant 0 : index
    %2 = vector.load %arg2[%c0_2, %c0_3, %c0_4] : memref<1x16x32xf32, #tpu.memory_space<vmem>>, vector<1x16x32xf32>
    %3 = vector.shape_cast %2 : vector<1x16x32xf32> to vector<16x32xf32>
    %c0_5 = arith.constant 0 : index
    %c0_6 = arith.constant 0 : index
    %c0_7 = arith.constant 0 : index
    %4 = vector.load %arg3[%c0_5, %c0_6, %c0_7] : memref<1x16x32xf32, #tpu.memory_space<vmem>>, vector<1x16x32xf32>
    %5 = vector.shape_cast %4 : vector<1x16x32xf32> to vector<16x32xf32>
    %cst = arith.constant dense<0.000000e+00> : vector<16x16xf32>
    %6 = tpu.matmul %1, %3, %cst {dimension_numbers = #tpu.dot_dimension_numbers<[1], [1], [0], [0], [0, 0, 1, 0], [], []>} : vector<16x32xf32>, vector<16x32xf32>, vector<16x16xf32> -> vector<16x16xf32>
    %cst_8 = arith.constant 0.176776692 : f32
    %7 = vector.broadcast %cst_8 : f32 to vector<16x16xf32>
    %8 = arith.mulf %6, %7 : vector<16x16xf32>
    %cst_9 = arith.constant dense<0xFF800000> : vector<16xf32>
    %9 = vector.multi_reduction <maximumf>, %8, %cst_9 [1] : vector<16x16xf32> to vector<16xf32>
    %10 = vector.shape_cast %9 : vector<16xf32> to vector<16x1xf32>
    %11 = vector.broadcast %10 : vector<16x1xf32> to vector<16x16xf32>
    %12 = arith.subf %8, %11 : vector<16x16xf32>
    %13 = math.exp %12 : vector<16x16xf32>
    %cst_10 = arith.constant dense<0.000000e+00> : vector<16xf32>
    %14 = vector.multi_reduction <add>, %13, %cst_10 [1] : vector<16x16xf32> to vector<16xf32>
    %15 = vector.shape_cast %14 : vector<16xf32> to vector<16x1xf32>
    %cst_11 = arith.constant dense<0.000000e+00> : vector<16x32xf32>
    %16 = tpu.matmul %13, %5, %cst_11 {dimension_numbers = #tpu.dot_dimension_numbers<[1], [0], [0], [1], [0, 0, 1, 1], [], []>} : vector<16x16xf32>, vector<16x32xf32>, vector<16x32xf32> -> vector<16x32xf32>
    %17 = tpu.reciprocal %15 : vector<16x1xf32> -> vector<16x1xf32>
    %18 = vector.broadcast %17 : vector<16x1xf32> to vector<16x32xf32>
    %19 = arith.mulf %16, %18 : vector<16x32xf32>
    %c0_12 = arith.constant 0 : index
    %c0_13 = arith.constant 0 : index
    %c0_14 = arith.constant 0 : index
    %20 = vector.load %arg4[%c0_12, %c0_13, %c0_14] : memref<1x16x32xf32, #tpu.memory_space<vmem>>, vector<1x16x32xf32>
    %21 = vector.shape_cast %20 : vector<1x16x32xf32> to vector<16x32xf32>
    %22 = vector.shape_cast %19 : vector<16x32xf32> to vector<1x16x32xf32>
    tpu.vector_store %arg4[%c0_12, %c0_13, %c0_14], %22 {strides = array<i32>} : memref<1x16x32xf32, #tpu.memory_space<vmem>>, vector<1x16x32xf32>,
    return
  }
  func.func @transform_0(%arg0: i32) -> (i32, i32, i32) {
    %c0_i32 = arith.constant 0 : i32
    %c0_i32_0 = arith.constant 0 : i32
    %c0_i32_1 = arith.constant 0 : i32
    return %arg0, %c0_i32, %c0_i32_0 : i32, i32, i32
  }
  func.func @transform_1(%arg0: i32) -> (i32, i32, i32) {
    %c0_i32 = arith.constant 0 : i32
    %c0_i32_0 = arith.constant 0 : i32
    %c0_i32_1 = arith.constant 0 : i32
    return %arg0, %c0_i32, %c0_i32_0 : i32, i32, i32
  }
  func.func @transform_2(%arg0: i32) -> (i32, i32, i32) {
    %c0_i32 = arith.constant 0 : i32
    %c0_i32_0 = arith.constant 0 : i32
    %c0_i32_1 = arith.constant 0 : i32
    return %arg0, %c0_i32, %c0_i32_0 : i32, i32, i32
  }
  func.func @transform_3(%arg0: i32) -> (i32, i32, i32) {
    %c0_i32 = arith.constant 0 : i32
    %c0_i32_0 = arith.constant 0 : i32
    %c0_i32_1 = arith.constant 0 : i32
    return %arg0, %c0_i32, %c0_i32_0 : i32, i32, i32
  }
}

module attributes {stable_mosaic.version = 11 : i64} {
  func.func @_linear_kernel(%arg0: i32, %arg1: i32, %arg2: i32, %arg3: memref<32x256xf32, #tpu.memory_space<vmem>>, %arg4: memref<256x256xf32, #tpu.memory_space<vmem>>, %arg5: memref<1x256xf32, #tpu.memory_space<vmem>>, %arg6: memref<32x256xf32, #tpu.memory_space<vmem>>, %arg7: memref<32x256xf32, #tpu.memory_space<vmem>>, %arg8: memref<32x256xf32, #tpu.memory_space<vmem>>) attributes {dimension_semantics = [#tpu.dimension_semantics<parallel>, #tpu.dimension_semantics<parallel>, #tpu.dimension_semantics<arbitrary>], iteration_bounds = array<i64: 1, 1, 1>, scalar_prefetch = 0 : i64, scratch_operands = 1 : i64, tpu.core_type = #tpu.core_type<tc>, window_params = [{transform_indices = @transform_0, window_bounds = array<i64: 32, 256>}, {transform_indices = @transform_1, window_bounds = array<i64: 256, 256>}, {transform_indices = @transform_2, window_bounds = array<i64: 1, 256>}, {transform_indices = @transform_3, window_bounds = array<i64: 32, 256>}, {transform_indices = @transform_4, window_bounds = array<i64: 32, 256>}]} {
    %c0_i32 = arith.constant 0 : i32
    %0 = arith.cmpi eq, %arg2, %c0_i32 : i32
    %1 = arith.extui %0 : i1 to i32
    %c0_i32_0 = arith.constant 0 : i32
    %2 = arith.cmpi ne, %1, %c0_i32_0 : i32
    scf.if %2 {
      %cst_10 = arith.constant 0.000000e+00 : f32
      %12 = vector.broadcast %cst_10 : f32 to vector<32x256xf32>
      %c0_11 = arith.constant 0 : index
      %c0_12 = arith.constant 0 : index
      %13 = vector.load %arg8[%c0_11, %c0_12] : memref<32x256xf32, #tpu.memory_space<vmem>>, vector<32x256xf32>
      tpu.vector_store %arg8[%c0_11, %c0_12], %12 {strides = array<i32>} : memref<32x256xf32, #tpu.memory_space<vmem>>, vector<32x256xf32>,
    } else {
    }
    %c0 = arith.constant 0 : index
    %c0_1 = arith.constant 0 : index
    %3 = vector.load %arg8[%c0, %c0_1] : memref<32x256xf32, #tpu.memory_space<vmem>>, vector<32x256xf32>
    %c0_2 = arith.constant 0 : index
    %c0_3 = arith.constant 0 : index
    %4 = vector.load %arg3[%c0_2, %c0_3] : memref<32x256xf32, #tpu.memory_space<vmem>>, vector<32x256xf32>
    %c0_4 = arith.constant 0 : index
    %c0_5 = arith.constant 0 : index
    %5 = vector.load %arg4[%c0_4, %c0_5] : memref<256x256xf32, #tpu.memory_space<vmem>>, vector<256x256xf32>
    %cst = arith.constant dense<0.000000e+00> : vector<32x256xf32>
    %6 = tpu.matmul %4, %5, %cst {dimension_numbers = #tpu.dot_dimension_numbers<[1], [0], [0], [1], [0, 0, 1, 1], [], []>} : vector<32x256xf32>, vector<256x256xf32>, vector<32x256xf32> -> vector<32x256xf32>
    %7 = arith.addf %3, %6 : vector<32x256xf32>
    %c0_6 = arith.constant 0 : index
    %c0_7 = arith.constant 0 : index
    %8 = vector.load %arg8[%c0_6, %c0_7] : memref<32x256xf32, #tpu.memory_space<vmem>>, vector<32x256xf32>
    tpu.vector_store %arg8[%c0_6, %c0_7], %7 {strides = array<i32>} : memref<32x256xf32, #tpu.memory_space<vmem>>, vector<32x256xf32>,
    %c0_i32_8 = arith.constant 0 : i32
    %9 = arith.cmpi eq, %arg2, %c0_i32_8 : i32
    %10 = arith.extui %9 : i1 to i32
    %c0_i32_9 = arith.constant 0 : i32
    %11 = arith.cmpi ne, %10, %c0_i32_9 : i32
    scf.if %11 {
      %c0_10 = arith.constant 0 : index
      %c0_11 = arith.constant 0 : index
      %12 = vector.load %arg8[%c0_10, %c0_11] : memref<32x256xf32, #tpu.memory_space<vmem>>, vector<32x256xf32>
      %c0_12 = arith.constant 0 : index
      %c0_13 = arith.constant 0 : index
      %13 = vector.load %arg5[%c0_12, %c0_13] : memref<1x256xf32, #tpu.memory_space<vmem>>, vector<1x256xf32>
      %14 = vector.broadcast %13 : vector<1x256xf32> to vector<32x256xf32>
      %15 = arith.addf %12, %14 : vector<32x256xf32>
      %c0_14 = arith.constant 0 : index
      %c0_15 = arith.constant 0 : index
      %16 = vector.load %arg6[%c0_14, %c0_15] : memref<32x256xf32, #tpu.memory_space<vmem>>, vector<32x256xf32>
      %17 = arith.addf %15, %16 : vector<32x256xf32>
      %c0_16 = arith.constant 0 : index
      %c0_17 = arith.constant 0 : index
      %18 = vector.load %arg7[%c0_16, %c0_17] : memref<32x256xf32, #tpu.memory_space<vmem>>, vector<32x256xf32>
      tpu.vector_store %arg7[%c0_16, %c0_17], %17 {strides = array<i32>} : memref<32x256xf32, #tpu.memory_space<vmem>>, vector<32x256xf32>,
    } else {
    }
    return
  }
  func.func @transform_0(%arg0: i32, %arg1: i32, %arg2: i32) -> (i32, i32) {
    %c0_i32 = arith.constant 0 : i32
    return %arg0, %arg2 : i32, i32
  }
  func.func @transform_1(%arg0: i32, %arg1: i32, %arg2: i32) -> (i32, i32) {
    %c0_i32 = arith.constant 0 : i32
    return %arg2, %arg1 : i32, i32
  }
  func.func @transform_2(%arg0: i32, %arg1: i32, %arg2: i32) -> (i32, i32) {
    %c0_i32 = arith.constant 0 : i32
    %c0_i32_0 = arith.constant 0 : i32
    return %c0_i32, %arg1 : i32, i32
  }
  func.func @transform_3(%arg0: i32, %arg1: i32, %arg2: i32) -> (i32, i32) {
    %c0_i32 = arith.constant 0 : i32
    return %arg0, %arg1 : i32, i32
  }
  func.func @transform_4(%arg0: i32, %arg1: i32, %arg2: i32) -> (i32, i32) {
    %c0_i32 = arith.constant 0 : i32
    return %arg0, %arg1 : i32, i32
  }
}

module attributes {stable_mosaic.version = 11 : i64} {
  func.func @_linear_kernel(%arg0: i32, %arg1: i32, %arg2: i32, %arg3: memref<32x256xf32, #tpu.memory_space<vmem>>, %arg4: memref<256x256xf32, #tpu.memory_space<vmem>>, %arg5: memref<1x256xf32, #tpu.memory_space<vmem>>, %arg6: memref<32x256xf32, #tpu.memory_space<vmem>>, %arg7: memref<32x256xf32, #tpu.memory_space<vmem>>) attributes {dimension_semantics = [#tpu.dimension_semantics<parallel>, #tpu.dimension_semantics<parallel>, #tpu.dimension_semantics<arbitrary>], iteration_bounds = array<i64: 1, 2, 1>, scalar_prefetch = 0 : i64, scratch_operands = 1 : i64, tpu.core_type = #tpu.core_type<tc>, window_params = [{transform_indices = @transform_0, window_bounds = array<i64: 32, 256>}, {transform_indices = @transform_1, window_bounds = array<i64: 256, 256>}, {transform_indices = @transform_2, window_bounds = array<i64: 1, 256>}, {transform_indices = @transform_3, window_bounds = array<i64: 32, 256>}]} {
    %c0_i32 = arith.constant 0 : i32
    %0 = arith.cmpi eq, %arg2, %c0_i32 : i32
    %1 = arith.extui %0 : i1 to i32
    %c0_i32_0 = arith.constant 0 : i32
    %2 = arith.cmpi ne, %1, %c0_i32_0 : i32
    scf.if %2 {
      %cst_10 = arith.constant 0.000000e+00 : f32
      %12 = vector.broadcast %cst_10 : f32 to vector<32x256xf32>
      %c0_11 = arith.constant 0 : index
      %c0_12 = arith.constant 0 : index
      %13 = vector.load %arg7[%c0_11, %c0_12] : memref<32x256xf32, #tpu.memory_space<vmem>>, vector<32x256xf32>
      tpu.vector_store %arg7[%c0_11, %c0_12], %12 {strides = array<i32>} : memref<32x256xf32, #tpu.memory_space<vmem>>, vector<32x256xf32>,
    } else {
    }
    %c0 = arith.constant 0 : index
    %c0_1 = arith.constant 0 : index
    %3 = vector.load %arg7[%c0, %c0_1] : memref<32x256xf32, #tpu.memory_space<vmem>>, vector<32x256xf32>
    %c0_2 = arith.constant 0 : index
    %c0_3 = arith.constant 0 : index
    %4 = vector.load %arg3[%c0_2, %c0_3] : memref<32x256xf32, #tpu.memory_space<vmem>>, vector<32x256xf32>
    %c0_4 = arith.constant 0 : index
    %c0_5 = arith.constant 0 : index
    %5 = vector.load %arg4[%c0_4, %c0_5] : memref<256x256xf32, #tpu.memory_space<vmem>>, vector<256x256xf32>
    %cst = arith.constant dense<0.000000e+00> : vector<32x256xf32>
    %6 = tpu.matmul %4, %5, %cst {dimension_numbers = #tpu.dot_dimension_numbers<[1], [0], [0], [1], [0, 0, 1, 1], [], []>} : vector<32x256xf32>, vector<256x256xf32>, vector<32x256xf32> -> vector<32x256xf32>
    %7 = arith.addf %3, %6 : vector<32x256xf32>
    %c0_6 = arith.constant 0 : index
    %c0_7 = arith.constant 0 : index
    %8 = vector.load %arg7[%c0_6, %c0_7] : memref<32x256xf32, #tpu.memory_space<vmem>>, vector<32x256xf32>
    tpu.vector_store %arg7[%c0_6, %c0_7], %7 {strides = array<i32>} : memref<32x256xf32, #tpu.memory_space<vmem>>, vector<32x256xf32>,
    %c0_i32_8 = arith.constant 0 : i32
    %9 = arith.cmpi eq, %arg2, %c0_i32_8 : i32
    %10 = arith.extui %9 : i1 to i32
    %c0_i32_9 = arith.constant 0 : i32
    %11 = arith.cmpi ne, %10, %c0_i32_9 : i32
    scf.if %11 {
      %c0_10 = arith.constant 0 : index
      %c0_11 = arith.constant 0 : index
      %12 = vector.load %arg7[%c0_10, %c0_11] : memref<32x256xf32, #tpu.memory_space<vmem>>, vector<32x256xf32>
      %c0_12 = arith.constant 0 : index
      %c0_13 = arith.constant 0 : index
      %13 = vector.load %arg5[%c0_12, %c0_13] : memref<1x256xf32, #tpu.memory_space<vmem>>, vector<1x256xf32>
      %14 = vector.broadcast %13 : vector<1x256xf32> to vector<32x256xf32>
      %15 = arith.addf %12, %14 : vector<32x256xf32>
      %cst_14 = arith.constant 5.000000e-01 : f32
      %16 = vector.broadcast %cst_14 : f32 to vector<32x256xf32>
      %17 = arith.mulf %16, %15 : vector<32x256xf32>
      %cst_15 = arith.constant 4.471500e-02 : f32
      %18 = vector.broadcast %cst_15 : f32 to vector<32x256xf32>
      %19 = arith.mulf %18, %15 : vector<32x256xf32>
      %20 = arith.mulf %19, %15 : vector<32x256xf32>
      %21 = arith.mulf %20, %15 : vector<32x256xf32>
      %22 = arith.addf %15, %21 : vector<32x256xf32>
      %cst_16 = arith.constant 0.797884583 : f32
      %23 = vector.broadcast %cst_16 : f32 to vector<32x256xf32>
      %24 = arith.mulf %23, %22 : vector<32x256xf32>
      %25 = math.tanh %24 : vector<32x256xf32>
      %cst_17 = arith.constant 1.000000e+00 : f32
      %26 = vector.broadcast %cst_17 : f32 to vector<32x256xf32>
      %27 = arith.addf %26, %25 : vector<32x256xf32>
      %28 = arith.mulf %17, %27 : vector<32x256xf32>
      %c0_18 = arith.constant 0 : index
      %c0_19 = arith.constant 0 : index
      %29 = vector.load %arg6[%c0_18, %c0_19] : memref<32x256xf32, #tpu.memory_space<vmem>>, vector<32x256xf32>
      tpu.vector_store %arg6[%c0_18, %c0_19], %28 {strides = array<i32>} : memref<32x256xf32, #tpu.memory_space<vmem>>, vector<32x256xf32>,
    } else {
    }
    return
  }
  func.func @transform_0(%arg0: i32, %arg1: i32, %arg2: i32) -> (i32, i32) {
    %c0_i32 = arith.constant 0 : i32
    return %arg0, %arg2 : i32, i32
  }
  func.func @transform_1(%arg0: i32, %arg1: i32, %arg2: i32) -> (i32, i32) {
    %c0_i32 = arith.constant 0 : i32
    return %arg2, %arg1 : i32, i32
  }
  func.func @transform_2(%arg0: i32, %arg1: i32, %arg2: i32) -> (i32, i32) {
    %c0_i32 = arith.constant 0 : i32
    %c0_i32_0 = arith.constant 0 : i32
    return %c0_i32, %arg1 : i32, i32
  }
  func.func @transform_3(%arg0: i32, %arg1: i32, %arg2: i32) -> (i32, i32) {
    %c0_i32 = arith.constant 0 : i32
    return %arg0, %arg1 : i32, i32
  }
}

module attributes {stable_mosaic.version = 11 : i64} {
  func.func @_ln_kernel(%arg0: i32, %arg1: memref<32x256xf32, #tpu.memory_space<vmem>>, %arg2: memref<1x256xf32, #tpu.memory_space<vmem>>, %arg3: memref<1x256xf32, #tpu.memory_space<vmem>>, %arg4: memref<32x256xf32, #tpu.memory_space<vmem>>) attributes {dimension_semantics = [#tpu.dimension_semantics<parallel>], iteration_bounds = array<i64: 1>, scalar_prefetch = 0 : i64, scratch_operands = 0 : i64, tpu.core_type = #tpu.core_type<tc>, window_params = [{transform_indices = @transform_0, window_bounds = array<i64: 32, 256>}, {pipeline_mode = #tpu.pipeline_mode<synchronous>, transform_indices = @transform_1, window_bounds = array<i64: 1, 256>}, {pipeline_mode = #tpu.pipeline_mode<synchronous>, transform_indices = @transform_2, window_bounds = array<i64: 1, 256>}, {transform_indices = @transform_3, window_bounds = array<i64: 32, 256>}]} {
    %c0 = arith.constant 0 : index
    %c0_0 = arith.constant 0 : index
    %0 = vector.load %arg1[%c0, %c0_0] : memref<32x256xf32, #tpu.memory_space<vmem>>, vector<32x256xf32>
    %cst = arith.constant dense<0.000000e+00> : vector<32xf32>
    %1 = vector.multi_reduction <add>, %0, %cst [1] : vector<32x256xf32> to vector<32xf32>
    %2 = vector.shape_cast %1 : vector<32xf32> to vector<32x1xf32>
    %cst_1 = arith.constant 2.560000e+02 : f32
    %3 = vector.broadcast %cst_1 : f32 to vector<32x1xf32>
    %4 = arith.divf %2, %3 : vector<32x1xf32>
    %5 = vector.broadcast %4 : vector<32x1xf32> to vector<32x256xf32>
    %6 = arith.subf %0, %5 : vector<32x256xf32>
    %7 = arith.mulf %6, %6 : vector<32x256xf32>
    %cst_2 = arith.constant dense<0.000000e+00> : vector<32xf32>
    %8 = vector.multi_reduction <add>, %7, %cst_2 [1] : vector<32x256xf32> to vector<32xf32>
    %9 = vector.shape_cast %8 : vector<32xf32> to vector<32x1xf32>
    %cst_3 = arith.constant 2.560000e+02 : f32
    %10 = vector.broadcast %cst_3 : f32 to vector<32x1xf32>
    %11 = arith.divf %9, %10 : vector<32x1xf32>
    %cst_4 = arith.constant 9.99999974E-6 : f32
    %12 = vector.broadcast %cst_4 : f32 to vector<32x1xf32>
    %13 = arith.addf %11, %12 : vector<32x1xf32>
    %14 = math.rsqrt %13 : vector<32x1xf32>
    %15 = vector.broadcast %14 : vector<32x1xf32> to vector<32x256xf32>
    %16 = arith.mulf %6, %15 : vector<32x256xf32>
    %c0_5 = arith.constant 0 : index
    %c0_6 = arith.constant 0 : index
    %17 = vector.load %arg2[%c0_5, %c0_6] : memref<1x256xf32, #tpu.memory_space<vmem>>, vector<1x256xf32>
    %18 = vector.broadcast %17 : vector<1x256xf32> to vector<32x256xf32>
    %19 = arith.mulf %16, %18 : vector<32x256xf32>
    %c0_7 = arith.constant 0 : index
    %c0_8 = arith.constant 0 : index
    %20 = vector.load %arg3[%c0_7, %c0_8] : memref<1x256xf32, #tpu.memory_space<vmem>>, vector<1x256xf32>
    %21 = vector.broadcast %20 : vector<1x256xf32> to vector<32x256xf32>
    %22 = arith.addf %19, %21 : vector<32x256xf32>
    %c0_9 = arith.constant 0 : index
    %c0_10 = arith.constant 0 : index
    %23 = vector.load %arg4[%c0_9, %c0_10] : memref<32x256xf32, #tpu.memory_space<vmem>>, vector<32x256xf32>
    tpu.vector_store %arg4[%c0_9, %c0_10], %22 {strides = array<i32>} : memref<32x256xf32, #tpu.memory_space<vmem>>, vector<32x256xf32>,
    return
  }
  func.func @transform_0(%arg0: i32) -> (i32, i32) {
    %c0_i32 = arith.constant 0 : i32
    %c0_i32_0 = arith.constant 0 : i32
    return %arg0, %c0_i32 : i32, i32
  }
  func.func @transform_1(%arg0: i32) -> (i32, i32) {
    %c0_i32 = arith.constant 0 : i32
    %c0_i32_0 = arith.constant 0 : i32
    %c0_i32_1 = arith.constant 0 : i32
    return %c0_i32, %c0_i32_0 : i32, i32
  }
  func.func @transform_2(%arg0: i32) -> (i32, i32) {
    %c0_i32 = arith.constant 0 : i32
    %c0_i32_0 = arith.constant 0 : i32
    %c0_i32_1 = arith.constant 0 : i32
    return %c0_i32, %c0_i32_0 : i32, i32
  }
  func.func @transform_3(%arg0: i32) -> (i32, i32) {
    %c0_i32 = arith.constant 0 : i32
    %c0_i32_0 = arith.constant 0 : i32
    return %arg0, %c0_i32 : i32, i32
  }
}

module attributes {stable_mosaic.version = 11 : i64} {
  func.func @_linear_kernel(%arg0: i32, %arg1: i32, %arg2: i32, %arg3: memref<32x512xf32, #tpu.memory_space<vmem>>, %arg4: memref<512x256xf32, #tpu.memory_space<vmem>>, %arg5: memref<1x256xf32, #tpu.memory_space<vmem>>, %arg6: memref<32x256xf32, #tpu.memory_space<vmem>>, %arg7: memref<32x256xf32, #tpu.memory_space<vmem>>, %arg8: memref<32x256xf32, #tpu.memory_space<vmem>>) attributes {dimension_semantics = [#tpu.dimension_semantics<parallel>, #tpu.dimension_semantics<parallel>, #tpu.dimension_semantics<arbitrary>], iteration_bounds = array<i64: 1, 1, 1>, scalar_prefetch = 0 : i64, scratch_operands = 1 : i64, tpu.core_type = #tpu.core_type<tc>, window_params = [{transform_indices = @transform_0, window_bounds = array<i64: 32, 512>}, {transform_indices = @transform_1, window_bounds = array<i64: 512, 256>}, {transform_indices = @transform_2, window_bounds = array<i64: 1, 256>}, {transform_indices = @transform_3, window_bounds = array<i64: 32, 256>}, {transform_indices = @transform_4, window_bounds = array<i64: 32, 256>}]} {
    %c0_i32 = arith.constant 0 : i32
    %0 = arith.cmpi eq, %arg2, %c0_i32 : i32
    %1 = arith.extui %0 : i1 to i32
    %c0_i32_0 = arith.constant 0 : i32
    %2 = arith.cmpi ne, %1, %c0_i32_0 : i32
    scf.if %2 {
      %cst_10 = arith.constant 0.000000e+00 : f32
      %12 = vector.broadcast %cst_10 : f32 to vector<32x256xf32>
      %c0_11 = arith.constant 0 : index
      %c0_12 = arith.constant 0 : index
      %13 = vector.load %arg8[%c0_11, %c0_12] : memref<32x256xf32, #tpu.memory_space<vmem>>, vector<32x256xf32>
      tpu.vector_store %arg8[%c0_11, %c0_12], %12 {strides = array<i32>} : memref<32x256xf32, #tpu.memory_space<vmem>>, vector<32x256xf32>,
    } else {
    }
    %c0 = arith.constant 0 : index
    %c0_1 = arith.constant 0 : index
    %3 = vector.load %arg8[%c0, %c0_1] : memref<32x256xf32, #tpu.memory_space<vmem>>, vector<32x256xf32>
    %c0_2 = arith.constant 0 : index
    %c0_3 = arith.constant 0 : index
    %4 = vector.load %arg3[%c0_2, %c0_3] : memref<32x512xf32, #tpu.memory_space<vmem>>, vector<32x512xf32>
    %c0_4 = arith.constant 0 : index
    %c0_5 = arith.constant 0 : index
    %5 = vector.load %arg4[%c0_4, %c0_5] : memref<512x256xf32, #tpu.memory_space<vmem>>, vector<512x256xf32>
    %cst = arith.constant dense<0.000000e+00> : vector<32x256xf32>
    %6 = tpu.matmul %4, %5, %cst {dimension_numbers = #tpu.dot_dimension_numbers<[1], [0], [0], [1], [0, 0, 1, 1], [], []>} : vector<32x512xf32>, vector<512x256xf32>, vector<32x256xf32> -> vector<32x256xf32>
    %7 = arith.addf %3, %6 : vector<32x256xf32>
    %c0_6 = arith.constant 0 : index
    %c0_7 = arith.constant 0 : index
    %8 = vector.load %arg8[%c0_6, %c0_7] : memref<32x256xf32, #tpu.memory_space<vmem>>, vector<32x256xf32>
    tpu.vector_store %arg8[%c0_6, %c0_7], %7 {strides = array<i32>} : memref<32x256xf32, #tpu.memory_space<vmem>>, vector<32x256xf32>,
    %c0_i32_8 = arith.constant 0 : i32
    %9 = arith.cmpi eq, %arg2, %c0_i32_8 : i32
    %10 = arith.extui %9 : i1 to i32
    %c0_i32_9 = arith.constant 0 : i32
    %11 = arith.cmpi ne, %10, %c0_i32_9 : i32
    scf.if %11 {
      %c0_10 = arith.constant 0 : index
      %c0_11 = arith.constant 0 : index
      %12 = vector.load %arg8[%c0_10, %c0_11] : memref<32x256xf32, #tpu.memory_space<vmem>>, vector<32x256xf32>
      %c0_12 = arith.constant 0 : index
      %c0_13 = arith.constant 0 : index
      %13 = vector.load %arg5[%c0_12, %c0_13] : memref<1x256xf32, #tpu.memory_space<vmem>>, vector<1x256xf32>
      %14 = vector.broadcast %13 : vector<1x256xf32> to vector<32x256xf32>
      %15 = arith.addf %12, %14 : vector<32x256xf32>
      %c0_14 = arith.constant 0 : index
      %c0_15 = arith.constant 0 : index
      %16 = vector.load %arg6[%c0_14, %c0_15] : memref<32x256xf32, #tpu.memory_space<vmem>>, vector<32x256xf32>
      %17 = arith.addf %15, %16 : vector<32x256xf32>
      %c0_16 = arith.constant 0 : index
      %c0_17 = arith.constant 0 : index
      %18 = vector.load %arg7[%c0_16, %c0_17] : memref<32x256xf32, #tpu.memory_space<vmem>>, vector<32x256xf32>
      tpu.vector_store %arg7[%c0_16, %c0_17], %17 {strides = array<i32>} : memref<32x256xf32, #tpu.memory_space<vmem>>, vector<32x256xf32>,
    } else {
    }
    return
  }
  func.func @transform_0(%arg0: i32, %arg1: i32, %arg2: i32) -> (i32, i32) {
    %c0_i32 = arith.constant 0 : i32
    return %arg0, %arg2 : i32, i32
  }
  func.func @transform_1(%arg0: i32, %arg1: i32, %arg2: i32) -> (i32, i32) {
    %c0_i32 = arith.constant 0 : i32
    return %arg2, %arg1 : i32, i32
  }
  func.func @transform_2(%arg0: i32, %arg1: i32, %arg2: i32) -> (i32, i32) {
    %c0_i32 = arith.constant 0 : i32
    %c0_i32_0 = arith.constant 0 : i32
    return %c0_i32, %arg1 : i32, i32
  }
  func.func @transform_3(%arg0: i32, %arg1: i32, %arg2: i32) -> (i32, i32) {
    %c0_i32 = arith.constant 0 : i32
    return %arg0, %arg1 : i32, i32
  }
  func.func @transform_4(%arg0: i32, %arg1: i32, %arg2: i32) -> (i32, i32) {
    %c0_i32 = arith.constant 0 : i32
    return %arg0, %arg1 : i32, i32
  }
}

</mosaic_0001>

<llo_original>
// kernel: transformer_forward.7
$region0: #{transformer_forward.7}
  #allocation0 [shape = 'u32[]', space=smem, size = 0x4, offset = 0x4, fixed_abs, tag = 'smem constant byte address 0x4 - core index']
  #allocation1 [shape = 'u32[144,128]{1,0:T(1,128)}', space=vmem, size = 0x12000, scoped, tag = 'internal scratch']
  %s0 = inlined_call_operand.hbm [shape: f32[32,256], index: 0, kind: input, shape index: {}]
  %s1 = inlined_call_operand.vmem [shape: f32[1,256], index: 1, kind: input, shape index: {}]
  %s2 = inlined_call_operand.vmem [shape: f32[1,256], index: 2, kind: input, shape index: {}]
  %s3 = inlined_call_operand.vmem [shape: f32[32,256], index: 3, kind: output, shape index: {}]
  %s4 = sld [smem:[#allocation0]]
  $region26: #{transformer_forward.7} parent=0
    _
  %s6 = ssub.s32 1, %s4
  %s7 = scalar_select 0, %s6, %s4
  $region1: #{transformer_forward.7} parent=0
    #allocation2 [shape = 'u8[32768]{0}', space=vmem, size = 0x8000, scoped, tag = 'input window, operand 0, single buffered']
    #allocation3 [shape = 's32[1]{0}', space=sflag, size = 0x4, scoped, tag = 'scoped memory for transformer_forward.7']
    %8 = vsyncpa [#allocation3], 0
    // Predicated region
    $region2: #{transformer_forward.7} parent=1 // pred_check
      _
    $region3: #{transformer_forward.7} parent=1 // pred_check_branch
      %10 = sbr.rel (0) target = $region5
    $region4: #{transformer_forward.7} parent=1 // pred_region
      %s12 = ssub.s32 1024, 1024
      %13 = vsyncadd [#allocation3], %s12
      %s14 = sshll.u32 [#allocation2], 4
      %s15 = int_to_ptr.vmem [resolvable:$true] %s14
      %20 = dma.hbm_to_vmem [thread:$0]  %s0, 1024, %s15, [#allocation3], 256, 256, 16
    $region5: #{transformer_forward.7} parent=1 // pred_fallthru
      _
    // Predicated region
    $region6: #{transformer_forward.7} parent=1 // pred_check
      _
    $region7: #{transformer_forward.7} parent=1 // pred_check_branch
      %22 = sbr.rel (0) target = $region9
    $region8: #{transformer_forward.7} parent=1 // pred_region
      _
    $region9: #{transformer_forward.7} parent=1 // pred_fallthru
      _
    // Predicated region
    $region10: #{transformer_forward.7} parent=1 // pred_check
      _
    $region11: #{transformer_forward.7} parent=1 // pred_check_branch
      %24 = sbr.rel (0) target = $region13
    $region12: #{transformer_forward.7} parent=1 // pred_region
      _
    $region13: #{transformer_forward.7} parent=1 // pred_fallthru
      _
    // Predicated region
    $region14: #{transformer_forward.7} parent=1 // pred_check
      _
    $region15: #{transformer_forward.7} parent=1 // pred_check_branch
      %26 = sbr.rel (0) target = $region17
    $region16: #{transformer_forward.7} parent=1 // pred_region
      %27 = dma.done [#allocation3], 1024
    $region17: #{transformer_forward.7} parent=1 // pred_fallthru
      _
    %v28 = vld [vmem:[#allocation2] sm:$0xff]
    %v29 = vld [vmem:[#allocation2 + $0x8] sm:$0xff]
    %v30 = vld [vmem:[#allocation2 + $0x10] sm:$0xff]
    %v31 = vld [vmem:[#allocation2 + $0x18] sm:$0xff]
    %v32 = vld [vmem:[#allocation2 + $0x20] sm:$0xff]
    %v33 = vld [vmem:[#allocation2 + $0x28] sm:$0xff]
    %v34 = vld [vmem:[#allocation2 + $0x30] sm:$0xff]
    %v35 = vld [vmem:[#allocation2 + $0x38] sm:$0xff]
    %v36 = vadd.f32 %v28, %v29
    %37 = vadd.xlane.f32.xlu0 %v36
    %v38 = vpop.xlane.xlu0 %37
    %v39 = vadd.f32 %v30, %v31
    %40 = vadd.xlane.f32.xlu0 %v39
    %v41 = vpop.xlane.xlu0 %40
    %v42 = vadd.f32 %v32, %v33
    %43 = vadd.xlane.f32.xlu0 %v42
    %v44 = vpop.xlane.xlu0 %43
    %v45 = vadd.f32 %v34, %v35
    %46 = vadd.xlane.f32.xlu0 %v45
    %v47 = vpop.xlane.xlu0 %46
    %v48 = vrcp.pop 256.0
    %v49 = vmul.f32 %v38, %v48
    %v50 = vmul.f32 %v41, %v48
    %v51 = vmul.f32 %v44, %v48
    %v52 = vmul.f32 %v47, %v48
    %v53 = vsub.f32 %v28, %v49
    %v54 = vsub.f32 %v29, %v49
    %v55 = vsub.f32 %v30, %v50
    %v56 = vsub.f32 %v31, %v50
    %v57 = vsub.f32 %v32, %v51
    %v58 = vsub.f32 %v33, %v51
    %v59 = vsub.f32 %v34, %v52
    %v60 = vsub.f32 %v35, %v52
    %v61 = vmul.f32 %v53, %v53
    %v62 = vmul.f32 %v54, %v54
    %v63 = vmul.f32 %v55, %v55
    %v64 = vmul.f32 %v56, %v56
    %v65 = vmul.f32 %v57, %v57
    %v66 = vmul.f32 %v58, %v58
    %v67 = vmul.f32 %v59, %v59
    %v68 = vmul.f32 %v60, %v60
    %v69 = vadd.f32 %v61, %v62
    %70 = vadd.xlane.f32.xlu0 %v69
    %v71 = vpop.xlane.xlu0 %70
    %v72 = vadd.f32 %v63, %v64
    %73 = vadd.xlane.f32.xlu0 %v72
    %v74 = vpop.xlane.xlu0 %73
    %v75 = vadd.f32 %v65, %v66
    %76 = vadd.xlane.f32.xlu0 %v75
    %v77 = vpop.xlane.xlu0 %76
    %v78 = vadd.f32 %v67, %v68
    %79 = vadd.xlane.f32.xlu0 %v78
    %v80 = vpop.xlane.xlu0 %79
    %v81 = vmul.f32 %v71, %v48
    %v82 = vmul.f32 %v74, %v48
    %v83 = vmul.f32 %v77, %v48
    %v84 = vmul.f32 %v80, %v48
    %v85 = vadd.f32 %v81, 1e-05
    %v86 = vadd.f32 %v82, 1e-05
    %v87 = vadd.f32 %v83, 1e-05
    %v88 = vadd.f32 %v84, 1e-05
    %v89 = vrsqrt.pop %v85
    %v90 = vrsqrt.pop %v86
    %v91 = vrsqrt.pop %v87
    %v92 = vrsqrt.pop %v88
    %v93 = vmul.f32 %v53, %v89
    %v94 = vmul.f32 %v54, %v89
    %v95 = vmul.f32 %v55, %v90
    %v96 = vmul.f32 %v56, %v90
    %v97 = vmul.f32 %v57, %v91
    %v98 = vmul.f32 %v58, %v91
    %v99 = vmul.f32 %v59, %v92
    %v100 = vmul.f32 %v60, %v92
    %v101 = vld [vmem:[%s1] sm:$0x3]
    %v103 = vlaneseq
    %v104 = vshrl.u32 %v103, 7
    %v105 = vsub.s32 0, %v104
    %v106 = vrot.slane %v101, %v105
    %v107 = vlaneseq
    %v108 = vshrl.u32 %v107, 7
    %v109 = vsub.s32 1, %v108
    %v110 = vrot.slane %v101, %v109
    %v113 = vmul.f32 %v93, %v106
    %v114 = vmul.f32 %v94, %v110
    %v115 = vmul.f32 %v95, %v106
    %v116 = vmul.f32 %v96, %v110
    %v117 = vmul.f32 %v97, %v106
    %v118 = vmul.f32 %v98, %v110
    %v119 = vmul.f32 %v99, %v106
    %v120 = vmul.f32 %v100, %v110
    %v121 = vld [vmem:[%s2] sm:$0x3]
    %v123 = vlaneseq
    %v124 = vshrl.u32 %v123, 7
    %v125 = vsub.s32 0, %v124
    %v126 = vrot.slane %v121, %v125
    %v127 = vlaneseq
    %v128 = vshrl.u32 %v127, 7
    %v129 = vsub.s32 1, %v128
    %v130 = vrot.slane %v121, %v129
    %v133 = vadd.f32 %v113, %v126
    %v134 = vadd.f32 %v114, %v130
    %v135 = vadd.f32 %v115, %v126
    %v136 = vadd.f32 %v116, %v130
    %v137 = vadd.f32 %v117, %v126
    %v138 = vadd.f32 %v118, %v130
    %v139 = vadd.f32 %v119, %v126
    %v140 = vadd.f32 %v120, %v130
    %141 = vst [vmem:[%s3] sm:$0xff] %v133
    %142 = vst [vmem:[%s3 + $0x8] sm:$0xff] %v134
    %143 = vst [vmem:[%s3 + $0x10] sm:$0xff] %v135
    %144 = vst [vmem:[%s3 + $0x18] sm:$0xff] %v136
    %145 = vst [vmem:[%s3 + $0x20] sm:$0xff] %v137
    %146 = vst [vmem:[%s3 + $0x28] sm:$0xff] %v138
    %147 = vst [vmem:[%s3 + $0x30] sm:$0xff] %v139
    %148 = vst [vmem:[%s3 + $0x38] sm:$0xff] %v140
    // Predicated region
    $region18: #{transformer_forward.7} parent=1 // pred_check
      _
    $region19: #{transformer_forward.7} parent=1 // pred_check_branch
      %150 = sbr.rel (0) target = $region21
    $region20: #{transformer_forward.7} parent=1 // pred_region
      _
    $region21: #{transformer_forward.7} parent=1 // pred_fallthru
      _
    // Predicated region
    $region22: #{transformer_forward.7} parent=1 // pred_check
      _
    $region23: #{transformer_forward.7} parent=1 // pred_check_branch
      %152 = sbr.rel (0) target = $region25
    $region24: #{transformer_forward.7} parent=1 // pred_region
      _
    $region25: #{transformer_forward.7} parent=1 // pred_fallthru
      _
    %153 = vsyncpa [#allocation3], 1

// kernel: transformer_forward.8
$region0: #{transformer_forward.8}
  #allocation0 [shape = 'u32[]', space=smem, size = 0x4, offset = 0x4, fixed_abs, tag = 'smem constant byte address 0x4 - core index']
  #allocation1 [shape = 'u32[144,128]{1,0:T(1,128)}', space=vmem, size = 0x12000, scoped, tag = 'internal scratch']
  #allocation2 [shape = 'f32[32,256]{1,0:T(8,128)}', space=vmem, size = 0x8000, scoped, tag = 'scratch operand']
  %s0 = inlined_call_operand.vmem [shape: f32[32,256], index: 0, kind: input, shape index: {}]
  %s1 = inlined_call_operand.hbm [shape: f32[256,768], index: 1, kind: input, shape index: {}]
  %s2 = inlined_call_operand.vmem [shape: f32[1,768], index: 2, kind: input, shape index: {}]
  %s3 = inlined_call_operand.vmem [shape: f32[32,768], index: 3, kind: output, shape index: {}]
  %s4 = sld [smem:[#allocation0]]
  $region76: #{transformer_forward.8} parent=0
    _
  %s6 = ssub.s32 1, %s4
  %s7 = scalar_select 0, %s6, %s4
  $region1: #{transformer_forward.8} parent=0
    #allocation3 [shape = 'u8[524288]{0}', space=vmem, size = 0x80000, scoped, tag = 'input window, operand 1']
    #allocation4 [shape = 's32[2]{0}', space=sflag, size = 0x8, scoped, tag = 'scoped memory for transformer_forward.8']
    #allocation5 [shape = 'u8[65536]{0}', space=vmem, size = 0x10000, scoped, tag = 'output window, operand 0']
    %8 = vsyncpa [#allocation4], 0
    %s9 = scalar_lea.sflag [#allocation4], 1
    %10 = vsyncpa %s9, 0
    loop: start=0, step=1, limit=5
    $region2: #{transformer_forward.8} parent=1 // loop_pre_header
      _
    $region3: #{transformer_forward.8} parent=1 // loop_header
      %s12 = sphi 0, %s16
      %p13 = scmp.ge.s32.totalorder %s12, 5
      %s19 = sphi 0, %s38
      %s20 = sphi 0, %s34
      %s21 = sphi 0, %s30
      %s22 = sphi 0, %s19
      %s23 = sphi 0, %s20
      %s24 = sphi 0, %s21
      %s25 = sphi 0, %s22
      %s26 = sphi 0, %s23
      %s27 = sphi 0, %s24
      %s43 = sphi 0, %s45
      %s46 = sphi 0, %s43
      %s47 = sphi 0, %s46
      %s63 = sphi 0, %s47
      %s71 = sphi 0, %s73
      %s74 = sphi 0, %s71
      %s75 = sphi 0, %s74
      %s91 = sphi 0, %s75
      %s97 = sphi 0, %s99
      %s100 = sphi 0, %s97
      %s101 = sphi 0, %s100
      %s117 = sphi 0, %s101
      %s125 = sphi 0, %s127
      %s128 = sphi 0, %s125
      %s129 = sphi 0, %s128
      %s145 = sphi 0, %s129
    $region4: #{transformer_forward.8} parent=1 // loop_header_branch
      %15 = sbr.rel (%p13) target = $region8
    $region5: #{transformer_forward.8} parent=1 // loop_body
      %s17 = ssub.s32 %s12, 1
      %s18 = ssub.s32 %s12, 2
      %s28 = sadd.s32 1, %s21
      %p29 = scmp.ge.s32.totalorder %s28, 1
      %s30 = scalar_select %p29, 0, %s28
      %s31 = sadd.s32 1, %s20
      %s32 = scalar_select %p29, %s31, %s20
      %p33 = scmp.ge.s32.totalorder %s32, 3
      %s34 = scalar_select %p33, 0, %s32
      %s35 = sadd.s32 1, %s19
      %s36 = scalar_select %p33, %s35, %s19
      %p37 = scmp.ge.s32.totalorder %s36, 1
      %s38 = scalar_select %p37, 0, %s36
      %s39 = ssub.s32 %s19, %s38
      %s40 = ssub.s32 %s21, %s30
      %s41 = sor.u32 %s39, %s40
      %p42 = scmp.eq.s32.totalorder %s41, 0
      %s44 = sadd.s32 %s43, 1
      %s45 = scalar_select %p42, %s43, %s44
      %p48 = pneg %p42
      %p49 = scmp.eq.s32.totalorder %s12, 2
      %p50 = por %p48, %p49
      %p51 = scmp.ne.s32.totalorder %s43, %s46
      %p52 = scmp.eq.s32.totalorder %s12, 0
      %p53 = por %p51, %p52
      %p54 = scmp.ne.s32.totalorder %s43, %s46
      %p55 = scmp.eq.s32.totalorder %s17, 2
      %p56 = por %p54, %p55
      %p57 = scmp.ne.s32.totalorder %s46, %s47
      %p58 = scmp.eq.s32.totalorder %s17, 0
      %p59 = por %p57, %p58
      %p60 = scmp.ne.s32.totalorder %s46, %s47
      %p61 = scmp.eq.s32.totalorder %s18, 2
      %p62 = por %p60, %p61
      %p64 = scmp.ne.s32.totalorder %s47, %s63
      %p65 = scmp.eq.s32.totalorder %s18, 0
      %p66 = por %p64, %p65
      %s67 = ssub.s32 %s21, %s30
      %s68 = ssub.s32 %s20, %s34
      %s69 = sor.u32 %s67, %s68
      %p70 = scmp.eq.s32.totalorder %s69, 0
      %s72 = sadd.s32 %s71, 1
      %s73 = scalar_select %p70, %s71, %s72
      %p76 = pneg %p70
      %p77 = scmp.eq.s32.totalorder %s12, 2
      %p78 = por %p76, %p77
      %p79 = scmp.ne.s32.totalorder %s71, %s74
      %p80 = scmp.eq.s32.totalorder %s12, 0
      %p81 = por %p79, %p80
      %p82 = scmp.ne.s32.totalorder %s71, %s74
      %p83 = scmp.eq.s32.totalorder %s17, 2
      %p84 = por %p82, %p83
      %p85 = scmp.ne.s32.totalorder %s74, %s75
      %p86 = scmp.eq.s32.totalorder %s17, 0
      %p87 = por %p85, %p86
      %p88 = scmp.ne.s32.totalorder %s74, %s75
      %p89 = scmp.eq.s32.totalorder %s18, 2
      %p90 = por %p88, %p89
      %p92 = scmp.ne.s32.totalorder %s75, %s91
      %p93 = scmp.eq.s32.totalorder %s18, 0
      %p94 = por %p92, %p93
      %s95 = ssub.s32 %s20, %s34
      %p96 = scmp.eq.s32.totalorder %s95, 0
      %s98 = sadd.s32 %s97, 1
      %s99 = scalar_select %p96, %s97, %s98
      %p102 = pneg %p96
      %p103 = scmp.eq.s32.totalorder %s12, 2
      %p104 = por %p102, %p103
      %p105 = scmp.ne.s32.totalorder %s97, %s100
      %p106 = scmp.eq.s32.totalorder %s12, 0
      %p107 = por %p105, %p106
      %p108 = scmp.ne.s32.totalorder %s97, %s100
      %p109 = scmp.eq.s32.totalorder %s17, 2
      %p110 = por %p108, %p109
      %p111 = scmp.ne.s32.totalorder %s100, %s101
      %p112 = scmp.eq.s32.totalorder %s17, 0
      %p113 = por %p111, %p112
      %p114 = scmp.ne.s32.totalorder %s100, %s101
      %p115 = scmp.eq.s32.totalorder %s18, 2
      %p116 = por %p114, %p115
      %p118 = scmp.ne.s32.totalorder %s101, %s117
      %p119 = scmp.eq.s32.totalorder %s18, 0
      %p120 = por %p118, %p119
      %s121 = ssub.s32 %s19, %s38
      %s122 = ssub.s32 %s20, %s34
      %s123 = sor.u32 %s121, %s122
      %p124 = scmp.eq.s32.totalorder %s123, 0
      %s126 = sadd.s32 %s125, 1
      %s127 = scalar_select %p124, %s125, %s126
      %p130 = pneg %p124
      %p131 = scmp.eq.s32.totalorder %s12, 2
      %p132 = por %p130, %p131
      %p133 = scmp.ne.s32.totalorder %s125, %s128
      %p134 = scmp.eq.s32.totalorder %s12, 0
      %p135 = por %p133, %p134
      %p136 = scmp.ne.s32.totalorder %s125, %s128
      %p137 = scmp.eq.s32.totalorder %s17, 2
      %p138 = por %p136, %p137
      %p139 = scmp.ne.s32.totalorder %s128, %s129
      %p140 = scmp.eq.s32.totalorder %s17, 0
      %p141 = por %p139, %p140
      %p142 = scmp.ne.s32.totalorder %s128, %s129
      %p143 = scmp.eq.s32.totalorder %s18, 2
      %p144 = por %p142, %p143
      %p146 = scmp.ne.s32.totalorder %s129, %s145
      %p147 = scmp.eq.s32.totalorder %s18, 0
      %p148 = por %p146, %p147
      %p149 = scmp.le.s32.totalorder 1, %s12
      %p150 = scmp.lt.s32.totalorder %s12, 4
      %p151 = pnand %p149, %p150
      %p152 = pneg %p151
      // Predicated region
      $region9: #{transformer_forward.8} parent=5 // pred_check
        _
      $region10: #{transformer_forward.8} parent=5 // pred_check_branch
        %154 = sbr.rel (%p151) target = $region12
      $region11: #{transformer_forward.8} parent=5 // pred_region
        %s155 = ssub.s32 %s12, 1
        // Predicated region
        $region13: #{transformer_forward.8} parent=11 // pred_check
          %p156 = pneg %p59
        $region14: #{transformer_forward.8} parent=11 // pred_check_branch
          %158 = sbr.rel (%p156) target = $region16
        $region15: #{transformer_forward.8} parent=11 // pred_region
          %s159 = smul.u32 4, %s22
          %s160 = smul.u32 2, %s24
          %p161 = scmp.lt.s32.totalorder %s159, 3
          %s162 = scalar_select %p161, %s159, 3
          %p163 = scmp.lt.s32.totalorder %s160, 1
          %s164 = scalar_select %p163, %s160, 1
          %s165 = smul.addr %s162, 2
          %s166 = sadd.s32 %s164, %s165
          %s167 = smul.addr %s166, 8
          %s168 = scalar_lea.vmem %s0, %s167
          %s169 = smul.u32 4, %s22
          %s170 = smul.u32 2, %s24
        $region16: #{transformer_forward.8} parent=11 // pred_fallthru
          _
      $region12: #{transformer_forward.8} parent=5 // pred_fallthru
        _
      %p171 = scmp.lt.s32.totalorder %s12, 3
      // Predicated region
      $region17: #{transformer_forward.8} parent=5 // pred_check
        %p172 = pneg %p171
      $region18: #{transformer_forward.8} parent=5 // pred_check_branch
        %174 = sbr.rel (%p172) target = $region20
      $region19: #{transformer_forward.8} parent=5 // pred_region
        // Predicated region
        $region21: #{transformer_forward.8} parent=19 // pred_check
          %p175 = pneg %p81
        $region22: #{transformer_forward.8} parent=19 // pred_check_branch
          %177 = sbr.rel (%p175) target = $region24
        $region23: #{transformer_forward.8} parent=19 // pred_region
          %s178 = sand.u32 %s71, 1
          %s179 = scalar_lea.sflag [#allocation4], %s178
          %s180 = sand.u32 %s71, 1
          %s181 = smul.addr %s180, 512
          %s182 = scalar_lea.vmem [#allocation3], %s181
          %s183 = smul.u32 32, %s21
          %s184 = smul.u32 2, %s20
          %s186 = ssub.s32 8192, 8192
          %187 = vsyncadd %s179, %s186
          %s188 = smul.addr %s183, 6
          %s189 = sadd.s32 %s184, %s188
          %s190 = smul.addr %s189, 128
          %s191 = scalar_lea.hbm %s1, %s190
          %s192 = sshll.u32 %s182, 4
          %s193 = int_to_ptr.vmem [resolvable:$true] %s192
          %198 = dma.hbm_to_vmem [thread:$0]  %s191, 8192, %s193, %s179, 768, 256, 16
        $region24: #{transformer_forward.8} parent=19 // pred_fallthru
          _
        // Predicated region
        $region25: #{transformer_forward.8} parent=19 // pred_check
          %p199 = pneg %p107
        $region26: #{transformer_forward.8} parent=19 // pred_check_branch
          %201 = sbr.rel (%p199) target = $region28
        $region27: #{transformer_forward.8} parent=19 // pred_region
          %s202 = smul.u32 2, %s20
          %p203 = scmp.lt.s32.totalorder %s202, 5
          %s204 = scalar_select %p203, %s202, 5
          %s205 = scalar_lea.vmem %s2, %s204
          %s206 = smul.u32 2, %s20
        $region28: #{transformer_forward.8} parent=19 // pred_fallthru
          _
      $region20: #{transformer_forward.8} parent=5 // pred_fallthru
        _
      %p207 = scmp.le.s32.totalorder 1, %s12
      %p208 = scmp.lt.s32.totalorder %s12, 4
      %p209 = pnand %p207, %p208
      %p210 = pneg %p209
      // Predicated region
      $region29: #{transformer_forward.8} parent=5 // pred_check
        _
      $region30: #{transformer_forward.8} parent=5 // pred_check_branch
        %212 = sbr.rel (%p209) target = $region32
      $region31: #{transformer_forward.8} parent=5 // pred_region
        %s213 = ssub.s32 %s12, 1
        %s214 = sand.u32 %s74, 1
        %s215 = scalar_lea.sflag [#allocation4], %s214
        %s216 = sand.u32 %s74, 1
        %s217 = smul.addr %s216, 512
        %s218 = scalar_lea.vmem [#allocation3], %s217
        // Predicated region
        $region33: #{transformer_forward.8} parent=31 // pred_check
          %p219 = pneg %p87
        $region34: #{transformer_forward.8} parent=31 // pred_check_branch
          %221 = sbr.rel (%p219) target = $region36
        $region35: #{transformer_forward.8} parent=31 // pred_region
          %222 = dma.done %s215, 8192
        $region36: #{transformer_forward.8} parent=31 // pred_fallthru
          _
        %s223 = smul.u32 4, %s22
        %s224 = smul.u32 2, %s24
        %p225 = scmp.lt.s32.totalorder %s223, 3
        %s226 = scalar_select %p225, %s223, 3
        %p227 = scmp.lt.s32.totalorder %s224, 1
        %s228 = scalar_select %p227, %s224, 1
        %s229 = smul.addr %s226, 2
        %s230 = sadd.s32 %s228, %s229
        %s231 = smul.addr %s230, 8
        %s232 = scalar_lea.vmem %s0, %s231
        %p233 = pneg %p59
        %p234 = pneg %p56
        %s235 = sand.u32 %s74, 1
        %s236 = scalar_lea.sflag [#allocation4], %s235
        %s237 = sand.u32 %s74, 1
        %s238 = smul.addr %s237, 512
        %s239 = scalar_lea.vmem [#allocation3], %s238
        %p240 = pneg %p87
        %p241 = pneg %p84
        %s242 = smul.u32 2, %s23
        %p243 = scmp.lt.s32.totalorder %s242, 5
        %s244 = scalar_select %p243, %s242, 5
        %s245 = scalar_lea.vmem %s2, %s244
        %p246 = pneg %p113
        %p247 = pneg %p110
        %p248 = pneg %p141
        %p249 = pneg %p138
        %s250 = sand.u32 %s128, 1
        %s251 = sand.u32 %s128, 1
        %s252 = smul.addr %s251, 64
        %s253 = scalar_lea.vmem [#allocation5], %s252
        %s254 = smul.u32 4, %s22
        %s255 = smul.u32 2, %s24
        %p256 = scmp.lt.s32.totalorder %s254, 3
        %s257 = scalar_select %p256, %s254, 3
        %p258 = scmp.lt.s32.totalorder %s255, 1
        %s259 = scalar_select %p258, %s255, 1
        %s260 = smul.addr %s257, 2
        %s261 = sadd.s32 %s259, %s260
        %s262 = smul.addr %s261, 8
        %s263 = scalar_lea.vmem %s0, %s262
        %s264 = smul.u32 4, %s22
        %s265 = smul.u32 2, %s24
        %s266 = smul.u32 32, %s24
        %s267 = smul.u32 2, %s23
        %s268 = smul.u32 2, %s23
        %p269 = scmp.lt.s32.totalorder %s268, 5
        %s270 = scalar_select %p269, %s268, 5
        %s271 = scalar_lea.vmem %s2, %s270
        %s272 = smul.u32 2, %s23
        %s273 = smul.u32 4, %s22
        %s274 = smul.u32 2, %s23
        %p275 = scmp.eq.s32.totalorder %s24, 0
        // Predicated region
        $region37: #{transformer_forward.8} parent=31 // pred_check
          %p276 = pneg %p275
        $region38: #{transformer_forward.8} parent=31 // pred_check_branch
          %278 = sbr.rel (%p276) target = $region40
        $region39: #{transformer_forward.8} parent=31 // pred_region
          %279 = vst [vmem:[#allocation2] sm:$0xff] 0.0
          %280 = vst [vmem:[#allocation2 + $0x8] sm:$0xff] 0.0
          %281 = vst [vmem:[#allocation2 + $0x10] sm:$0xff] 0.0
          %282 = vst [vmem:[#allocation2 + $0x18] sm:$0xff] 0.0
          %283 = vst [vmem:[#allocation2 + $0x20] sm:$0xff] 0.0
          %284 = vst [vmem:[#allocation2 + $0x28] sm:$0xff] 0.0
          %285 = vst [vmem:[#allocation2 + $0x30] sm:$0xff] 0.0
          %286 = vst [vmem:[#allocation2 + $0x38] sm:$0xff] 0.0
        $region40: #{transformer_forward.8} parent=31 // pred_fallthru
          _
        %v287 = vld [vmem:[#allocation2] sm:$0xff]
        %v288 = vld [vmem:[#allocation2 + $0x8] sm:$0xff]
        %v289 = vld [vmem:[#allocation2 + $0x10] sm:$0xff]
        %v290 = vld [vmem:[#allocation2 + $0x18] sm:$0xff]
        %v291 = vld [vmem:[#allocation2 + $0x20] sm:$0xff]
        %v292 = vld [vmem:[#allocation2 + $0x28] sm:$0xff]
        %v293 = vld [vmem:[#allocation2 + $0x30] sm:$0xff]
        %v294 = vld [vmem:[#allocation2 + $0x38] sm:$0xff]
        %v295 = vld [vmem:[%s263] sm:$0xff]
        %v296 = vld [vmem:[%s263 + $0x8] sm:$0xff]
        %v297 = vld [vmem:[%s263 + $0x10] sm:$0xff]
        %v298 = vld [vmem:[%s263 + $0x18] sm:$0xff]
        %v299 = vld [vmem:[%s263 + $0x20] sm:$0xff]
        %v300 = vld [vmem:[%s263 + $0x28] sm:$0xff]
        %v301 = vld [vmem:[%s263 + $0x30] sm:$0xff]
        %v302 = vld [vmem:[%s263 + $0x38] sm:$0xff]
        %v303 = vld [vmem:[%s218] sm:$0xff]
        %v304 = vld [vmem:[%s218 + $0x8] sm:$0xff]
        %v305 = vld [vmem:[%s218 + $0x10] sm:$0xff]
        %v306 = vld [vmem:[%s218 + $0x18] sm:$0xff]
        %v307 = vld [vmem:[%s218 + $0x20] sm:$0xff]
        %v308 = vld [vmem:[%s218 + $0x28] sm:$0xff]
        %v309 = vld [vmem:[%s218 + $0x30] sm:$0xff]
        %v310 = vld [vmem:[%s218 + $0x38] sm:$0xff]
        %v311 = vld [vmem:[%s218 + $0x40] sm:$0xff]
        %v312 = vld [vmem:[%s218 + $0x48] sm:$0xff]
        %v313 = vld [vmem:[%s218 + $0x50] sm:$0xff]
        %v314 = vld [vmem:[%s218 + $0x58] sm:$0xff]
        %v315 = vld [vmem:[%s218 + $0x60] sm:$0xff]
        %v316 = vld [vmem:[%s218 + $0x68] sm:$0xff]
        %v317 = vld [vmem:[%s218 + $0x70] sm:$0xff]
        %v318 = vld [vmem:[%s218 + $0x78] sm:$0xff]
        %v319 = vld [vmem:[%s218 + $0x80] sm:$0xff]
        %v320 = vld [vmem:[%s218 + $0x88] sm:$0xff]
        %v321 = vld [vmem:[%s218 + $0x90] sm:$0xff]
        %v322 = vld [vmem:[%s218 + $0x98] sm:$0xff]
        %v323 = vld [vmem:[%s218 + $0xa0] sm:$0xff]
        %v324 = vld [vmem:[%s218 + $0xa8] sm:$0xff]
        %v325 = vld [vmem:[%s218 + $0xb0] sm:$0xff]
        %v326 = vld [vmem:[%s218 + $0xb8] sm:$0xff]
        %v327 = vld [vmem:[%s218 + $0xc0] sm:$0xff]
        %v328 = vld [vmem:[%s218 + $0xc8] sm:$0xff]
        %v329 = vld [vmem:[%s218 + $0xd0] sm:$0xff]
        %v330 = vld [vmem:[%s218 + $0xd8] sm:$0xff]
        %v331 = vld [vmem:[%s218 + $0xe0] sm:$0xff]
        %v332 = vld [vmem:[%s218 + $0xe8] sm:$0xff]
        %v333 = vld [vmem:[%s218 + $0xf0] sm:$0xff]
        %v334 = vld [vmem:[%s218 + $0xf8] sm:$0xff]
        %v335 = vld [vmem:[%s218 + $0x100] sm:$0xff]
        %v336 = vld [vmem:[%s218 + $0x108] sm:$0xff]
        %v337 = vld [vmem:[%s218 + $0x110] sm:$0xff]
        %v338 = vld [vmem:[%s218 + $0x118] sm:$0xff]
        %v339 = vld [vmem:[%s218 + $0x120] sm:$0xff]
        %v340 = vld [vmem:[%s218 + $0x128] sm:$0xff]
        %v341 = vld [vmem:[%s218 + $0x130] sm:$0xff]
        %v342 = vld [vmem:[%s218 + $0x138] sm:$0xff]
        %v343 = vld [vmem:[%s218 + $0x140] sm:$0xff]
        %v344 = vld [vmem:[%s218 + $0x148] sm:$0xff]
        %v345 = vld [vmem:[%s218 + $0x150] sm:$0xff]
        %v346 = vld [vmem:[%s218 + $0x158] sm:$0xff]
        %v347 = vld [vmem:[%s218 + $0x160] sm:$0xff]
        %v348 = vld [vmem:[%s218 + $0x168] sm:$0xff]
        %v349 = vld [vmem:[%s218 + $0x170] sm:$0xff]
        %v350 = vld [vmem:[%s218 + $0x178] sm:$0xff]
        %v351 = vld [vmem:[%s218 + $0x180] sm:$0xff]
        %v352 = vld [vmem:[%s218 + $0x188] sm:$0xff]
        %v353 = vld [vmem:[%s218 + $0x190] sm:$0xff]
        %v354 = vld [vmem:[%s218 + $0x198] sm:$0xff]
        %v355 = vld [vmem:[%s218 + $0x1a0] sm:$0xff]
        %v356 = vld [vmem:[%s218 + $0x1a8] sm:$0xff]
        %v357 = vld [vmem:[%s218 + $0x1b0] sm:$0xff]
        %v358 = vld [vmem:[%s218 + $0x1b8] sm:$0xff]
        %v359 = vld [vmem:[%s218 + $0x1c0] sm:$0xff]
        %v360 = vld [vmem:[%s218 + $0x1c8] sm:$0xff]
        %v361 = vld [vmem:[%s218 + $0x1d0] sm:$0xff]
        %v362 = vld [vmem:[%s218 + $0x1d8] sm:$0xff]
        %v363 = vld [vmem:[%s218 + $0x1e0] sm:$0xff]
        %v364 = vld [vmem:[%s218 + $0x1e8] sm:$0xff]
        %v365 = vld [vmem:[%s218 + $0x1f0] sm:$0xff]
        %v366 = vld [vmem:[%s218 + $0x1f8] sm:$0xff]
        %367 = vmatprep.subr.mxu0 %v304
        %368 = vmatpush1.msra.mxu0 %v303
        %369 = vmatprep.subr.mxu0 %v306
        %370 = vmatpush1.msra.mxu0 %v305
        %371 = vmatprep.subr.mxu0 %v308
        %372 = vmatpush1.msra.mxu0 %v307
        %373 = vmatprep.subr.mxu0 %v310
        %374 = vmatpush1.msra.mxu0 %v309
        %375 = vmatprep.subr.mxu0 %v312
        %376 = vmatpush1.msra.mxu0 %v311
        %377 = vmatprep.subr.mxu0 %v314
        %378 = vmatpush1.msra.mxu0 %v313
        %379 = vmatprep.subr.mxu0 %v316
        %380 = vmatpush1.msra.mxu0 %v315
        %381 = vmatprep.subr.mxu0 %v318
        %382 = vmatpush1.msra.mxu0 %v317
        %383 = vmatprep.subr.mxu0 %v320
        %384 = vmatpush1.msra.mxu0 %v319
        %385 = vmatprep.subr.mxu0 %v322
        %386 = vmatpush1.msra.mxu0 %v321
        %387 = vmatprep.subr.mxu0 %v324
        %388 = vmatpush1.msra.mxu0 %v323
        %389 = vmatprep.subr.mxu0 %v326
        %390 = vmatpush1.msra.mxu0 %v325
        %391 = vmatprep.subr.mxu0 %v328
        %392 = vmatpush1.msra.mxu0 %v327
        %393 = vmatprep.subr.mxu0 %v330
        %394 = vmatpush1.msra.mxu0 %v329
        %395 = vmatprep.subr.mxu0 %v332
        %396 = vmatpush1.msra.mxu0 %v331
        %397 = vmatprep.subr.mxu0 %v334
        %398 = vmatpush1.msra.mxu0 %v333
        %399 = vmatprep.subr.mxu0 %v336
        %400 = vmatpush1.msra.mxu0 %v335
        %401 = vmatprep.subr.mxu0 %v338
        %402 = vmatpush1.msra.mxu0 %v337
        %403 = vmatprep.subr.mxu0 %v340
        %404 = vmatpush1.msra.mxu0 %v339
        %405 = vmatprep.subr.mxu0 %v342
        %406 = vmatpush1.msra.mxu0 %v341
        %407 = vmatprep.subr.mxu0 %v344
        %408 = vmatpush1.msra.mxu0 %v343
        %409 = vmatprep.subr.mxu0 %v346
        %410 = vmatpush1.msra.mxu0 %v345
        %411 = vmatprep.subr.mxu0 %v348
        %412 = vmatpush1.msra.mxu0 %v347
        %413 = vmatprep.subr.mxu0 %v350
        %414 = vmatpush1.msra.mxu0 %v349
        %415 = vmatprep.subr.mxu0 %v352
        %416 = vmatpush1.msra.mxu0 %v351
        %417 = vmatprep.subr.mxu0 %v354
        %418 = vmatpush1.msra.mxu0 %v353
        %419 = vmatprep.subr.mxu0 %v356
        %420 = vmatpush1.msra.mxu0 %v355
        %421 = vmatprep.subr.mxu0 %v358
        %422 = vmatpush1.msra.mxu0 %v357
        %423 = vmatprep.subr.mxu0 %v360
        %424 = vmatpush1.msra.mxu0 %v359
        %425 = vmatprep.subr.mxu0 %v362
        %426 = vmatpush1.msra.mxu0 %v361
        %427 = vmatprep.subr.mxu0 %v364
        %428 = vmatpush1.msra.mxu0 %v363
        %429 = vmatprep.subr.mxu0 %v366
        %430 = vmatpush1.msra.mxu0 %v365
        %431 = vmatprep.mubr.f32.mxu0 %v296
        %432 = vmatmul.mubr.f32.gmra.mrb[0].mxu0 %v295
        %v433 = vpop.f32.mrb[0].mxu0
        %v434 = vadd.f32 0.0, %v433
        %v435 = vpop.f32.mrb[0].mxu0
        %v436 = vadd.f32 0.0, %v435
        %437 = vmatprep.mubr.f32.mxu0 %v298
        %438 = vmatmul.mubr.f32.gmra.mrb[0].mxu0 %v297
        %v439 = vpop.f32.mrb[0].mxu0
        %v440 = vadd.f32 0.0, %v439
        %v441 = vpop.f32.mrb[0].mxu0
        %v442 = vadd.f32 0.0, %v441
        %443 = vmatprep.mubr.f32.mxu0 %v300
        %444 = vmatmul.mubr.f32.gmra.mrb[0].mxu0 %v299
        %v445 = vpop.f32.mrb[0].mxu0
        %v446 = vadd.f32 0.0, %v445
        %v447 = vpop.f32.mrb[0].mxu0
        %v448 = vadd.f32 0.0, %v447
        %449 = vmatprep.mubr.f32.mxu0 %v302
        %450 = vmatmul.mubr.f32.gmra.mrb[0].mxu0 %v301
        %v451 = vpop.f32.mrb[0].mxu0
        %v452 = vadd.f32 0.0, %v451
        %v453 = vpop.f32.mrb[0].mxu0
        %v454 = vadd.f32 0.0, %v453
        %455 = vdwg.mxu0
        %v456 = vadd.f32 %v287, %v434
        %v457 = vadd.f32 %v288, %v436
        %v458 = vadd.f32 %v289, %v440
        %v459 = vadd.f32 %v290, %v442
        %v460 = vadd.f32 %v291, %v446
        %v461 = vadd.f32 %v292, %v448
        %v462 = vadd.f32 %v293, %v452
        %v463 = vadd.f32 %v294, %v454
        %464 = vst [vmem:[#allocation2] sm:$0xff] %v456
        %465 = vst [vmem:[#allocation2 + $0x8] sm:$0xff] %v457
        %466 = vst [vmem:[#allocation2 + $0x10] sm:$0xff] %v458
        %467 = vst [vmem:[#allocation2 + $0x18] sm:$0xff] %v459
        %468 = vst [vmem:[#allocation2 + $0x20] sm:$0xff] %v460
        %469 = vst [vmem:[#allocation2 + $0x28] sm:$0xff] %v461
        %470 = vst [vmem:[#allocation2 + $0x30] sm:$0xff] %v462
        %471 = vst [vmem:[#allocation2 + $0x38] sm:$0xff] %v463
        // Predicated region
        $region41: #{transformer_forward.8} parent=31 // pred_check
          %p472 = pneg %p275
        $region42: #{transformer_forward.8} parent=31 // pred_check_branch
          %474 = sbr.rel (%p472) target = $region44
        $region43: #{transformer_forward.8} parent=31 // pred_region
          %v475 = vld [vmem:[#allocation2] sm:$0xff]
          %v476 = vld [vmem:[#allocation2 + $0x8] sm:$0xff]
          %v477 = vld [vmem:[#allocation2 + $0x10] sm:$0xff]
          %v478 = vld [vmem:[#allocation2 + $0x18] sm:$0xff]
          %v479 = vld [vmem:[#allocation2 + $0x20] sm:$0xff]
          %v480 = vld [vmem:[#allocation2 + $0x28] sm:$0xff]
          %v481 = vld [vmem:[#allocation2 + $0x30] sm:$0xff]
          %v482 = vld [vmem:[#allocation2 + $0x38] sm:$0xff]
          %v483 = vld [vmem:[%s271] sm:$0x3]
          %v485 = vlaneseq
          %v486 = vshrl.u32 %v485, 7
          %v487 = vsub.s32 0, %v486
          %v488 = vrot.slane %v483, %v487
          %v489 = vlaneseq
          %v490 = vshrl.u32 %v489, 7
          %v491 = vsub.s32 1, %v490
          %v492 = vrot.slane %v483, %v491
          %v495 = vadd.f32 %v475, %v488
          %v496 = vadd.f32 %v476, %v492
          %v497 = vadd.f32 %v477, %v488
          %v498 = vadd.f32 %v478, %v492
          %v499 = vadd.f32 %v479, %v488
          %v500 = vadd.f32 %v480, %v492
          %v501 = vadd.f32 %v481, %v488
          %v502 = vadd.f32 %v482, %v492
          %503 = vst [vmem:[%s253] sm:$0xff] %v495
          %504 = vst [vmem:[%s253 + $0x8] sm:$0xff] %v496
          %505 = vst [vmem:[%s253 + $0x10] sm:$0xff] %v497
          %506 = vst [vmem:[%s253 + $0x18] sm:$0xff] %v498
          %507 = vst [vmem:[%s253 + $0x20] sm:$0xff] %v499
          %508 = vst [vmem:[%s253 + $0x28] sm:$0xff] %v500
          %509 = vst [vmem:[%s253 + $0x30] sm:$0xff] %v501
          %510 = vst [vmem:[%s253 + $0x38] sm:$0xff] %v502
        $region44: #{transformer_forward.8} parent=31 // pred_fallthru
          _
        %s511 = sand.u32 %s128, 1
        %s512 = sand.u32 %s128, 1
        %s513 = smul.addr %s512, 64
        %s514 = scalar_lea.vmem [#allocation5], %s513
        // Predicated region
        $region45: #{transformer_forward.8} parent=31 // pred_check
          %p515 = pneg %p138
        $region46: #{transformer_forward.8} parent=31 // pred_check_branch
          %517 = sbr.rel (%p515) target = $region48
        $region47: #{transformer_forward.8} parent=31 // pred_region
          %s518 = smul.u32 4, %s22
          %s519 = smul.u32 2, %s23
          %s520 = smul.addr %s518, 6
          %s521 = sadd.s32 %s519, %s520
          %s522 = smul.addr %s521, 8
          %s523 = scalar_lea.vmem %s3, %s522
          // Predicated region
          $region49: #{transformer_forward.8} parent=47 // pred_check
            _
          $region50: #{transformer_forward.8} parent=47 // pred_check_branch
            %525 = sbr.rel (0) target = $region52
          $region51: #{transformer_forward.8} parent=47 // pred_region
            // Predicated region
            $region53: #{transformer_forward.8} parent=51 // pred_check
              _
            $region54: #{transformer_forward.8} parent=51 // pred_check_branch
              %527 = sbr.rel (0) target = $region56
            $region55: #{transformer_forward.8} parent=51 // pred_region
              loop: start=0, step=1, limit=1
              $region57: #{transformer_forward.8} parent=55 // loop_pre_header
                _
              $region58: #{transformer_forward.8} parent=55 // loop_header
                %s529 = sphi 0, %s533
                %p530 = scmp.ge.s32.totalorder %s529, 1
                %s534 = sphi %s514, %s514
                %s535 = sphi %s523, %s523
              $region59: #{transformer_forward.8} parent=55 // loop_header_branch
                %532 = sbr.rel (%p530) target = $region63
              $region60: #{transformer_forward.8} parent=55 // loop_body
                %v536 = vld [vmem:[%s534] sm:$0xff]
                %537 = vst [vmem:[%s535] sm:$0xff] %v536
                %v538 = vld [vmem:[%s534 + $0x8] sm:$0xff]
                %539 = vst [vmem:[%s535 + $0x8] sm:$0xff] %v538
                %v540 = vld [vmem:[%s534 + $0x10] sm:$0xff]
                %541 = vst [vmem:[%s535 + $0x30] sm:$0xff] %v540
                %v542 = vld [vmem:[%s534 + $0x18] sm:$0xff]
                %543 = vst [vmem:[%s535 + $0x38] sm:$0xff] %v542
                %v544 = vld [vmem:[%s534 + $0x20] sm:$0xff]
                %545 = vst [vmem:[%s535 + $0x60] sm:$0xff] %v544
                %v546 = vld [vmem:[%s534 + $0x28] sm:$0xff]
                %547 = vst [vmem:[%s535 + $0x68] sm:$0xff] %v546
                %v548 = vld [vmem:[%s534 + $0x30] sm:$0xff]
                %549 = vst [vmem:[%s535 + $0x90] sm:$0xff] %v548
                %v550 = vld [vmem:[%s534 + $0x38] sm:$0xff]
                %551 = vst [vmem:[%s535 + $0x98] sm:$0xff] %v550
              $region61: #{transformer_forward.8} parent=55 // loop_footer
                %s533 = sadd.s32 1, %s529
              $region62: #{transformer_forward.8} parent=55 // loop_footer_branch
                %528 = sbr.rel target = $region58
              $region63: #{transformer_forward.8} parent=55 // loop_exit
                _
            $region56: #{transformer_forward.8} parent=51 // pred_fallthru
              _
            // Predicated region
            $region64: #{transformer_forward.8} parent=51 // pred_check
              _
            $region65: #{transformer_forward.8} parent=51 // pred_check_branch
              %553 = sbr.rel target = $region67
            $region66: #{transformer_forward.8} parent=51 // pred_region
              _
            $region67: #{transformer_forward.8} parent=51 // pred_fallthru
              _
          $region52: #{transformer_forward.8} parent=47 // pred_fallthru
            _
          %554 = vnop
        $region48: #{transformer_forward.8} parent=31 // pred_fallthru
          _
      $region32: #{transformer_forward.8} parent=5 // pred_fallthru
        _
      %p555 = scmp.le.s32.totalorder 2, %s12
      // Predicated region
      $region68: #{transformer_forward.8} parent=5 // pred_check
        %p556 = pneg %p555
      $region69: #{transformer_forward.8} parent=5 // pred_check_branch
        %558 = sbr.rel (%p556) target = $region71
      $region70: #{transformer_forward.8} parent=5 // pred_region
        %s559 = ssub.s32 %s12, 2
        // Predicated region
        $region72: #{transformer_forward.8} parent=70 // pred_check
          %p560 = pneg %p144
        $region73: #{transformer_forward.8} parent=70 // pred_check_branch
          %562 = sbr.rel (%p560) target = $region75
        $region74: #{transformer_forward.8} parent=70 // pred_region
          %s563 = sand.u32 %s129, 1
          %s564 = sand.u32 %s129, 1
          %s565 = smul.addr %s564, 64
          %s566 = scalar_lea.vmem [#allocation5], %s565
        $region75: #{transformer_forward.8} parent=70 // pred_fallthru
          _
      $region71: #{transformer_forward.8} parent=5 // pred_fallthru
        _
    $region6: #{transformer_forward.8} parent=1 // loop_footer
      %s16 = sadd.s32 1, %s12
    $region7: #{transformer_forward.8} parent=1 // loop_footer_branch
      %11 = sbr.rel target = $region3
    $region8: #{transformer_forward.8} parent=1 // loop_exit
      _
    %567 = vsyncpa [#allocation4], 1
    %s568 = scalar_lea.sflag [#allocation4], 1
    %569 = vsyncpa %s568, 1

// kernel: transformer_forward.9
$region0: #{transformer_forward.9}
  #allocation0 [shape = 'u32[]', space=smem, size = 0x4, offset = 0x4, fixed_abs, tag = 'smem constant byte address 0x4 - core index']
  #allocation1 [shape = 'u32[144,128]{1,0:T(1,128)}', space=vmem, size = 0x12000, scoped, tag = 'internal scratch']
  %s0 = inlined_call_operand.vmem [shape: f32[16,16,32], index: 0, kind: input, shape index: {}]
  %s1 = inlined_call_operand.vmem [shape: f32[16,16,32], index: 1, kind: input, shape index: {}]
  %s2 = inlined_call_operand.vmem [shape: f32[16,16,32], index: 2, kind: input, shape index: {}]
  %s3 = inlined_call_operand.vmem [shape: f32[16,16,32], index: 3, kind: output, shape index: {}]
  %s4 = sld [smem:[#allocation0]]
  $region45: #{transformer_forward.9} parent=0
    _
  %s6 = ssub.s32 1, %s4
  %s7 = scalar_select 0, %s6, %s4
  loop: start=0, step=1, limit=18
  $region2: #{transformer_forward.9} parent=0 // loop_pre_header
    _
  $region3: #{transformer_forward.9} parent=0 // loop_header
    %s9 = sphi 0, %s13
    %p10 = scmp.ge.s32.totalorder %s9, 18
    %s19 = sphi 0, %s21
    %s22 = sphi 0, %s19
    %s23 = sphi 0, %s22
    %s39 = sphi 0, %s23
    %s45 = sphi 0, %s47
    %s48 = sphi 0, %s45
    %s49 = sphi 0, %s48
    %s65 = sphi 0, %s49
    %s71 = sphi 0, %s73
    %s74 = sphi 0, %s71
    %s75 = sphi 0, %s74
    %s91 = sphi 0, %s75
    %s97 = sphi 0, %s99
    %s100 = sphi 0, %s97
    %s101 = sphi 0, %s100
    %s117 = sphi 0, %s101
  $region4: #{transformer_forward.9} parent=0 // loop_header_branch
    %12 = sbr.rel (%p10) target = $region8
  $region5: #{transformer_forward.9} parent=0 // loop_body
    %s14 = ssub.s32 %s9, 1
    %s15 = ssub.s32 %s9, 2
    %s16 = sadd.s32 %s9, 1
    %s17 = ssub.s32 %s9, %s16
    %p18 = scmp.eq.s32.totalorder %s17, 0
    %s20 = sadd.s32 %s19, 1
    %s21 = scalar_select %p18, %s19, %s20
    %p24 = pneg %p18
    %p25 = scmp.eq.s32.totalorder %s9, 15
    %p26 = por %p24, %p25
    %p27 = scmp.ne.s32.totalorder %s19, %s22
    %p28 = scmp.eq.s32.totalorder %s9, 0
    %p29 = por %p27, %p28
    %p30 = scmp.ne.s32.totalorder %s19, %s22
    %p31 = scmp.eq.s32.totalorder %s14, 15
    %p32 = por %p30, %p31
    %p33 = scmp.ne.s32.totalorder %s22, %s23
    %p34 = scmp.eq.s32.totalorder %s14, 0
    %p35 = por %p33, %p34
    %p36 = scmp.ne.s32.totalorder %s22, %s23
    %p37 = scmp.eq.s32.totalorder %s15, 15
    %p38 = por %p36, %p37
    %p40 = scmp.ne.s32.totalorder %s23, %s39
    %p41 = scmp.eq.s32.totalorder %s15, 0
    %p42 = por %p40, %p41
    %s43 = ssub.s32 %s9, %s16
    %p44 = scmp.eq.s32.totalorder %s43, 0
    %s46 = sadd.s32 %s45, 1
    %s47 = scalar_select %p44, %s45, %s46
    %p50 = pneg %p44
    %p51 = scmp.eq.s32.totalorder %s9, 15
    %p52 = por %p50, %p51
    %p53 = scmp.ne.s32.totalorder %s45, %s48
    %p54 = scmp.eq.s32.totalorder %s9, 0
    %p55 = por %p53, %p54
    %p56 = scmp.ne.s32.totalorder %s45, %s48
    %p57 = scmp.eq.s32.totalorder %s14, 15
    %p58 = por %p56, %p57
    %p59 = scmp.ne.s32.totalorder %s48, %s49
    %p60 = scmp.eq.s32.totalorder %s14, 0
    %p61 = por %p59, %p60
    %p62 = scmp.ne.s32.totalorder %s48, %s49
    %p63 = scmp.eq.s32.totalorder %s15, 15
    %p64 = por %p62, %p63
    %p66 = scmp.ne.s32.totalorder %s49, %s65
    %p67 = scmp.eq.s32.totalorder %s15, 0
    %p68 = por %p66, %p67
    %s69 = ssub.s32 %s9, %s16
    %p70 = scmp.eq.s32.totalorder %s69, 0
    %s72 = sadd.s32 %s71, 1
    %s73 = scalar_select %p70, %s71, %s72
    %p76 = pneg %p70
    %p77 = scmp.eq.s32.totalorder %s9, 15
    %p78 = por %p76, %p77
    %p79 = scmp.ne.s32.totalorder %s71, %s74
    %p80 = scmp.eq.s32.totalorder %s9, 0
    %p81 = por %p79, %p80
    %p82 = scmp.ne.s32.totalorder %s71, %s74
    %p83 = scmp.eq.s32.totalorder %s14, 15
    %p84 = por %p82, %p83
    %p85 = scmp.ne.s32.totalorder %s74, %s75
    %p86 = scmp.eq.s32.totalorder %s14, 0
    %p87 = por %p85, %p86
    %p88 = scmp.ne.s32.totalorder %s74, %s75
    %p89 = scmp.eq.s32.totalorder %s15, 15
    %p90 = por %p88, %p89
    %p92 = scmp.ne.s32.totalorder %s75, %s91
    %p93 = scmp.eq.s32.totalorder %s15, 0
    %p94 = por %p92, %p93
    %s95 = ssub.s32 %s9, %s16
    %p96 = scmp.eq.s32.totalorder %s95, 0
    %s98 = sadd.s32 %s97, 1
    %s99 = scalar_select %p96, %s97, %s98
    %p102 = pneg %p96
    %p103 = scmp.eq.s32.totalorder %s9, 15
    %p104 = por %p102, %p103
    %p105 = scmp.ne.s32.totalorder %s97, %s100
    %p106 = scmp.eq.s32.totalorder %s9, 0
    %p107 = por %p105, %p106
    %p108 = scmp.ne.s32.totalorder %s97, %s100
    %p109 = scmp.eq.s32.totalorder %s14, 15
    %p110 = por %p108, %p109
    %p111 = scmp.ne.s32.totalorder %s100, %s101
    %p112 = scmp.eq.s32.totalorder %s14, 0
    %p113 = por %p111, %p112
    %p114 = scmp.ne.s32.totalorder %s100, %s101
    %p115 = scmp.eq.s32.totalorder %s15, 15
    %p116 = por %p114, %p115
    %p118 = scmp.ne.s32.totalorder %s101, %s117
    %p119 = scmp.eq.s32.totalorder %s15, 0
    %p120 = por %p118, %p119
    %p121 = scmp.le.s32.totalorder 1, %s9
    %p122 = scmp.lt.s32.totalorder %s9, 17
    %p123 = pnand %p121, %p122
    %p124 = pneg %p123
    // Predicated region
    $region9: #{transformer_forward.9} parent=5 // pred_check
      _
    $region10: #{transformer_forward.9} parent=5 // pred_check_branch
      %126 = sbr.rel (%p123) target = $region12
    $region11: #{transformer_forward.9} parent=5 // pred_region
      %s127 = ssub.s32 %s9, 1
    $region12: #{transformer_forward.9} parent=5 // pred_fallthru
      _
    %p128 = scmp.lt.s32.totalorder %s9, 16
    // Predicated region
    $region13: #{transformer_forward.9} parent=5 // pred_check
      %p129 = pneg %p128
    $region14: #{transformer_forward.9} parent=5 // pred_check_branch
      %131 = sbr.rel (%p129) target = $region16
    $region15: #{transformer_forward.9} parent=5 // pred_region
      // Predicated region
      $region17: #{transformer_forward.9} parent=15 // pred_check
        %p132 = pneg %p29
      $region18: #{transformer_forward.9} parent=15 // pred_check_branch
        %134 = sbr.rel (%p132) target = $region20
      $region19: #{transformer_forward.9} parent=15 // pred_region
        %p135 = scmp.lt.s32.totalorder %s9, 15
        %s136 = scalar_select %p135, %s9, 15
        %s137 = smul.addr %s136, 2
        %s138 = smul.addr %s137, 8
        %s139 = scalar_lea.vmem %s0, %s138
      $region20: #{transformer_forward.9} parent=15 // pred_fallthru
        _
      // Predicated region
      $region21: #{transformer_forward.9} parent=15 // pred_check
        %p140 = pneg %p55
      $region22: #{transformer_forward.9} parent=15 // pred_check_branch
        %142 = sbr.rel (%p140) target = $region24
      $region23: #{transformer_forward.9} parent=15 // pred_region
        %p143 = scmp.lt.s32.totalorder %s9, 15
        %s144 = scalar_select %p143, %s9, 15
        %s145 = smul.addr %s144, 2
        %s146 = smul.addr %s145, 8
        %s147 = scalar_lea.vmem %s1, %s146
      $region24: #{transformer_forward.9} parent=15 // pred_fallthru
        _
      // Predicated region
      $region25: #{transformer_forward.9} parent=15 // pred_check
        %p148 = pneg %p81
      $region26: #{transformer_forward.9} parent=15 // pred_check_branch
        %150 = sbr.rel (%p148) target = $region28
      $region27: #{transformer_forward.9} parent=15 // pred_region
        %p151 = scmp.lt.s32.totalorder %s9, 15
        %s152 = scalar_select %p151, %s9, 15
        %s153 = smul.addr %s152, 2
        %s154 = smul.addr %s153, 8
        %s155 = scalar_lea.vmem %s2, %s154
      $region28: #{transformer_forward.9} parent=15 // pred_fallthru
        _
    $region16: #{transformer_forward.9} parent=5 // pred_fallthru
      _
    %p156 = scmp.le.s32.totalorder 1, %s9
    %p157 = scmp.lt.s32.totalorder %s9, 17
    %p158 = pnand %p156, %p157
    %p159 = pneg %p158
    // Predicated region
    $region29: #{transformer_forward.9} parent=5 // pred_check
      _
    $region30: #{transformer_forward.9} parent=5 // pred_check_branch
      %161 = sbr.rel (%p158) target = $region32
    $region31: #{transformer_forward.9} parent=5 // pred_region
      %s162 = ssub.s32 %s9, 1
      %p163 = scmp.lt.s32.totalorder %s14, 15
      %s164 = scalar_select %p163, %s14, 15
      %s165 = smul.addr %s164, 2
      %s166 = smul.addr %s165, 8
      %s167 = scalar_lea.vmem %s0, %s166
      %p168 = pneg %p35
      %p169 = pneg %p32
      %p170 = scmp.lt.s32.totalorder %s14, 15
      %s171 = scalar_select %p170, %s14, 15
      %s172 = smul.addr %s171, 2
      %s173 = smul.addr %s172, 8
      %s174 = scalar_lea.vmem %s1, %s173
      %p175 = pneg %p61
      %p176 = pneg %p58
      %p177 = scmp.lt.s32.totalorder %s14, 15
      %s178 = scalar_select %p177, %s14, 15
      %s179 = smul.addr %s178, 2
      %s180 = smul.addr %s179, 8
      %s181 = scalar_lea.vmem %s2, %s180
      %p182 = pneg %p87
      %p183 = pneg %p84
      %p184 = pneg %p113
      %p185 = pneg %p110
      %p186 = scmp.lt.s32.totalorder %s14, 15
      %s187 = scalar_select %p186, %s14, 15
      %s188 = smul.addr %s187, 2
      %s189 = smul.addr %s188, 8
      %s190 = scalar_lea.vmem %s3, %s189
      %p191 = scmp.lt.s32.totalorder %s14, 15
      %s192 = scalar_select %p191, %s14, 15
      %s193 = smul.addr %s192, 2
      %s194 = smul.addr %s193, 8
      %s195 = scalar_lea.vmem %s0, %s194
      %p196 = scmp.lt.s32.totalorder %s14, 15
      %s197 = scalar_select %p196, %s14, 15
      %s198 = smul.addr %s197, 2
      %s199 = smul.addr %s198, 8
      %s200 = scalar_lea.vmem %s1, %s199
      %p201 = scmp.lt.s32.totalorder %s14, 15
      %s202 = scalar_select %p201, %s14, 15
      %s203 = smul.addr %s202, 2
      %s204 = smul.addr %s203, 8
      %s205 = scalar_lea.vmem %s2, %s204
      %p206 = scmp.lt.s32.totalorder %s14, 15
      %s207 = scalar_select %p206, %s14, 15
      %s208 = smul.addr %s207, 2
      %s209 = smul.addr %s208, 8
      %s210 = scalar_lea.vmem %s3, %s209
      %v211 = vld [vmem:[%s195] sm:$0xff]
      %v212 = vld [vmem:[%s195 + $0x8] sm:$0xff]
      %v213 = vld [vmem:[%s200] sm:$0xff]
      %v214 = vld [vmem:[%s200 + $0x8] sm:$0xff]
      %v215 = vld [vmem:[%s205] sm:$0xff]
      %v216 = vld [vmem:[%s205 + $0x8] sm:$0xff]
      %vm217 = vcmask 261120
      %v219 = vsel %vm217, %v211, 0
      %v222 = vsel %vm217, %v212, 0
      %v225 = vsel %vm217, %v213, 0
      %v228 = vsel %vm217, %v214, 0
      %230 = vmatprep.subr.mxu0 0.0
      %231 = vmatpush1.xpose.msra.mxu0 %v225
      %232 = vmatprep.subr.mxu0 0.0
      %233 = vmatpush1.xpose.msra.mxu0 %v228
      %234 = vmatprep.subr.mxu0 0.0
      %235 = vmatpush1.xpose.msra.mxu0 0.0
      %236 = vmatprep.subr.mxu0 0.0
      %237 = vmatpush1.xpose.msra.mxu0 0.0
      %238 = vmatprep.subr.mxu0 0.0
      %239 = vmatpush1.xpose.msra.mxu0 0.0
      %240 = vmatprep.subr.mxu0 0.0
      %241 = vmatpush1.xpose.msra.mxu0 0.0
      %242 = vmatprep.subr.mxu0 0.0
      %243 = vmatpush1.xpose.msra.mxu0 0.0
      %244 = vmatprep.subr.mxu0 0.0
      %245 = vmatpush1.xpose.msra.mxu0 0.0
      %246 = vmatprep.subr.mxu0 0.0
      %247 = vmatpush1.xpose.msra.mxu0 0.0
      %248 = vmatprep.subr.mxu0 0.0
      %249 = vmatpush1.xpose.msra.mxu0 0.0
      %250 = vmatprep.subr.mxu0 0.0
      %251 = vmatpush1.xpose.msra.mxu0 0.0
      %252 = vmatprep.subr.mxu0 0.0
      %253 = vmatpush1.xpose.msra.mxu0 0.0
      %254 = vmatprep.subr.mxu0 0.0
      %255 = vmatpush1.xpose.msra.mxu0 0.0
      %256 = vmatprep.subr.mxu0 0.0
      %257 = vmatpush1.xpose.msra.mxu0 0.0
      %258 = vmatprep.subr.mxu0 0.0
      %259 = vmatpush1.xpose.msra.mxu0 0.0
      %260 = vmatprep.subr.mxu0 0.0
      %261 = vmatpush1.xpose.msra.mxu0 0.0
      %262 = vmatprep.subr.mxu0 0.0
      %263 = vmatpush1.xpose.msra.mxu0 0.0
      %264 = vmatprep.subr.mxu0 0.0
      %265 = vmatpush1.xpose.msra.mxu0 0.0
      %266 = vmatprep.subr.mxu0 0.0
      %267 = vmatpush1.xpose.msra.mxu0 0.0
      %268 = vmatprep.subr.mxu0 0.0
      %269 = vmatpush1.xpose.msra.mxu0 0.0
      %270 = vmatprep.subr.mxu0 0.0
      %271 = vmatpush1.xpose.msra.mxu0 0.0
      %272 = vmatprep.subr.mxu0 0.0
      %273 = vmatpush1.xpose.msra.mxu0 0.0
      %274 = vmatprep.subr.mxu0 0.0
      %275 = vmatpush1.xpose.msra.mxu0 0.0
      %276 = vmatprep.subr.mxu0 0.0
      %277 = vmatpush1.xpose.msra.mxu0 0.0
      %278 = vmatprep.subr.mxu0 0.0
      %279 = vmatpush1.xpose.msra.mxu0 0.0
      %280 = vmatprep.subr.mxu0 0.0
      %281 = vmatpush1.xpose.msra.mxu0 0.0
      %282 = vmatprep.subr.mxu0 0.0
      %283 = vmatpush1.xpose.msra.mxu0 0.0
      %284 = vmatprep.subr.mxu0 0.0
      %285 = vmatpush1.xpose.msra.mxu0 0.0
      %286 = vmatprep.subr.mxu0 0.0
      %287 = vmatpush1.xpose.msra.mxu0 0.0
      %288 = vmatprep.subr.mxu0 0.0
      %289 = vmatpush1.xpose.msra.mxu0 0.0
      %290 = vmatprep.subr.mxu0 0.0
      %291 = vmatpush1.xpose.msra.mxu0 0.0
      %292 = vmatprep.subr.mxu0 0.0
      %293 = vmatpush1.xpose.msra.mxu0 0.0
      %294 = vmatprep.mubr.f32.mxu0 0.0
      %295 = vmatmul.mubr.f32.gmra.mrb[0].mxu0 %v219
      %v296 = vpop.f32.mrb[0].mxu0
      %v297 = vadd.f32 0.0, %v296
      %v298 = vpop.f32.mrb[0].mxu0
      %299 = vmatprep.mubr.f32.mxu0 0.0
      %300 = vmatmul.mubr.f32.gmra.mrb[0].mxu0 %v222
      %v301 = vpop.f32.mrb[0].mxu0
      %v302 = vadd.f32 0.0, %v301
      %v303 = vpop.f32.mrb[0].mxu0
      %304 = vdwg.mxu0
      %v305 = vmul.f32 %v297, 0.17677669
      %v306 = vmul.f32 %v302, 0.17677669
      %vm307 = vcmask 130048
      %v308 = vsel %vm307, %v305, -inf
      %309 = vmax.xlane.f32.xlu0 %v308
      %v310 = vpop.xlane.xlu0 %309
      %v311 = vsel %vm307, %v306, -inf
      %312 = vmax.xlane.f32.xlu0 %v311
      %v313 = vpop.xlane.xlu0 %312
      %v314 = vsub.f32 %v305, %v310
      %v315 = vsub.f32 %v306, %v313
      %v316 = vmul.f32 %v314, 1.442695
      %v317 = vpow.pop %v316
      %v318 = vmul.f32 %v315, 1.442695
      %v319 = vpow.pop %v318
      %v320 = vsel %vm307, %v317, 0.0
      %321 = vadd.xlane.f32.xlu0 %v320
      %v322 = vpop.xlane.xlu0 %321
      %v323 = vsel %vm307, %v319, 0.0
      %324 = vadd.xlane.f32.xlu0 %v323
      %v325 = vpop.xlane.xlu0 %324
      %v327 = vsel %vm307, %v317, 0
      %v330 = vsel %vm307, %v319, 0
      %332 = vmatprep.subr.mxu0 0.0
      %333 = vmatpush1.msra.mxu0 %v215
      %334 = vmatprep.subr.mxu0 0.0
      %335 = vmatpush1.msra.mxu0 %v216
      %336 = vmatprep.subr.mxu0 0.0
      %337 = vmatpush1.msra.mxu0 0.0
      %338 = vmatprep.subr.mxu0 0.0
      %339 = vmatpush1.msra.mxu0 0.0
      %340 = vmatprep.subr.mxu0 0.0
      %341 = vmatpush1.msra.mxu0 0.0
      %342 = vmatprep.subr.mxu0 0.0
      %343 = vmatpush1.msra.mxu0 0.0
      %344 = vmatprep.subr.mxu0 0.0
      %345 = vmatpush1.msra.mxu0 0.0
      %346 = vmatprep.subr.mxu0 0.0
      %347 = vmatpush1.msra.mxu0 0.0
      %348 = vmatprep.subr.mxu0 0.0
      %349 = vmatpush1.msra.mxu0 0.0
      %350 = vmatprep.subr.mxu0 0.0
      %351 = vmatpush1.msra.mxu0 0.0
      %352 = vmatprep.subr.mxu0 0.0
      %353 = vmatpush1.msra.mxu0 0.0
      %354 = vmatprep.subr.mxu0 0.0
      %355 = vmatpush1.msra.mxu0 0.0
      %356 = vmatprep.subr.mxu0 0.0
      %357 = vmatpush1.msra.mxu0 0.0
      %358 = vmatprep.subr.mxu0 0.0
      %359 = vmatpush1.msra.mxu0 0.0
      %360 = vmatprep.subr.mxu0 0.0
      %361 = vmatpush1.msra.mxu0 0.0
      %362 = vmatprep.subr.mxu0 0.0
      %363 = vmatpush1.msra.mxu0 0.0
      %364 = vmatprep.subr.mxu0 0.0
      %365 = vmatpush1.msra.mxu0 0.0
      %366 = vmatprep.subr.mxu0 0.0
      %367 = vmatpush1.msra.mxu0 0.0
      %368 = vmatprep.subr.mxu0 0.0
      %369 = vmatpush1.msra.mxu0 0.0
      %370 = vmatprep.subr.mxu0 0.0
      %371 = vmatpush1.msra.mxu0 0.0
      %372 = vmatprep.subr.mxu0 0.0
      %373 = vmatpush1.msra.mxu0 0.0
      %374 = vmatprep.subr.mxu0 0.0
      %375 = vmatpush1.msra.mxu0 0.0
      %376 = vmatprep.subr.mxu0 0.0
      %377 = vmatpush1.msra.mxu0 0.0
      %378 = vmatprep.subr.mxu0 0.0
      %379 = vmatpush1.msra.mxu0 0.0
      %380 = vmatprep.subr.mxu0 0.0
      %381 = vmatpush1.msra.mxu0 0.0
      %382 = vmatprep.subr.mxu0 0.0
      %383 = vmatpush1.msra.mxu0 0.0
      %384 = vmatprep.subr.mxu0 0.0
      %385 = vmatpush1.msra.mxu0 0.0
      %386 = vmatprep.subr.mxu0 0.0
      %387 = vmatpush1.msra.mxu0 0.0
      %388 = vmatprep.subr.mxu0 0.0
      %389 = vmatpush1.msra.mxu0 0.0
      %390 = vmatprep.subr.mxu0 0.0
      %391 = vmatpush1.msra.mxu0 0.0
      %392 = vmatprep.subr.mxu0 0.0
      %393 = vmatpush1.msra.mxu0 0.0
      %394 = vmatprep.subr.mxu0 0.0
      %395 = vmatpush1.msra.mxu0 0.0
      %396 = vmatprep.mubr.f32.mxu0 0.0
      %397 = vmatmul.mubr.f32.gmra.mrb[0].mxu0 %v327
      %v398 = vpop.f32.mrb[0].mxu0
      %v399 = vadd.f32 0.0, %v398
      %v400 = vpop.f32.mrb[0].mxu0
      %401 = vmatprep.mubr.f32.mxu0 0.0
      %402 = vmatmul.mubr.f32.gmra.mrb[0].mxu0 %v330
      %v403 = vpop.f32.mrb[0].mxu0
      %v404 = vadd.f32 0.0, %v403
      %v405 = vpop.f32.mrb[0].mxu0
      %406 = vdwg.mxu0
      %v407 = vrcp.pop %v322
      %v408 = vrcp.pop %v325
      %v409 = vmul.f32 %v399, %v407
      %v410 = vmul.f32 %v404, %v408
      %411 = vst.msk [vmem:[%s210] sm:$0xff] %vm217, %v409
      %412 = vst.msk [vmem:[%s210 + $0x8] sm:$0xff] %vm217, %v410
      %p413 = scmp.lt.s32.totalorder %s14, 15
      %s414 = scalar_select %p413, %s14, 15
      %s415 = smul.addr %s414, 2
      %s416 = smul.addr %s415, 8
      %s417 = scalar_lea.vmem %s3, %s416
      // Predicated region
      $region33: #{transformer_forward.9} parent=31 // pred_check
        %p418 = pneg %p110
      $region34: #{transformer_forward.9} parent=31 // pred_check_branch
        %420 = sbr.rel (%p418) target = $region36
      $region35: #{transformer_forward.9} parent=31 // pred_region
        _
      $region36: #{transformer_forward.9} parent=31 // pred_fallthru
        _
    $region32: #{transformer_forward.9} parent=5 // pred_fallthru
      _
    %p421 = scmp.le.s32.totalorder 2, %s9
    // Predicated region
    $region37: #{transformer_forward.9} parent=5 // pred_check
      %p422 = pneg %p421
    $region38: #{transformer_forward.9} parent=5 // pred_check_branch
      %424 = sbr.rel (%p422) target = $region40
    $region39: #{transformer_forward.9} parent=5 // pred_region
      %s425 = ssub.s32 %s9, 2
      // Predicated region
      $region41: #{transformer_forward.9} parent=39 // pred_check
        %p426 = pneg %p116
      $region42: #{transformer_forward.9} parent=39 // pred_check_branch
        %428 = sbr.rel (%p426) target = $region44
      $region43: #{transformer_forward.9} parent=39 // pred_region
        %p429 = scmp.lt.s32.totalorder %s15, 15
        %s430 = scalar_select %p429, %s15, 15
        %s431 = smul.addr %s430, 2
        %s432 = smul.addr %s431, 8
        %s433 = scalar_lea.vmem %s3, %s432
      $region44: #{transformer_forward.9} parent=39 // pred_fallthru
        _
    $region40: #{transformer_forward.9} parent=5 // pred_fallthru
      _
  $region6: #{transformer_forward.9} parent=0 // loop_footer
    %s13 = sadd.s32 1, %s9
  $region7: #{transformer_forward.9} parent=0 // loop_footer_branch
    %8 = sbr.rel target = $region3
  $region8: #{transformer_forward.9} parent=0 // loop_exit
    _

// kernel: transformer_forward.11
$region0: #{transformer_forward.11}
  #allocation0 [shape = 'u32[]', space=smem, size = 0x4, offset = 0x4, fixed_abs, tag = 'smem constant byte address 0x4 - core index']
  #allocation1 [shape = 'u32[144,128]{1,0:T(1,128)}', space=vmem, size = 0x12000, scoped, tag = 'internal scratch']
  %s0 = inlined_call_operand.vmem [shape: f32[32,256], index: 0, kind: input, shape index: {}]
  %s1 = inlined_call_operand.vmem [shape: f32[1,256], index: 1, kind: input, shape index: {}]
  %s2 = inlined_call_operand.vmem [shape: f32[1,256], index: 2, kind: input, shape index: {}]
  %s3 = inlined_call_operand.vmem [shape: f32[32,256], index: 3, kind: output, shape index: {}]
  %s4 = sld [smem:[#allocation0]]
  $region22: #{transformer_forward.11} parent=0
    _
  %s6 = ssub.s32 1, %s4
  %s7 = scalar_select 0, %s6, %s4
  // Predicated region
  $region2: #{transformer_forward.11} parent=0 // pred_check
    _
  $region3: #{transformer_forward.11} parent=0 // pred_check_branch
    %9 = sbr.rel (0) target = $region5
  $region4: #{transformer_forward.11} parent=0 // pred_region
    _
  $region5: #{transformer_forward.11} parent=0 // pred_fallthru
    _
  // Predicated region
  $region6: #{transformer_forward.11} parent=0 // pred_check
    _
  $region7: #{transformer_forward.11} parent=0 // pred_check_branch
    %11 = sbr.rel (0) target = $region9
  $region8: #{transformer_forward.11} parent=0 // pred_region
    _
  $region9: #{transformer_forward.11} parent=0 // pred_fallthru
    _
  // Predicated region
  $region10: #{transformer_forward.11} parent=0 // pred_check
    _
  $region11: #{transformer_forward.11} parent=0 // pred_check_branch
    %13 = sbr.rel (0) target = $region13
  $region12: #{transformer_forward.11} parent=0 // pred_region
    _
  $region13: #{transformer_forward.11} parent=0 // pred_fallthru
    _
  %v14 = vld [vmem:[%s0] sm:$0xff]
  %v15 = vld [vmem:[%s0 + $0x8] sm:$0xff]
  %v16 = vld [vmem:[%s0 + $0x10] sm:$0xff]
  %v17 = vld [vmem:[%s0 + $0x18] sm:$0xff]
  %v18 = vld [vmem:[%s0 + $0x20] sm:$0xff]
  %v19 = vld [vmem:[%s0 + $0x28] sm:$0xff]
  %v20 = vld [vmem:[%s0 + $0x30] sm:$0xff]
  %v21 = vld [vmem:[%s0 + $0x38] sm:$0xff]
  %v22 = vadd.f32 %v14, %v15
  %23 = vadd.xlane.f32.xlu0 %v22
  %v24 = vpop.xlane.xlu0 %23
  %v25 = vadd.f32 %v16, %v17
  %26 = vadd.xlane.f32.xlu0 %v25
  %v27 = vpop.xlane.xlu0 %26
  %v28 = vadd.f32 %v18, %v19
  %29 = vadd.xlane.f32.xlu0 %v28
  %v30 = vpop.xlane.xlu0 %29
  %v31 = vadd.f32 %v20, %v21
  %32 = vadd.xlane.f32.xlu0 %v31
  %v33 = vpop.xlane.xlu0 %32
  %v34 = vrcp.pop 256.0
  %v35 = vmul.f32 %v24, %v34
  %v36 = vmul.f32 %v27, %v34
  %v37 = vmul.f32 %v30, %v34
  %v38 = vmul.f32 %v33, %v34
  %v39 = vsub.f32 %v14, %v35
  %v40 = vsub.f32 %v15, %v35
  %v41 = vsub.f32 %v16, %v36
  %v42 = vsub.f32 %v17, %v36
  %v43 = vsub.f32 %v18, %v37
  %v44 = vsub.f32 %v19, %v37
  %v45 = vsub.f32 %v20, %v38
  %v46 = vsub.f32 %v21, %v38
  %v47 = vmul.f32 %v39, %v39
  %v48 = vmul.f32 %v40, %v40
  %v49 = vmul.f32 %v41, %v41
  %v50 = vmul.f32 %v42, %v42
  %v51 = vmul.f32 %v43, %v43
  %v52 = vmul.f32 %v44, %v44
  %v53 = vmul.f32 %v45, %v45
  %v54 = vmul.f32 %v46, %v46
  %v55 = vadd.f32 %v47, %v48
  %56 = vadd.xlane.f32.xlu0 %v55
  %v57 = vpop.xlane.xlu0 %56
  %v58 = vadd.f32 %v49, %v50
  %59 = vadd.xlane.f32.xlu0 %v58
  %v60 = vpop.xlane.xlu0 %59
  %v61 = vadd.f32 %v51, %v52
  %62 = vadd.xlane.f32.xlu0 %v61
  %v63 = vpop.xlane.xlu0 %62
  %v64 = vadd.f32 %v53, %v54
  %65 = vadd.xlane.f32.xlu0 %v64
  %v66 = vpop.xlane.xlu0 %65
  %v67 = vmul.f32 %v57, %v34
  %v68 = vmul.f32 %v60, %v34
  %v69 = vmul.f32 %v63, %v34
  %v70 = vmul.f32 %v66, %v34
  %v71 = vadd.f32 %v67, 1e-05
  %v72 = vadd.f32 %v68, 1e-05
  %v73 = vadd.f32 %v69, 1e-05
  %v74 = vadd.f32 %v70, 1e-05
  %v75 = vrsqrt.pop %v71
  %v76 = vrsqrt.pop %v72
  %v77 = vrsqrt.pop %v73
  %v78 = vrsqrt.pop %v74
  %v79 = vmul.f32 %v39, %v75
  %v80 = vmul.f32 %v40, %v75
  %v81 = vmul.f32 %v41, %v76
  %v82 = vmul.f32 %v42, %v76
  %v83 = vmul.f32 %v43, %v77
  %v84 = vmul.f32 %v44, %v77
  %v85 = vmul.f32 %v45, %v78
  %v86 = vmul.f32 %v46, %v78
  %v87 = vld [vmem:[%s1] sm:$0x3]
  %v89 = vlaneseq
  %v90 = vshrl.u32 %v89, 7
  %v91 = vsub.s32 0, %v90
  %v92 = vrot.slane %v87, %v91
  %v93 = vlaneseq
  %v94 = vshrl.u32 %v93, 7
  %v95 = vsub.s32 1, %v94
  %v96 = vrot.slane %v87, %v95
  %v99 = vmul.f32 %v79, %v92
  %v100 = vmul.f32 %v80, %v96
  %v101 = vmul.f32 %v81, %v92
  %v102 = vmul.f32 %v82, %v96
  %v103 = vmul.f32 %v83, %v92
  %v104 = vmul.f32 %v84, %v96
  %v105 = vmul.f32 %v85, %v92
  %v106 = vmul.f32 %v86, %v96
  %v107 = vld [vmem:[%s2] sm:$0x3]
  %v109 = vlaneseq
  %v110 = vshrl.u32 %v109, 7
  %v111 = vsub.s32 0, %v110
  %v112 = vrot.slane %v107, %v111
  %v113 = vlaneseq
  %v114 = vshrl.u32 %v113, 7
  %v115 = vsub.s32 1, %v114
  %v116 = vrot.slane %v107, %v115
  %v119 = vadd.f32 %v99, %v112
  %v120 = vadd.f32 %v100, %v116
  %v121 = vadd.f32 %v101, %v112
  %v122 = vadd.f32 %v102, %v116
  %v123 = vadd.f32 %v103, %v112
  %v124 = vadd.f32 %v104, %v116
  %v125 = vadd.f32 %v105, %v112
  %v126 = vadd.f32 %v106, %v116
  %127 = vst [vmem:[%s3] sm:$0xff] %v119
  %128 = vst [vmem:[%s3 + $0x8] sm:$0xff] %v120
  %129 = vst [vmem:[%s3 + $0x10] sm:$0xff] %v121
  %130 = vst [vmem:[%s3 + $0x18] sm:$0xff] %v122
  %131 = vst [vmem:[%s3 + $0x20] sm:$0xff] %v123
  %132 = vst [vmem:[%s3 + $0x28] sm:$0xff] %v124
  %133 = vst [vmem:[%s3 + $0x30] sm:$0xff] %v125
  %134 = vst [vmem:[%s3 + $0x38] sm:$0xff] %v126
  // Predicated region
  $region14: #{transformer_forward.11} parent=0 // pred_check
    _
  $region15: #{transformer_forward.11} parent=0 // pred_check_branch
    %136 = sbr.rel (0) target = $region17
  $region16: #{transformer_forward.11} parent=0 // pred_region
    _
  $region17: #{transformer_forward.11} parent=0 // pred_fallthru
    _
  // Predicated region
  $region18: #{transformer_forward.11} parent=0 // pred_check
    _
  $region19: #{transformer_forward.11} parent=0 // pred_check_branch
    %138 = sbr.rel (0) target = $region21
  $region20: #{transformer_forward.11} parent=0 // pred_region
    _
  $region21: #{transformer_forward.11} parent=0 // pred_fallthru
    _

// kernel: transformer_forward.10
$region0: #{transformer_forward.10}
  #allocation0 [shape = 'u32[]', space=smem, size = 0x4, offset = 0x4, fixed_abs, tag = 'smem constant byte address 0x4 - core index']
  #allocation1 [shape = 'u32[144,128]{1,0:T(1,128)}', space=vmem, size = 0x12000, scoped, tag = 'internal scratch']
  #allocation2 [shape = 'f32[32,256]{1,0:T(8,128)}', space=vmem, size = 0x8000, scoped, tag = 'scratch operand']
  %s0 = inlined_call_operand.vmem [shape: f32[32,256], index: 0, kind: input, shape index: {}]
  %s1 = inlined_call_operand.vmem [shape: f32[256,256], index: 1, kind: input, shape index: {}]
  %s2 = inlined_call_operand.vmem [shape: f32[1,256], index: 2, kind: input, shape index: {}]
  %s3 = inlined_call_operand.vmem [shape: f32[32,256], index: 3, kind: input, shape index: {}]
  %s4 = inlined_call_operand.vmem [shape: f32[32,256], index: 4, kind: output, shape index: {}]
  %s5 = sld [smem:[#allocation0]]
  $region34: #{transformer_forward.10} parent=0
    _
  %s7 = ssub.s32 1, %s5
  %s8 = scalar_select 0, %s7, %s5
  // Predicated region
  $region2: #{transformer_forward.10} parent=0 // pred_check
    _
  $region3: #{transformer_forward.10} parent=0 // pred_check_branch
    %10 = sbr.rel (0) target = $region5
  $region4: #{transformer_forward.10} parent=0 // pred_region
    _
  $region5: #{transformer_forward.10} parent=0 // pred_fallthru
    _
  // Predicated region
  $region6: #{transformer_forward.10} parent=0 // pred_check
    _
  $region7: #{transformer_forward.10} parent=0 // pred_check_branch
    %12 = sbr.rel (0) target = $region9
  $region8: #{transformer_forward.10} parent=0 // pred_region
    _
  $region9: #{transformer_forward.10} parent=0 // pred_fallthru
    _
  // Predicated region
  $region10: #{transformer_forward.10} parent=0 // pred_check
    _
  $region11: #{transformer_forward.10} parent=0 // pred_check_branch
    %14 = sbr.rel (0) target = $region13
  $region12: #{transformer_forward.10} parent=0 // pred_region
    _
  $region13: #{transformer_forward.10} parent=0 // pred_fallthru
    _
  // Predicated region
  $region14: #{transformer_forward.10} parent=0 // pred_check
    _
  $region15: #{transformer_forward.10} parent=0 // pred_check_branch
    %16 = sbr.rel (0) target = $region17
  $region16: #{transformer_forward.10} parent=0 // pred_region
    _
  $region17: #{transformer_forward.10} parent=0 // pred_fallthru
    _
  %p17 = scmp.eq.s32.totalorder 0, 0
  // Predicated region
  $region18: #{transformer_forward.10} parent=0 // pred_check
    %p18 = pneg %p17
  $region19: #{transformer_forward.10} parent=0 // pred_check_branch
    %20 = sbr.rel (%p18) target = $region21
  $region20: #{transformer_forward.10} parent=0 // pred_region
    %21 = vst [vmem:[#allocation2] sm:$0xff] 0.0
    %22 = vst [vmem:[#allocation2 + $0x8] sm:$0xff] 0.0
    %23 = vst [vmem:[#allocation2 + $0x10] sm:$0xff] 0.0
    %24 = vst [vmem:[#allocation2 + $0x18] sm:$0xff] 0.0
    %25 = vst [vmem:[#allocation2 + $0x20] sm:$0xff] 0.0
    %26 = vst [vmem:[#allocation2 + $0x28] sm:$0xff] 0.0
    %27 = vst [vmem:[#allocation2 + $0x30] sm:$0xff] 0.0
    %28 = vst [vmem:[#allocation2 + $0x38] sm:$0xff] 0.0
  $region21: #{transformer_forward.10} parent=0 // pred_fallthru
    _
  %v29 = vld [vmem:[#allocation2] sm:$0xff]
  %v30 = vld [vmem:[#allocation2 + $0x8] sm:$0xff]
  %v31 = vld [vmem:[#allocation2 + $0x10] sm:$0xff]
  %v32 = vld [vmem:[#allocation2 + $0x18] sm:$0xff]
  %v33 = vld [vmem:[#allocation2 + $0x20] sm:$0xff]
  %v34 = vld [vmem:[#allocation2 + $0x28] sm:$0xff]
  %v35 = vld [vmem:[#allocation2 + $0x30] sm:$0xff]
  %v36 = vld [vmem:[#allocation2 + $0x38] sm:$0xff]
  %v37 = vld [vmem:[%s0] sm:$0xff]
  %v38 = vld [vmem:[%s0 + $0x8] sm:$0xff]
  %v39 = vld [vmem:[%s0 + $0x10] sm:$0xff]
  %v40 = vld [vmem:[%s0 + $0x18] sm:$0xff]
  %v41 = vld [vmem:[%s0 + $0x20] sm:$0xff]
  %v42 = vld [vmem:[%s0 + $0x28] sm:$0xff]
  %v43 = vld [vmem:[%s0 + $0x30] sm:$0xff]
  %v44 = vld [vmem:[%s0 + $0x38] sm:$0xff]
  %v45 = vld [vmem:[%s1] sm:$0xff]
  %v46 = vld [vmem:[%s1 + $0x8] sm:$0xff]
  %v47 = vld [vmem:[%s1 + $0x10] sm:$0xff]
  %v48 = vld [vmem:[%s1 + $0x18] sm:$0xff]
  %v49 = vld [vmem:[%s1 + $0x20] sm:$0xff]
  %v50 = vld [vmem:[%s1 + $0x28] sm:$0xff]
  %v51 = vld [vmem:[%s1 + $0x30] sm:$0xff]
  %v52 = vld [vmem:[%s1 + $0x38] sm:$0xff]
  %v53 = vld [vmem:[%s1 + $0x40] sm:$0xff]
  %v54 = vld [vmem:[%s1 + $0x48] sm:$0xff]
  %v55 = vld [vmem:[%s1 + $0x50] sm:$0xff]
  %v56 = vld [vmem:[%s1 + $0x58] sm:$0xff]
  %v57 = vld [vmem:[%s1 + $0x60] sm:$0xff]
  %v58 = vld [vmem:[%s1 + $0x68] sm:$0xff]
  %v59 = vld [vmem:[%s1 + $0x70] sm:$0xff]
  %v60 = vld [vmem:[%s1 + $0x78] sm:$0xff]
  %v61 = vld [vmem:[%s1 + $0x80] sm:$0xff]
  %v62 = vld [vmem:[%s1 + $0x88] sm:$0xff]
  %v63 = vld [vmem:[%s1 + $0x90] sm:$0xff]
  %v64 = vld [vmem:[%s1 + $0x98] sm:$0xff]
  %v65 = vld [vmem:[%s1 + $0xa0] sm:$0xff]
  %v66 = vld [vmem:[%s1 + $0xa8] sm:$0xff]
  %v67 = vld [vmem:[%s1 + $0xb0] sm:$0xff]
  %v68 = vld [vmem:[%s1 + $0xb8] sm:$0xff]
  %v69 = vld [vmem:[%s1 + $0xc0] sm:$0xff]
  %v70 = vld [vmem:[%s1 + $0xc8] sm:$0xff]
  %v71 = vld [vmem:[%s1 + $0xd0] sm:$0xff]
  %v72 = vld [vmem:[%s1 + $0xd8] sm:$0xff]
  %v73 = vld [vmem:[%s1 + $0xe0] sm:$0xff]
  %v74 = vld [vmem:[%s1 + $0xe8] sm:$0xff]
  %v75 = vld [vmem:[%s1 + $0xf0] sm:$0xff]
  %v76 = vld [vmem:[%s1 + $0xf8] sm:$0xff]
  %v77 = vld [vmem:[%s1 + $0x100] sm:$0xff]
  %v78 = vld [vmem:[%s1 + $0x108] sm:$0xff]
  %v79 = vld [vmem:[%s1 + $0x110] sm:$0xff]
  %v80 = vld [vmem:[%s1 + $0x118] sm:$0xff]
  %v81 = vld [vmem:[%s1 + $0x120] sm:$0xff]
  %v82 = vld [vmem:[%s1 + $0x128] sm:$0xff]
  %v83 = vld [vmem:[%s1 + $0x130] sm:$0xff]
  %v84 = vld [vmem:[%s1 + $0x138] sm:$0xff]
  %v85 = vld [vmem:[%s1 + $0x140] sm:$0xff]
  %v86 = vld [vmem:[%s1 + $0x148] sm:$0xff]
  %v87 = vld [vmem:[%s1 + $0x150] sm:$0xff]
  %v88 = vld [vmem:[%s1 + $0x158] sm:$0xff]
  %v89 = vld [vmem:[%s1 + $0x160] sm:$0xff]
  %v90 = vld [vmem:[%s1 + $0x168] sm:$0xff]
  %v91 = vld [vmem:[%s1 + $0x170] sm:$0xff]
  %v92 = vld [vmem:[%s1 + $0x178] sm:$0xff]
  %v93 = vld [vmem:[%s1 + $0x180] sm:$0xff]
  %v94 = vld [vmem:[%s1 + $0x188] sm:$0xff]
  %v95 = vld [vmem:[%s1 + $0x190] sm:$0xff]
  %v96 = vld [vmem:[%s1 + $0x198] sm:$0xff]
  %v97 = vld [vmem:[%s1 + $0x1a0] sm:$0xff]
  %v98 = vld [vmem:[%s1 + $0x1a8] sm:$0xff]
  %v99 = vld [vmem:[%s1 + $0x1b0] sm:$0xff]
  %v100 = vld [vmem:[%s1 + $0x1b8] sm:$0xff]
  %v101 = vld [vmem:[%s1 + $0x1c0] sm:$0xff]
  %v102 = vld [vmem:[%s1 + $0x1c8] sm:$0xff]
  %v103 = vld [vmem:[%s1 + $0x1d0] sm:$0xff]
  %v104 = vld [vmem:[%s1 + $0x1d8] sm:$0xff]
  %v105 = vld [vmem:[%s1 + $0x1e0] sm:$0xff]
  %v106 = vld [vmem:[%s1 + $0x1e8] sm:$0xff]
  %v107 = vld [vmem:[%s1 + $0x1f0] sm:$0xff]
  %v108 = vld [vmem:[%s1 + $0x1f8] sm:$0xff]
  %109 = vmatprep.subr.mxu0 %v46
  %110 = vmatpush1.msra.mxu0 %v45
  %111 = vmatprep.subr.mxu0 %v48
  %112 = vmatpush1.msra.mxu0 %v47
  %113 = vmatprep.subr.mxu0 %v50
  %114 = vmatpush1.msra.mxu0 %v49
  %115 = vmatprep.subr.mxu0 %v52
  %116 = vmatpush1.msra.mxu0 %v51
  %117 = vmatprep.subr.mxu0 %v54
  %118 = vmatpush1.msra.mxu0 %v53
  %119 = vmatprep.subr.mxu0 %v56
  %120 = vmatpush1.msra.mxu0 %v55
  %121 = vmatprep.subr.mxu0 %v58
  %122 = vmatpush1.msra.mxu0 %v57
  %123 = vmatprep.subr.mxu0 %v60
  %124 = vmatpush1.msra.mxu0 %v59
  %125 = vmatprep.subr.mxu0 %v62
  %126 = vmatpush1.msra.mxu0 %v61
  %127 = vmatprep.subr.mxu0 %v64
  %128 = vmatpush1.msra.mxu0 %v63
  %129 = vmatprep.subr.mxu0 %v66
  %130 = vmatpush1.msra.mxu0 %v65
  %131 = vmatprep.subr.mxu0 %v68
  %132 = vmatpush1.msra.mxu0 %v67
  %133 = vmatprep.subr.mxu0 %v70
  %134 = vmatpush1.msra.mxu0 %v69
  %135 = vmatprep.subr.mxu0 %v72
  %136 = vmatpush1.msra.mxu0 %v71
  %137 = vmatprep.subr.mxu0 %v74
  %138 = vmatpush1.msra.mxu0 %v73
  %139 = vmatprep.subr.mxu0 %v76
  %140 = vmatpush1.msra.mxu0 %v75
  %141 = vmatprep.subr.mxu0 %v78
  %142 = vmatpush1.msra.mxu0 %v77
  %143 = vmatprep.subr.mxu0 %v80
  %144 = vmatpush1.msra.mxu0 %v79
  %145 = vmatprep.subr.mxu0 %v82
  %146 = vmatpush1.msra.mxu0 %v81
  %147 = vmatprep.subr.mxu0 %v84
  %148 = vmatpush1.msra.mxu0 %v83
  %149 = vmatprep.subr.mxu0 %v86
  %150 = vmatpush1.msra.mxu0 %v85
  %151 = vmatprep.subr.mxu0 %v88
  %152 = vmatpush1.msra.mxu0 %v87
  %153 = vmatprep.subr.mxu0 %v90
  %154 = vmatpush1.msra.mxu0 %v89
  %155 = vmatprep.subr.mxu0 %v92
  %156 = vmatpush1.msra.mxu0 %v91
  %157 = vmatprep.subr.mxu0 %v94
  %158 = vmatpush1.msra.mxu0 %v93
  %159 = vmatprep.subr.mxu0 %v96
  %160 = vmatpush1.msra.mxu0 %v95
  %161 = vmatprep.subr.mxu0 %v98
  %162 = vmatpush1.msra.mxu0 %v97
  %163 = vmatprep.subr.mxu0 %v100
  %164 = vmatpush1.msra.mxu0 %v99
  %165 = vmatprep.subr.mxu0 %v102
  %166 = vmatpush1.msra.mxu0 %v101
  %167 = vmatprep.subr.mxu0 %v104
  %168 = vmatpush1.msra.mxu0 %v103
  %169 = vmatprep.subr.mxu0 %v106
  %170 = vmatpush1.msra.mxu0 %v105
  %171 = vmatprep.subr.mxu0 %v108
  %172 = vmatpush1.msra.mxu0 %v107
  %173 = vmatprep.mubr.f32.mxu0 %v38
  %174 = vmatmul.mubr.f32.gmra.mrb[0].mxu0 %v37
  %v175 = vpop.f32.mrb[0].mxu0
  %v176 = vadd.f32 0.0, %v175
  %v177 = vpop.f32.mrb[0].mxu0
  %v178 = vadd.f32 0.0, %v177
  %179 = vmatprep.mubr.f32.mxu0 %v40
  %180 = vmatmul.mubr.f32.gmra.mrb[0].mxu0 %v39
  %v181 = vpop.f32.mrb[0].mxu0
  %v182 = vadd.f32 0.0, %v181
  %v183 = vpop.f32.mrb[0].mxu0
  %v184 = vadd.f32 0.0, %v183
  %185 = vmatprep.mubr.f32.mxu0 %v42
  %186 = vmatmul.mubr.f32.gmra.mrb[0].mxu0 %v41
  %v187 = vpop.f32.mrb[0].mxu0
  %v188 = vadd.f32 0.0, %v187
  %v189 = vpop.f32.mrb[0].mxu0
  %v190 = vadd.f32 0.0, %v189
  %191 = vmatprep.mubr.f32.mxu0 %v44
  %192 = vmatmul.mubr.f32.gmra.mrb[0].mxu0 %v43
  %v193 = vpop.f32.mrb[0].mxu0
  %v194 = vadd.f32 0.0, %v193
  %v195 = vpop.f32.mrb[0].mxu0
  %v196 = vadd.f32 0.0, %v195
  %197 = vdwg.mxu0
  %v198 = vadd.f32 %v29, %v176
  %v199 = vadd.f32 %v30, %v178
  %v200 = vadd.f32 %v31, %v182
  %v201 = vadd.f32 %v32, %v184
  %v202 = vadd.f32 %v33, %v188
  %v203 = vadd.f32 %v34, %v190
  %v204 = vadd.f32 %v35, %v194
  %v205 = vadd.f32 %v36, %v196
  %206 = vst [vmem:[#allocation2] sm:$0xff] %v198
  %207 = vst [vmem:[#allocation2 + $0x8] sm:$0xff] %v199
  %208 = vst [vmem:[#allocation2 + $0x10] sm:$0xff] %v200
  %209 = vst [vmem:[#allocation2 + $0x18] sm:$0xff] %v201
  %210 = vst [vmem:[#allocation2 + $0x20] sm:$0xff] %v202
  %211 = vst [vmem:[#allocation2 + $0x28] sm:$0xff] %v203
  %212 = vst [vmem:[#allocation2 + $0x30] sm:$0xff] %v204
  %213 = vst [vmem:[#allocation2 + $0x38] sm:$0xff] %v205
  // Predicated region
  $region22: #{transformer_forward.10} parent=0 // pred_check
    %p214 = pneg %p17
  $region23: #{transformer_forward.10} parent=0 // pred_check_branch
    %216 = sbr.rel (%p214) target = $region25
  $region24: #{transformer_forward.10} parent=0 // pred_region
    %v217 = vld [vmem:[#allocation2] sm:$0xff]
    %v218 = vld [vmem:[#allocation2 + $0x8] sm:$0xff]
    %v219 = vld [vmem:[#allocation2 + $0x10] sm:$0xff]
    %v220 = vld [vmem:[#allocation2 + $0x18] sm:$0xff]
    %v221 = vld [vmem:[#allocation2 + $0x20] sm:$0xff]
    %v222 = vld [vmem:[#allocation2 + $0x28] sm:$0xff]
    %v223 = vld [vmem:[#allocation2 + $0x30] sm:$0xff]
    %v224 = vld [vmem:[#allocation2 + $0x38] sm:$0xff]
    %v225 = vld [vmem:[%s2] sm:$0x3]
    %v227 = vlaneseq
    %v228 = vshrl.u32 %v227, 7
    %v229 = vsub.s32 0, %v228
    %v230 = vrot.slane %v225, %v229
    %v231 = vlaneseq
    %v232 = vshrl.u32 %v231, 7
    %v233 = vsub.s32 1, %v232
    %v234 = vrot.slane %v225, %v233
    %v237 = vadd.f32 %v217, %v230
    %v238 = vadd.f32 %v218, %v234
    %v239 = vadd.f32 %v219, %v230
    %v240 = vadd.f32 %v220, %v234
    %v241 = vadd.f32 %v221, %v230
    %v242 = vadd.f32 %v222, %v234
    %v243 = vadd.f32 %v223, %v230
    %v244 = vadd.f32 %v224, %v234
    %v245 = vld [vmem:[%s3] sm:$0xff]
    %v246 = vld [vmem:[%s3 + $0x8] sm:$0xff]
    %v247 = vld [vmem:[%s3 + $0x10] sm:$0xff]
    %v248 = vld [vmem:[%s3 + $0x18] sm:$0xff]
    %v249 = vld [vmem:[%s3 + $0x20] sm:$0xff]
    %v250 = vld [vmem:[%s3 + $0x28] sm:$0xff]
    %v251 = vld [vmem:[%s3 + $0x30] sm:$0xff]
    %v252 = vld [vmem:[%s3 + $0x38] sm:$0xff]
    %v253 = vadd.f32 %v237, %v245
    %v254 = vadd.f32 %v238, %v246
    %v255 = vadd.f32 %v239, %v247
    %v256 = vadd.f32 %v240, %v248
    %v257 = vadd.f32 %v241, %v249
    %v258 = vadd.f32 %v242, %v250
    %v259 = vadd.f32 %v243, %v251
    %v260 = vadd.f32 %v244, %v252
    %261 = vst [vmem:[%s4] sm:$0xff] %v253
    %262 = vst [vmem:[%s4 + $0x8] sm:$0xff] %v254
    %263 = vst [vmem:[%s4 + $0x10] sm:$0xff] %v255
    %264 = vst [vmem:[%s4 + $0x18] sm:$0xff] %v256
    %265 = vst [vmem:[%s4 + $0x20] sm:$0xff] %v257
    %266 = vst [vmem:[%s4 + $0x28] sm:$0xff] %v258
    %267 = vst [vmem:[%s4 + $0x30] sm:$0xff] %v259
    %268 = vst [vmem:[%s4 + $0x38] sm:$0xff] %v260
  $region25: #{transformer_forward.10} parent=0 // pred_fallthru
    _
  // Predicated region
  $region26: #{transformer_forward.10} parent=0 // pred_check
    _
  $region27: #{transformer_forward.10} parent=0 // pred_check_branch
    %270 = sbr.rel (0) target = $region29
  $region28: #{transformer_forward.10} parent=0 // pred_region
    _
  $region29: #{transformer_forward.10} parent=0 // pred_fallthru
    _
  // Predicated region
  $region30: #{transformer_forward.10} parent=0 // pred_check
    _
  $region31: #{transformer_forward.10} parent=0 // pred_check_branch
    %272 = sbr.rel (0) target = $region33
  $region32: #{transformer_forward.10} parent=0 // pred_region
    _
  $region33: #{transformer_forward.10} parent=0 // pred_fallthru
    _

// kernel: transformer_forward.12
$region0: #{transformer_forward.12}
  #allocation0 [shape = 'u32[]', space=smem, size = 0x4, offset = 0x4, fixed_abs, tag = 'smem constant byte address 0x4 - core index']
  #allocation1 [shape = 'u32[144,128]{1,0:T(1,128)}', space=vmem, size = 0x12000, scoped, tag = 'internal scratch']
  #allocation2 [shape = 'f32[32,256]{1,0:T(8,128)}', space=vmem, size = 0x8000, scoped, tag = 'scratch operand']
  %s0 = inlined_call_operand.vmem [shape: f32[32,256], index: 0, kind: input, shape index: {}]
  %s1 = inlined_call_operand.vmem [shape: f32[256,512], index: 1, kind: input, shape index: {}]
  %s2 = inlined_call_operand.vmem [shape: f32[1,512], index: 2, kind: input, shape index: {}]
  %s3 = inlined_call_operand.vmem [shape: f32[32,512], index: 3, kind: output, shape index: {}]
  %s4 = sld [smem:[#allocation0]]
  $region95: #{transformer_forward.12} parent=0
    _
  %s6 = ssub.s32 1, %s4
  %s7 = scalar_select 0, %s6, %s4
  $region1: #{transformer_forward.12} parent=0
    #allocation3 [shape = 'u8[524288]{0}', space=vmem, size = 0x80000, scoped, tag = 'input window, operand 1']
    #allocation4 [shape = 'u8[65536]{0}', space=vmem, size = 0x10000, scoped, tag = 'output window, operand 0']
    loop: start=0, step=1, limit=4
    $region2: #{transformer_forward.12} parent=1 // loop_pre_header
      _
    $region3: #{transformer_forward.12} parent=1 // loop_header
      %s9 = sphi 0, %s13
      %p10 = scmp.ge.s32.totalorder %s9, 4
      %s16 = sphi 0, %s35
      %s17 = sphi 0, %s31
      %s18 = sphi 0, %s27
      %s19 = sphi 0, %s16
      %s20 = sphi 0, %s17
      %s21 = sphi 0, %s18
      %s22 = sphi 0, %s19
      %s23 = sphi 0, %s20
      %s24 = sphi 0, %s21
      %s40 = sphi 0, %s42
      %s43 = sphi 0, %s40
      %s44 = sphi 0, %s43
      %s60 = sphi 0, %s44
      %s68 = sphi 0, %s70
      %s71 = sphi 0, %s68
      %s72 = sphi 0, %s71
      %s88 = sphi 0, %s72
      %s94 = sphi 0, %s96
      %s97 = sphi 0, %s94
      %s98 = sphi 0, %s97
      %s114 = sphi 0, %s98
      %s122 = sphi 0, %s124
      %s125 = sphi 0, %s122
      %s126 = sphi 0, %s125
      %s142 = sphi 0, %s126
    $region4: #{transformer_forward.12} parent=1 // loop_header_branch
      %12 = sbr.rel (%p10) target = $region8
    $region5: #{transformer_forward.12} parent=1 // loop_body
      %s14 = ssub.s32 %s9, 1
      %s15 = ssub.s32 %s9, 2
      %s25 = sadd.s32 1, %s18
      %p26 = scmp.ge.s32.totalorder %s25, 1
      %s27 = scalar_select %p26, 0, %s25
      %s28 = sadd.s32 1, %s17
      %s29 = scalar_select %p26, %s28, %s17
      %p30 = scmp.ge.s32.totalorder %s29, 2
      %s31 = scalar_select %p30, 0, %s29
      %s32 = sadd.s32 1, %s16
      %s33 = scalar_select %p30, %s32, %s16
      %p34 = scmp.ge.s32.totalorder %s33, 1
      %s35 = scalar_select %p34, 0, %s33
      %s36 = ssub.s32 %s16, %s35
      %s37 = ssub.s32 %s18, %s27
      %s38 = sor.u32 %s36, %s37
      %p39 = scmp.eq.s32.totalorder %s38, 0
      %s41 = sadd.s32 %s40, 1
      %s42 = scalar_select %p39, %s40, %s41
      %p45 = pneg %p39
      %p46 = scmp.eq.s32.totalorder %s9, 1
      %p47 = por %p45, %p46
      %p48 = scmp.ne.s32.totalorder %s40, %s43
      %p49 = scmp.eq.s32.totalorder %s9, 0
      %p50 = por %p48, %p49
      %p51 = scmp.ne.s32.totalorder %s40, %s43
      %p52 = scmp.eq.s32.totalorder %s14, 1
      %p53 = por %p51, %p52
      %p54 = scmp.ne.s32.totalorder %s43, %s44
      %p55 = scmp.eq.s32.totalorder %s14, 0
      %p56 = por %p54, %p55
      %p57 = scmp.ne.s32.totalorder %s43, %s44
      %p58 = scmp.eq.s32.totalorder %s15, 1
      %p59 = por %p57, %p58
      %p61 = scmp.ne.s32.totalorder %s44, %s60
      %p62 = scmp.eq.s32.totalorder %s15, 0
      %p63 = por %p61, %p62
      %s64 = ssub.s32 %s18, %s27
      %s65 = ssub.s32 %s17, %s31
      %s66 = sor.u32 %s64, %s65
      %p67 = scmp.eq.s32.totalorder %s66, 0
      %s69 = sadd.s32 %s68, 1
      %s70 = scalar_select %p67, %s68, %s69
      %p73 = pneg %p67
      %p74 = scmp.eq.s32.totalorder %s9, 1
      %p75 = por %p73, %p74
      %p76 = scmp.ne.s32.totalorder %s68, %s71
      %p77 = scmp.eq.s32.totalorder %s9, 0
      %p78 = por %p76, %p77
      %p79 = scmp.ne.s32.totalorder %s68, %s71
      %p80 = scmp.eq.s32.totalorder %s14, 1
      %p81 = por %p79, %p80
      %p82 = scmp.ne.s32.totalorder %s71, %s72
      %p83 = scmp.eq.s32.totalorder %s14, 0
      %p84 = por %p82, %p83
      %p85 = scmp.ne.s32.totalorder %s71, %s72
      %p86 = scmp.eq.s32.totalorder %s15, 1
      %p87 = por %p85, %p86
      %p89 = scmp.ne.s32.totalorder %s72, %s88
      %p90 = scmp.eq.s32.totalorder %s15, 0
      %p91 = por %p89, %p90
      %s92 = ssub.s32 %s17, %s31
      %p93 = scmp.eq.s32.totalorder %s92, 0
      %s95 = sadd.s32 %s94, 1
      %s96 = scalar_select %p93, %s94, %s95
      %p99 = pneg %p93
      %p100 = scmp.eq.s32.totalorder %s9, 1
      %p101 = por %p99, %p100
      %p102 = scmp.ne.s32.totalorder %s94, %s97
      %p103 = scmp.eq.s32.totalorder %s9, 0
      %p104 = por %p102, %p103
      %p105 = scmp.ne.s32.totalorder %s94, %s97
      %p106 = scmp.eq.s32.totalorder %s14, 1
      %p107 = por %p105, %p106
      %p108 = scmp.ne.s32.totalorder %s97, %s98
      %p109 = scmp.eq.s32.totalorder %s14, 0
      %p110 = por %p108, %p109
      %p111 = scmp.ne.s32.totalorder %s97, %s98
      %p112 = scmp.eq.s32.totalorder %s15, 1
      %p113 = por %p111, %p112
      %p115 = scmp.ne.s32.totalorder %s98, %s114
      %p116 = scmp.eq.s32.totalorder %s15, 0
      %p117 = por %p115, %p116
      %s118 = ssub.s32 %s16, %s35
      %s119 = ssub.s32 %s17, %s31
      %s120 = sor.u32 %s118, %s119
      %p121 = scmp.eq.s32.totalorder %s120, 0
      %s123 = sadd.s32 %s122, 1
      %s124 = scalar_select %p121, %s122, %s123
      %p127 = pneg %p121
      %p128 = scmp.eq.s32.totalorder %s9, 1
      %p129 = por %p127, %p128
      %p130 = scmp.ne.s32.totalorder %s122, %s125
      %p131 = scmp.eq.s32.totalorder %s9, 0
      %p132 = por %p130, %p131
      %p133 = scmp.ne.s32.totalorder %s122, %s125
      %p134 = scmp.eq.s32.totalorder %s14, 1
      %p135 = por %p133, %p134
      %p136 = scmp.ne.s32.totalorder %s125, %s126
      %p137 = scmp.eq.s32.totalorder %s14, 0
      %p138 = por %p136, %p137
      %p139 = scmp.ne.s32.totalorder %s125, %s126
      %p140 = scmp.eq.s32.totalorder %s15, 1
      %p141 = por %p139, %p140
      %p143 = scmp.ne.s32.totalorder %s126, %s142
      %p144 = scmp.eq.s32.totalorder %s15, 0
      %p145 = por %p143, %p144
      %p146 = scmp.le.s32.totalorder 1, %s9
      %p147 = scmp.lt.s32.totalorder %s9, 3
      %p148 = pnand %p146, %p147
      %p149 = pneg %p148
      // Predicated region
      $region9: #{transformer_forward.12} parent=5 // pred_check
        _
      $region10: #{transformer_forward.12} parent=5 // pred_check_branch
        %151 = sbr.rel (%p148) target = $region12
      $region11: #{transformer_forward.12} parent=5 // pred_region
        %s152 = ssub.s32 %s9, 1
        // Predicated region
        $region13: #{transformer_forward.12} parent=11 // pred_check
          %p153 = pneg %p56
        $region14: #{transformer_forward.12} parent=11 // pred_check_branch
          %155 = sbr.rel (%p153) target = $region16
        $region15: #{transformer_forward.12} parent=11 // pred_region
          %s156 = smul.u32 4, %s19
          %s157 = smul.u32 2, %s21
          %p158 = scmp.lt.s32.totalorder %s156, 3
          %s159 = scalar_select %p158, %s156, 3
          %p160 = scmp.lt.s32.totalorder %s157, 1
          %s161 = scalar_select %p160, %s157, 1
          %s162 = smul.addr %s159, 2
          %s163 = sadd.s32 %s161, %s162
          %s164 = smul.addr %s163, 8
          %s165 = scalar_lea.vmem %s0, %s164
          %s166 = smul.u32 4, %s19
          %s167 = smul.u32 2, %s21
        $region16: #{transformer_forward.12} parent=11 // pred_fallthru
          _
      $region12: #{transformer_forward.12} parent=5 // pred_fallthru
        _
      %p168 = scmp.lt.s32.totalorder %s9, 2
      // Predicated region
      $region17: #{transformer_forward.12} parent=5 // pred_check
        %p169 = pneg %p168
      $region18: #{transformer_forward.12} parent=5 // pred_check_branch
        %171 = sbr.rel (%p169) target = $region20
      $region19: #{transformer_forward.12} parent=5 // pred_region
        // Predicated region
        $region21: #{transformer_forward.12} parent=19 // pred_check
          %p172 = pneg %p78
        $region22: #{transformer_forward.12} parent=19 // pred_check_branch
          %174 = sbr.rel (%p172) target = $region24
        $region23: #{transformer_forward.12} parent=19 // pred_region
          %s175 = sand.u32 %s68, 1
          %s176 = sand.u32 %s68, 1
          %s177 = smul.addr %s176, 512
          %s178 = scalar_lea.vmem [#allocation3], %s177
          %s179 = smul.u32 32, %s18
          %s180 = smul.u32 2, %s17
          %s181 = smul.addr %s179, 4
          %s182 = sadd.s32 %s180, %s181
          %s183 = smul.addr %s182, 8
          %s184 = scalar_lea.vmem %s1, %s183
          // Predicated region
          $region25: #{transformer_forward.12} parent=23 // pred_check
            _
          $region26: #{transformer_forward.12} parent=23 // pred_check_branch
            %186 = sbr.rel (0) target = $region28
          $region27: #{transformer_forward.12} parent=23 // pred_region
            // Predicated region
            $region29: #{transformer_forward.12} parent=27 // pred_check
              _
            $region30: #{transformer_forward.12} parent=27 // pred_check_branch
              %188 = sbr.rel (0) target = $region32
            $region31: #{transformer_forward.12} parent=27 // pred_region
              loop: start=0, step=1, limit=1
              $region33: #{transformer_forward.12} parent=31 // loop_pre_header
                _
              $region34: #{transformer_forward.12} parent=31 // loop_header
                %s190 = sphi 0, %s194
                %p191 = scmp.ge.s32.totalorder %s190, 1
                %s195 = sphi %s184, %s184
                %s196 = sphi %s178, %s178
              $region35: #{transformer_forward.12} parent=31 // loop_header_branch
                %193 = sbr.rel (%p191) target = $region39
              $region36: #{transformer_forward.12} parent=31 // loop_body
                %v197 = vld [vmem:[%s195] sm:$0xff]
                %198 = vst [vmem:[%s196] sm:$0xff] %v197
                %v199 = vld [vmem:[%s195 + $0x8] sm:$0xff]
                %200 = vst [vmem:[%s196 + $0x8] sm:$0xff] %v199
                %v201 = vld [vmem:[%s195 + $0x20] sm:$0xff]
                %202 = vst [vmem:[%s196 + $0x10] sm:$0xff] %v201
                %v203 = vld [vmem:[%s195 + $0x28] sm:$0xff]
                %204 = vst [vmem:[%s196 + $0x18] sm:$0xff] %v203
                %v205 = vld [vmem:[%s195 + $0x40] sm:$0xff]
                %206 = vst [vmem:[%s196 + $0x20] sm:$0xff] %v205
                %v207 = vld [vmem:[%s195 + $0x48] sm:$0xff]
                %208 = vst [vmem:[%s196 + $0x28] sm:$0xff] %v207
                %v209 = vld [vmem:[%s195 + $0x60] sm:$0xff]
                %210 = vst [vmem:[%s196 + $0x30] sm:$0xff] %v209
                %v211 = vld [vmem:[%s195 + $0x68] sm:$0xff]
                %212 = vst [vmem:[%s196 + $0x38] sm:$0xff] %v211
                %v213 = vld [vmem:[%s195 + $0x80] sm:$0xff]
                %214 = vst [vmem:[%s196 + $0x40] sm:$0xff] %v213
                %v215 = vld [vmem:[%s195 + $0x88] sm:$0xff]
                %216 = vst [vmem:[%s196 + $0x48] sm:$0xff] %v215
                %v217 = vld [vmem:[%s195 + $0xa0] sm:$0xff]
                %218 = vst [vmem:[%s196 + $0x50] sm:$0xff] %v217
                %v219 = vld [vmem:[%s195 + $0xa8] sm:$0xff]
                %220 = vst [vmem:[%s196 + $0x58] sm:$0xff] %v219
                %v221 = vld [vmem:[%s195 + $0xc0] sm:$0xff]
                %222 = vst [vmem:[%s196 + $0x60] sm:$0xff] %v221
                %v223 = vld [vmem:[%s195 + $0xc8] sm:$0xff]
                %224 = vst [vmem:[%s196 + $0x68] sm:$0xff] %v223
                %v225 = vld [vmem:[%s195 + $0xe0] sm:$0xff]
                %226 = vst [vmem:[%s196 + $0x70] sm:$0xff] %v225
                %v227 = vld [vmem:[%s195 + $0xe8] sm:$0xff]
                %228 = vst [vmem:[%s196 + $0x78] sm:$0xff] %v227
                %v229 = vld [vmem:[%s195 + $0x100] sm:$0xff]
                %230 = vst [vmem:[%s196 + $0x80] sm:$0xff] %v229
                %v231 = vld [vmem:[%s195 + $0x108] sm:$0xff]
                %232 = vst [vmem:[%s196 + $0x88] sm:$0xff] %v231
                %v233 = vld [vmem:[%s195 + $0x120] sm:$0xff]
                %234 = vst [vmem:[%s196 + $0x90] sm:$0xff] %v233
                %v235 = vld [vmem:[%s195 + $0x128] sm:$0xff]
                %236 = vst [vmem:[%s196 + $0x98] sm:$0xff] %v235
                %v237 = vld [vmem:[%s195 + $0x140] sm:$0xff]
                %238 = vst [vmem:[%s196 + $0xa0] sm:$0xff] %v237
                %v239 = vld [vmem:[%s195 + $0x148] sm:$0xff]
                %240 = vst [vmem:[%s196 + $0xa8] sm:$0xff] %v239
                %v241 = vld [vmem:[%s195 + $0x160] sm:$0xff]
                %242 = vst [vmem:[%s196 + $0xb0] sm:$0xff] %v241
                %v243 = vld [vmem:[%s195 + $0x168] sm:$0xff]
                %244 = vst [vmem:[%s196 + $0xb8] sm:$0xff] %v243
                %v245 = vld [vmem:[%s195 + $0x180] sm:$0xff]
                %246 = vst [vmem:[%s196 + $0xc0] sm:$0xff] %v245
                %v247 = vld [vmem:[%s195 + $0x188] sm:$0xff]
                %248 = vst [vmem:[%s196 + $0xc8] sm:$0xff] %v247
                %v249 = vld [vmem:[%s195 + $0x1a0] sm:$0xff]
                %250 = vst [vmem:[%s196 + $0xd0] sm:$0xff] %v249
                %v251 = vld [vmem:[%s195 + $0x1a8] sm:$0xff]
                %252 = vst [vmem:[%s196 + $0xd8] sm:$0xff] %v251
                %v253 = vld [vmem:[%s195 + $0x1c0] sm:$0xff]
                %254 = vst [vmem:[%s196 + $0xe0] sm:$0xff] %v253
                %v255 = vld [vmem:[%s195 + $0x1c8] sm:$0xff]
                %256 = vst [vmem:[%s196 + $0xe8] sm:$0xff] %v255
                %v257 = vld [vmem:[%s195 + $0x1e0] sm:$0xff]
                %258 = vst [vmem:[%s196 + $0xf0] sm:$0xff] %v257
                %v259 = vld [vmem:[%s195 + $0x1e8] sm:$0xff]
                %260 = vst [vmem:[%s196 + $0xf8] sm:$0xff] %v259
                %v261 = vld [vmem:[%s195 + $0x200] sm:$0xff]
                %262 = vst [vmem:[%s196 + $0x100] sm:$0xff] %v261
                %v263 = vld [vmem:[%s195 + $0x208] sm:$0xff]
                %264 = vst [vmem:[%s196 + $0x108] sm:$0xff] %v263
                %v265 = vld [vmem:[%s195 + $0x220] sm:$0xff]
                %266 = vst [vmem:[%s196 + $0x110] sm:$0xff] %v265
                %v267 = vld [vmem:[%s195 + $0x228] sm:$0xff]
                %268 = vst [vmem:[%s196 + $0x118] sm:$0xff] %v267
                %v269 = vld [vmem:[%s195 + $0x240] sm:$0xff]
                %270 = vst [vmem:[%s196 + $0x120] sm:$0xff] %v269
                %v271 = vld [vmem:[%s195 + $0x248] sm:$0xff]
                %272 = vst [vmem:[%s196 + $0x128] sm:$0xff] %v271
                %v273 = vld [vmem:[%s195 + $0x260] sm:$0xff]
                %274 = vst [vmem:[%s196 + $0x130] sm:$0xff] %v273
                %v275 = vld [vmem:[%s195 + $0x268] sm:$0xff]
                %276 = vst [vmem:[%s196 + $0x138] sm:$0xff] %v275
                %v277 = vld [vmem:[%s195 + $0x280] sm:$0xff]
                %278 = vst [vmem:[%s196 + $0x140] sm:$0xff] %v277
                %v279 = vld [vmem:[%s195 + $0x288] sm:$0xff]
                %280 = vst [vmem:[%s196 + $0x148] sm:$0xff] %v279
                %v281 = vld [vmem:[%s195 + $0x2a0] sm:$0xff]
                %282 = vst [vmem:[%s196 + $0x150] sm:$0xff] %v281
                %v283 = vld [vmem:[%s195 + $0x2a8] sm:$0xff]
                %284 = vst [vmem:[%s196 + $0x158] sm:$0xff] %v283
                %v285 = vld [vmem:[%s195 + $0x2c0] sm:$0xff]
                %286 = vst [vmem:[%s196 + $0x160] sm:$0xff] %v285
                %v287 = vld [vmem:[%s195 + $0x2c8] sm:$0xff]
                %288 = vst [vmem:[%s196 + $0x168] sm:$0xff] %v287
                %v289 = vld [vmem:[%s195 + $0x2e0] sm:$0xff]
                %290 = vst [vmem:[%s196 + $0x170] sm:$0xff] %v289
                %v291 = vld [vmem:[%s195 + $0x2e8] sm:$0xff]
                %292 = vst [vmem:[%s196 + $0x178] sm:$0xff] %v291
                %v293 = vld [vmem:[%s195 + $0x300] sm:$0xff]
                %294 = vst [vmem:[%s196 + $0x180] sm:$0xff] %v293
                %v295 = vld [vmem:[%s195 + $0x308] sm:$0xff]
                %296 = vst [vmem:[%s196 + $0x188] sm:$0xff] %v295
                %v297 = vld [vmem:[%s195 + $0x320] sm:$0xff]
                %298 = vst [vmem:[%s196 + $0x190] sm:$0xff] %v297
                %v299 = vld [vmem:[%s195 + $0x328] sm:$0xff]
                %300 = vst [vmem:[%s196 + $0x198] sm:$0xff] %v299
                %v301 = vld [vmem:[%s195 + $0x340] sm:$0xff]
                %302 = vst [vmem:[%s196 + $0x1a0] sm:$0xff] %v301
                %v303 = vld [vmem:[%s195 + $0x348] sm:$0xff]
                %304 = vst [vmem:[%s196 + $0x1a8] sm:$0xff] %v303
                %v305 = vld [vmem:[%s195 + $0x360] sm:$0xff]
                %306 = vst [vmem:[%s196 + $0x1b0] sm:$0xff] %v305
                %v307 = vld [vmem:[%s195 + $0x368] sm:$0xff]
                %308 = vst [vmem:[%s196 + $0x1b8] sm:$0xff] %v307
                %v309 = vld [vmem:[%s195 + $0x380] sm:$0xff]
                %310 = vst [vmem:[%s196 + $0x1c0] sm:$0xff] %v309
                %v311 = vld [vmem:[%s195 + $0x388] sm:$0xff]
                %312 = vst [vmem:[%s196 + $0x1c8] sm:$0xff] %v311
                %v313 = vld [vmem:[%s195 + $0x3a0] sm:$0xff]
                %314 = vst [vmem:[%s196 + $0x1d0] sm:$0xff] %v313
                %v315 = vld [vmem:[%s195 + $0x3a8] sm:$0xff]
                %316 = vst [vmem:[%s196 + $0x1d8] sm:$0xff] %v315
                %v317 = vld [vmem:[%s195 + $0x3c0] sm:$0xff]
                %318 = vst [vmem:[%s196 + $0x1e0] sm:$0xff] %v317
                %v319 = vld [vmem:[%s195 + $0x3c8] sm:$0xff]
                %320 = vst [vmem:[%s196 + $0x1e8] sm:$0xff] %v319
                %v321 = vld [vmem:[%s195 + $0x3e0] sm:$0xff]
                %322 = vst [vmem:[%s196 + $0x1f0] sm:$0xff] %v321
                %v323 = vld [vmem:[%s195 + $0x3e8] sm:$0xff]
                %324 = vst [vmem:[%s196 + $0x1f8] sm:$0xff] %v323
              $region37: #{transformer_forward.12} parent=31 // loop_footer
                %s194 = sadd.s32 1, %s190
              $region38: #{transformer_forward.12} parent=31 // loop_footer_branch
                %189 = sbr.rel target = $region34
              $region39: #{transformer_forward.12} parent=31 // loop_exit
                _
            $region32: #{transformer_forward.12} parent=27 // pred_fallthru
              _
            // Predicated region
            $region40: #{transformer_forward.12} parent=27 // pred_check
              _
            $region41: #{transformer_forward.12} parent=27 // pred_check_branch
              %326 = sbr.rel target = $region43
            $region42: #{transformer_forward.12} parent=27 // pred_region
              _
            $region43: #{transformer_forward.12} parent=27 // pred_fallthru
              _
          $region28: #{transformer_forward.12} parent=23 // pred_fallthru
            _
          %327 = vnop
        $region24: #{transformer_forward.12} parent=19 // pred_fallthru
          _
        // Predicated region
        $region44: #{transformer_forward.12} parent=19 // pred_check
          %p328 = pneg %p104
        $region45: #{transformer_forward.12} parent=19 // pred_check_branch
          %330 = sbr.rel (%p328) target = $region47
        $region46: #{transformer_forward.12} parent=19 // pred_region
          %s331 = smul.u32 2, %s17
          %p332 = scmp.lt.s32.totalorder %s331, 3
          %s333 = scalar_select %p332, %s331, 3
          %s334 = scalar_lea.vmem %s2, %s333
          %s335 = smul.u32 2, %s17
        $region47: #{transformer_forward.12} parent=19 // pred_fallthru
          _
      $region20: #{transformer_forward.12} parent=5 // pred_fallthru
        _
      %p336 = scmp.le.s32.totalorder 1, %s9
      %p337 = scmp.lt.s32.totalorder %s9, 3
      %p338 = pnand %p336, %p337
      %p339 = pneg %p338
      // Predicated region
      $region48: #{transformer_forward.12} parent=5 // pred_check
        _
      $region49: #{transformer_forward.12} parent=5 // pred_check_branch
        %341 = sbr.rel (%p338) target = $region51
      $region50: #{transformer_forward.12} parent=5 // pred_region
        %s342 = ssub.s32 %s9, 1
        %s343 = sand.u32 %s71, 1
        %s344 = sand.u32 %s71, 1
        %s345 = smul.addr %s344, 512
        %s346 = scalar_lea.vmem [#allocation3], %s345
        // Predicated region
        $region52: #{transformer_forward.12} parent=50 // pred_check
          %p347 = pneg %p84
        $region53: #{transformer_forward.12} parent=50 // pred_check_branch
          %349 = sbr.rel (%p347) target = $region55
        $region54: #{transformer_forward.12} parent=50 // pred_region
          _
        $region55: #{transformer_forward.12} parent=50 // pred_fallthru
          _
        %s350 = smul.u32 4, %s19
        %s351 = smul.u32 2, %s21
        %p352 = scmp.lt.s32.totalorder %s350, 3
        %s353 = scalar_select %p352, %s350, 3
        %p354 = scmp.lt.s32.totalorder %s351, 1
        %s355 = scalar_select %p354, %s351, 1
        %s356 = smul.addr %s353, 2
        %s357 = sadd.s32 %s355, %s356
        %s358 = smul.addr %s357, 8
        %s359 = scalar_lea.vmem %s0, %s358
        %p360 = pneg %p56
        %p361 = pneg %p53
        %s362 = sand.u32 %s71, 1
        %s363 = sand.u32 %s71, 1
        %s364 = smul.addr %s363, 512
        %s365 = scalar_lea.vmem [#allocation3], %s364
        %p366 = pneg %p84
        %p367 = pneg %p81
        %s368 = smul.u32 2, %s20
        %p369 = scmp.lt.s32.totalorder %s368, 3
        %s370 = scalar_select %p369, %s368, 3
        %s371 = scalar_lea.vmem %s2, %s370
        %p372 = pneg %p110
        %p373 = pneg %p107
        %p374 = pneg %p138
        %p375 = pneg %p135
        %s376 = sand.u32 %s125, 1
        %s377 = sand.u32 %s125, 1
        %s378 = smul.addr %s377, 64
        %s379 = scalar_lea.vmem [#allocation4], %s378
        %s380 = smul.u32 4, %s19
        %s381 = smul.u32 2, %s21
        %p382 = scmp.lt.s32.totalorder %s380, 3
        %s383 = scalar_select %p382, %s380, 3
        %p384 = scmp.lt.s32.totalorder %s381, 1
        %s385 = scalar_select %p384, %s381, 1
        %s386 = smul.addr %s383, 2
        %s387 = sadd.s32 %s385, %s386
        %s388 = smul.addr %s387, 8
        %s389 = scalar_lea.vmem %s0, %s388
        %s390 = smul.u32 4, %s19
        %s391 = smul.u32 2, %s21
        %s392 = smul.u32 32, %s21
        %s393 = smul.u32 2, %s20
        %s394 = smul.u32 2, %s20
        %p395 = scmp.lt.s32.totalorder %s394, 3
        %s396 = scalar_select %p395, %s394, 3
        %s397 = scalar_lea.vmem %s2, %s396
        %s398 = smul.u32 2, %s20
        %s399 = smul.u32 4, %s19
        %s400 = smul.u32 2, %s20
        %p401 = scmp.eq.s32.totalorder %s21, 0
        // Predicated region
        $region56: #{transformer_forward.12} parent=50 // pred_check
          %p402 = pneg %p401
        $region57: #{transformer_forward.12} parent=50 // pred_check_branch
          %404 = sbr.rel (%p402) target = $region59
        $region58: #{transformer_forward.12} parent=50 // pred_region
          %405 = vst [vmem:[#allocation2] sm:$0xff] 0.0
          %406 = vst [vmem:[#allocation2 + $0x8] sm:$0xff] 0.0
          %407 = vst [vmem:[#allocation2 + $0x10] sm:$0xff] 0.0
          %408 = vst [vmem:[#allocation2 + $0x18] sm:$0xff] 0.0
          %409 = vst [vmem:[#allocation2 + $0x20] sm:$0xff] 0.0
          %410 = vst [vmem:[#allocation2 + $0x28] sm:$0xff] 0.0
          %411 = vst [vmem:[#allocation2 + $0x30] sm:$0xff] 0.0
          %412 = vst [vmem:[#allocation2 + $0x38] sm:$0xff] 0.0
        $region59: #{transformer_forward.12} parent=50 // pred_fallthru
          _
        %v413 = vld [vmem:[#allocation2] sm:$0xff]
        %v414 = vld [vmem:[#allocation2 + $0x8] sm:$0xff]
        %v415 = vld [vmem:[#allocation2 + $0x10] sm:$0xff]
        %v416 = vld [vmem:[#allocation2 + $0x18] sm:$0xff]
        %v417 = vld [vmem:[#allocation2 + $0x20] sm:$0xff]
        %v418 = vld [vmem:[#allocation2 + $0x28] sm:$0xff]
        %v419 = vld [vmem:[#allocation2 + $0x30] sm:$0xff]
        %v420 = vld [vmem:[#allocation2 + $0x38] sm:$0xff]
        %v421 = vld [vmem:[%s389] sm:$0xff]
        %v422 = vld [vmem:[%s389 + $0x8] sm:$0xff]
        %v423 = vld [vmem:[%s389 + $0x10] sm:$0xff]
        %v424 = vld [vmem:[%s389 + $0x18] sm:$0xff]
        %v425 = vld [vmem:[%s389 + $0x20] sm:$0xff]
        %v426 = vld [vmem:[%s389 + $0x28] sm:$0xff]
        %v427 = vld [vmem:[%s389 + $0x30] sm:$0xff]
        %v428 = vld [vmem:[%s389 + $0x38] sm:$0xff]
        %v429 = vld [vmem:[%s346] sm:$0xff]
        %v430 = vld [vmem:[%s346 + $0x8] sm:$0xff]
        %v431 = vld [vmem:[%s346 + $0x10] sm:$0xff]
        %v432 = vld [vmem:[%s346 + $0x18] sm:$0xff]
        %v433 = vld [vmem:[%s346 + $0x20] sm:$0xff]
        %v434 = vld [vmem:[%s346 + $0x28] sm:$0xff]
        %v435 = vld [vmem:[%s346 + $0x30] sm:$0xff]
        %v436 = vld [vmem:[%s346 + $0x38] sm:$0xff]
        %v437 = vld [vmem:[%s346 + $0x40] sm:$0xff]
        %v438 = vld [vmem:[%s346 + $0x48] sm:$0xff]
        %v439 = vld [vmem:[%s346 + $0x50] sm:$0xff]
        %v440 = vld [vmem:[%s346 + $0x58] sm:$0xff]
        %v441 = vld [vmem:[%s346 + $0x60] sm:$0xff]
        %v442 = vld [vmem:[%s346 + $0x68] sm:$0xff]
        %v443 = vld [vmem:[%s346 + $0x70] sm:$0xff]
        %v444 = vld [vmem:[%s346 + $0x78] sm:$0xff]
        %v445 = vld [vmem:[%s346 + $0x80] sm:$0xff]
        %v446 = vld [vmem:[%s346 + $0x88] sm:$0xff]
        %v447 = vld [vmem:[%s346 + $0x90] sm:$0xff]
        %v448 = vld [vmem:[%s346 + $0x98] sm:$0xff]
        %v449 = vld [vmem:[%s346 + $0xa0] sm:$0xff]
        %v450 = vld [vmem:[%s346 + $0xa8] sm:$0xff]
        %v451 = vld [vmem:[%s346 + $0xb0] sm:$0xff]
        %v452 = vld [vmem:[%s346 + $0xb8] sm:$0xff]
        %v453 = vld [vmem:[%s346 + $0xc0] sm:$0xff]
        %v454 = vld [vmem:[%s346 + $0xc8] sm:$0xff]
        %v455 = vld [vmem:[%s346 + $0xd0] sm:$0xff]
        %v456 = vld [vmem:[%s346 + $0xd8] sm:$0xff]
        %v457 = vld [vmem:[%s346 + $0xe0] sm:$0xff]
        %v458 = vld [vmem:[%s346 + $0xe8] sm:$0xff]
        %v459 = vld [vmem:[%s346 + $0xf0] sm:$0xff]
        %v460 = vld [vmem:[%s346 + $0xf8] sm:$0xff]
        %v461 = vld [vmem:[%s346 + $0x100] sm:$0xff]
        %v462 = vld [vmem:[%s346 + $0x108] sm:$0xff]
        %v463 = vld [vmem:[%s346 + $0x110] sm:$0xff]
        %v464 = vld [vmem:[%s346 + $0x118] sm:$0xff]
        %v465 = vld [vmem:[%s346 + $0x120] sm:$0xff]
        %v466 = vld [vmem:[%s346 + $0x128] sm:$0xff]
        %v467 = vld [vmem:[%s346 + $0x130] sm:$0xff]
        %v468 = vld [vmem:[%s346 + $0x138] sm:$0xff]
        %v469 = vld [vmem:[%s346 + $0x140] sm:$0xff]
        %v470 = vld [vmem:[%s346 + $0x148] sm:$0xff]
        %v471 = vld [vmem:[%s346 + $0x150] sm:$0xff]
        %v472 = vld [vmem:[%s346 + $0x158] sm:$0xff]
        %v473 = vld [vmem:[%s346 + $0x160] sm:$0xff]
        %v474 = vld [vmem:[%s346 + $0x168] sm:$0xff]
        %v475 = vld [vmem:[%s346 + $0x170] sm:$0xff]
        %v476 = vld [vmem:[%s346 + $0x178] sm:$0xff]
        %v477 = vld [vmem:[%s346 + $0x180] sm:$0xff]
        %v478 = vld [vmem:[%s346 + $0x188] sm:$0xff]
        %v479 = vld [vmem:[%s346 + $0x190] sm:$0xff]
        %v480 = vld [vmem:[%s346 + $0x198] sm:$0xff]
        %v481 = vld [vmem:[%s346 + $0x1a0] sm:$0xff]
        %v482 = vld [vmem:[%s346 + $0x1a8] sm:$0xff]
        %v483 = vld [vmem:[%s346 + $0x1b0] sm:$0xff]
        %v484 = vld [vmem:[%s346 + $0x1b8] sm:$0xff]
        %v485 = vld [vmem:[%s346 + $0x1c0] sm:$0xff]
        %v486 = vld [vmem:[%s346 + $0x1c8] sm:$0xff]
        %v487 = vld [vmem:[%s346 + $0x1d0] sm:$0xff]
        %v488 = vld [vmem:[%s346 + $0x1d8] sm:$0xff]
        %v489 = vld [vmem:[%s346 + $0x1e0] sm:$0xff]
        %v490 = vld [vmem:[%s346 + $0x1e8] sm:$0xff]
        %v491 = vld [vmem:[%s346 + $0x1f0] sm:$0xff]
        %v492 = vld [vmem:[%s346 + $0x1f8] sm:$0xff]
        %493 = vmatprep.subr.mxu0 %v430
        %494 = vmatpush1.msra.mxu0 %v429
        %495 = vmatprep.subr.mxu0 %v432
        %496 = vmatpush1.msra.mxu0 %v431
        %497 = vmatprep.subr.mxu0 %v434
        %498 = vmatpush1.msra.mxu0 %v433
        %499 = vmatprep.subr.mxu0 %v436
        %500 = vmatpush1.msra.mxu0 %v435
        %501 = vmatprep.subr.mxu0 %v438
        %502 = vmatpush1.msra.mxu0 %v437
        %503 = vmatprep.subr.mxu0 %v440
        %504 = vmatpush1.msra.mxu0 %v439
        %505 = vmatprep.subr.mxu0 %v442
        %506 = vmatpush1.msra.mxu0 %v441
        %507 = vmatprep.subr.mxu0 %v444
        %508 = vmatpush1.msra.mxu0 %v443
        %509 = vmatprep.subr.mxu0 %v446
        %510 = vmatpush1.msra.mxu0 %v445
        %511 = vmatprep.subr.mxu0 %v448
        %512 = vmatpush1.msra.mxu0 %v447
        %513 = vmatprep.subr.mxu0 %v450
        %514 = vmatpush1.msra.mxu0 %v449
        %515 = vmatprep.subr.mxu0 %v452
        %516 = vmatpush1.msra.mxu0 %v451
        %517 = vmatprep.subr.mxu0 %v454
        %518 = vmatpush1.msra.mxu0 %v453
        %519 = vmatprep.subr.mxu0 %v456
        %520 = vmatpush1.msra.mxu0 %v455
        %521 = vmatprep.subr.mxu0 %v458
        %522 = vmatpush1.msra.mxu0 %v457
        %523 = vmatprep.subr.mxu0 %v460
        %524 = vmatpush1.msra.mxu0 %v459
        %525 = vmatprep.subr.mxu0 %v462
        %526 = vmatpush1.msra.mxu0 %v461
        %527 = vmatprep.subr.mxu0 %v464
        %528 = vmatpush1.msra.mxu0 %v463
        %529 = vmatprep.subr.mxu0 %v466
        %530 = vmatpush1.msra.mxu0 %v465
        %531 = vmatprep.subr.mxu0 %v468
        %532 = vmatpush1.msra.mxu0 %v467
        %533 = vmatprep.subr.mxu0 %v470
        %534 = vmatpush1.msra.mxu0 %v469
        %535 = vmatprep.subr.mxu0 %v472
        %536 = vmatpush1.msra.mxu0 %v471
        %537 = vmatprep.subr.mxu0 %v474
        %538 = vmatpush1.msra.mxu0 %v473
        %539 = vmatprep.subr.mxu0 %v476
        %540 = vmatpush1.msra.mxu0 %v475
        %541 = vmatprep.subr.mxu0 %v478
        %542 = vmatpush1.msra.mxu0 %v477
        %543 = vmatprep.subr.mxu0 %v480
        %544 = vmatpush1.msra.mxu0 %v479
        %545 = vmatprep.subr.mxu0 %v482
        %546 = vmatpush1.msra.mxu0 %v481
        %547 = vmatprep.subr.mxu0 %v484
        %548 = vmatpush1.msra.mxu0 %v483
        %549 = vmatprep.subr.mxu0 %v486
        %550 = vmatpush1.msra.mxu0 %v485
        %551 = vmatprep.subr.mxu0 %v488
        %552 = vmatpush1.msra.mxu0 %v487
        %553 = vmatprep.subr.mxu0 %v490
        %554 = vmatpush1.msra.mxu0 %v489
        %555 = vmatprep.subr.mxu0 %v492
        %556 = vmatpush1.msra.mxu0 %v491
        %557 = vmatprep.mubr.f32.mxu0 %v422
        %558 = vmatmul.mubr.f32.gmra.mrb[0].mxu0 %v421
        %v559 = vpop.f32.mrb[0].mxu0
        %v560 = vadd.f32 0.0, %v559
        %v561 = vpop.f32.mrb[0].mxu0
        %v562 = vadd.f32 0.0, %v561
        %563 = vmatprep.mubr.f32.mxu0 %v424
        %564 = vmatmul.mubr.f32.gmra.mrb[0].mxu0 %v423
        %v565 = vpop.f32.mrb[0].mxu0
        %v566 = vadd.f32 0.0, %v565
        %v567 = vpop.f32.mrb[0].mxu0
        %v568 = vadd.f32 0.0, %v567
        %569 = vmatprep.mubr.f32.mxu0 %v426
        %570 = vmatmul.mubr.f32.gmra.mrb[0].mxu0 %v425
        %v571 = vpop.f32.mrb[0].mxu0
        %v572 = vadd.f32 0.0, %v571
        %v573 = vpop.f32.mrb[0].mxu0
        %v574 = vadd.f32 0.0, %v573
        %575 = vmatprep.mubr.f32.mxu0 %v428
        %576 = vmatmul.mubr.f32.gmra.mrb[0].mxu0 %v427
        %v577 = vpop.f32.mrb[0].mxu0
        %v578 = vadd.f32 0.0, %v577
        %v579 = vpop.f32.mrb[0].mxu0
        %v580 = vadd.f32 0.0, %v579
        %581 = vdwg.mxu0
        %v582 = vadd.f32 %v413, %v560
        %v583 = vadd.f32 %v414, %v562
        %v584 = vadd.f32 %v415, %v566
        %v585 = vadd.f32 %v416, %v568
        %v586 = vadd.f32 %v417, %v572
        %v587 = vadd.f32 %v418, %v574
        %v588 = vadd.f32 %v419, %v578
        %v589 = vadd.f32 %v420, %v580
        %590 = vst [vmem:[#allocation2] sm:$0xff] %v582
        %591 = vst [vmem:[#allocation2 + $0x8] sm:$0xff] %v583
        %592 = vst [vmem:[#allocation2 + $0x10] sm:$0xff] %v584
        %593 = vst [vmem:[#allocation2 + $0x18] sm:$0xff] %v585
        %594 = vst [vmem:[#allocation2 + $0x20] sm:$0xff] %v586
        %595 = vst [vmem:[#allocation2 + $0x28] sm:$0xff] %v587
        %596 = vst [vmem:[#allocation2 + $0x30] sm:$0xff] %v588
        %597 = vst [vmem:[#allocation2 + $0x38] sm:$0xff] %v589
        // Predicated region
        $region60: #{transformer_forward.12} parent=50 // pred_check
          %p598 = pneg %p401
        $region61: #{transformer_forward.12} parent=50 // pred_check_branch
          %600 = sbr.rel (%p598) target = $region63
        $region62: #{transformer_forward.12} parent=50 // pred_region
          %v601 = vld [vmem:[#allocation2] sm:$0xff]
          %v602 = vld [vmem:[#allocation2 + $0x8] sm:$0xff]
          %v603 = vld [vmem:[#allocation2 + $0x10] sm:$0xff]
          %v604 = vld [vmem:[#allocation2 + $0x18] sm:$0xff]
          %v605 = vld [vmem:[#allocation2 + $0x20] sm:$0xff]
          %v606 = vld [vmem:[#allocation2 + $0x28] sm:$0xff]
          %v607 = vld [vmem:[#allocation2 + $0x30] sm:$0xff]
          %v608 = vld [vmem:[#allocation2 + $0x38] sm:$0xff]
          %v609 = vld [vmem:[%s397] sm:$0x3]
          %v611 = vlaneseq
          %v612 = vshrl.u32 %v611, 7
          %v613 = vsub.s32 0, %v612
          %v614 = vrot.slane %v609, %v613
          %v615 = vlaneseq
          %v616 = vshrl.u32 %v615, 7
          %v617 = vsub.s32 1, %v616
          %v618 = vrot.slane %v609, %v617
          %v621 = vadd.f32 %v601, %v614
          %v622 = vadd.f32 %v602, %v618
          %v623 = vadd.f32 %v603, %v614
          %v624 = vadd.f32 %v604, %v618
          %v625 = vadd.f32 %v605, %v614
          %v626 = vadd.f32 %v606, %v618
          %v627 = vadd.f32 %v607, %v614
          %v628 = vadd.f32 %v608, %v618
          %v629 = vmul.f32 %v621, 0.5
          %v630 = vmul.f32 %v622, 0.5
          %v631 = vmul.f32 %v623, 0.5
          %v632 = vmul.f32 %v624, 0.5
          %v633 = vmul.f32 %v625, 0.5
          %v634 = vmul.f32 %v626, 0.5
          %v635 = vmul.f32 %v627, 0.5
          %v636 = vmul.f32 %v628, 0.5
          %v637 = vmul.f32 %v621, 0.044715
          %v638 = vmul.f32 %v622, 0.044715
          %v639 = vmul.f32 %v623, 0.044715
          %v640 = vmul.f32 %v624, 0.044715
          %v641 = vmul.f32 %v625, 0.044715
          %v642 = vmul.f32 %v626, 0.044715
          %v643 = vmul.f32 %v627, 0.044715
          %v644 = vmul.f32 %v628, 0.044715
          %v645 = vmul.f32 %v637, %v621
          %v646 = vmul.f32 %v638, %v622
          %v647 = vmul.f32 %v639, %v623
          %v648 = vmul.f32 %v640, %v624
          %v649 = vmul.f32 %v641, %v625
          %v650 = vmul.f32 %v642, %v626
          %v651 = vmul.f32 %v643, %v627
          %v652 = vmul.f32 %v644, %v628
          %v653 = vmul.f32 %v645, %v621
          %v654 = vmul.f32 %v646, %v622
          %v655 = vmul.f32 %v647, %v623
          %v656 = vmul.f32 %v648, %v624
          %v657 = vmul.f32 %v649, %v625
          %v658 = vmul.f32 %v650, %v626
          %v659 = vmul.f32 %v651, %v627
          %v660 = vmul.f32 %v652, %v628
          %v661 = vadd.f32 %v621, %v653
          %v662 = vadd.f32 %v622, %v654
          %v663 = vadd.f32 %v623, %v655
          %v664 = vadd.f32 %v624, %v656
          %v665 = vadd.f32 %v625, %v657
          %v666 = vadd.f32 %v626, %v658
          %v667 = vadd.f32 %v627, %v659
          %v668 = vadd.f32 %v628, %v660
          %v669 = vmul.f32 %v661, 0.7978846
          %v670 = vmul.f32 %v662, 0.7978846
          %v671 = vmul.f32 %v663, 0.7978846
          %v672 = vmul.f32 %v664, 0.7978846
          %v673 = vmul.f32 %v665, 0.7978846
          %v674 = vmul.f32 %v666, 0.7978846
          %v675 = vmul.f32 %v667, 0.7978846
          %v676 = vmul.f32 %v668, 0.7978846
          %v677 = vtanh.pop %v669
          %v678 = vtanh.pop %v670
          %v679 = vtanh.pop %v671
          %v680 = vtanh.pop %v672
          %v681 = vtanh.pop %v673
          %v682 = vtanh.pop %v674
          %v683 = vtanh.pop %v675
          %v684 = vtanh.pop %v676
          %v685 = vadd.f32 %v677, 1.0
          %v686 = vadd.f32 %v678, 1.0
          %v687 = vadd.f32 %v679, 1.0
          %v688 = vadd.f32 %v680, 1.0
          %v689 = vadd.f32 %v681, 1.0
          %v690 = vadd.f32 %v682, 1.0
          %v691 = vadd.f32 %v683, 1.0
          %v692 = vadd.f32 %v684, 1.0
          %v693 = vmul.f32 %v629, %v685
          %v694 = vmul.f32 %v630, %v686
          %v695 = vmul.f32 %v631, %v687
          %v696 = vmul.f32 %v632, %v688
          %v697 = vmul.f32 %v633, %v689
          %v698 = vmul.f32 %v634, %v690
          %v699 = vmul.f32 %v635, %v691
          %v700 = vmul.f32 %v636, %v692
          %701 = vst [vmem:[%s379] sm:$0xff] %v693
          %702 = vst [vmem:[%s379 + $0x8] sm:$0xff] %v694
          %703 = vst [vmem:[%s379 + $0x10] sm:$0xff] %v695
          %704 = vst [vmem:[%s379 + $0x18] sm:$0xff] %v696
          %705 = vst [vmem:[%s379 + $0x20] sm:$0xff] %v697
          %706 = vst [vmem:[%s379 + $0x28] sm:$0xff] %v698
          %707 = vst [vmem:[%s379 + $0x30] sm:$0xff] %v699
          %708 = vst [vmem:[%s379 + $0x38] sm:$0xff] %v700
        $region63: #{transformer_forward.12} parent=50 // pred_fallthru
          _
        %s709 = sand.u32 %s125, 1
        %s710 = sand.u32 %s125, 1
        %s711 = smul.addr %s710, 64
        %s712 = scalar_lea.vmem [#allocation4], %s711
        // Predicated region
        $region64: #{transformer_forward.12} parent=50 // pred_check
          %p713 = pneg %p135
        $region65: #{transformer_forward.12} parent=50 // pred_check_branch
          %715 = sbr.rel (%p713) target = $region67
        $region66: #{transformer_forward.12} parent=50 // pred_region
          %s716 = smul.u32 4, %s19
          %s717 = smul.u32 2, %s20
          %s718 = smul.addr %s716, 4
          %s719 = sadd.s32 %s717, %s718
          %s720 = smul.addr %s719, 8
          %s721 = scalar_lea.vmem %s3, %s720
          // Predicated region
          $region68: #{transformer_forward.12} parent=66 // pred_check
            _
          $region69: #{transformer_forward.12} parent=66 // pred_check_branch
            %723 = sbr.rel (0) target = $region71
          $region70: #{transformer_forward.12} parent=66 // pred_region
            // Predicated region
            $region72: #{transformer_forward.12} parent=70 // pred_check
              _
            $region73: #{transformer_forward.12} parent=70 // pred_check_branch
              %725 = sbr.rel (0) target = $region75
            $region74: #{transformer_forward.12} parent=70 // pred_region
              loop: start=0, step=1, limit=1
              $region76: #{transformer_forward.12} parent=74 // loop_pre_header
                _
              $region77: #{transformer_forward.12} parent=74 // loop_header
                %s727 = sphi 0, %s731
                %p728 = scmp.ge.s32.totalorder %s727, 1
                %s732 = sphi %s712, %s712
                %s733 = sphi %s721, %s721
              $region78: #{transformer_forward.12} parent=74 // loop_header_branch
                %730 = sbr.rel (%p728) target = $region82
              $region79: #{transformer_forward.12} parent=74 // loop_body
                %v734 = vld [vmem:[%s732] sm:$0xff]
                %735 = vst [vmem:[%s733] sm:$0xff] %v734
                %v736 = vld [vmem:[%s732 + $0x8] sm:$0xff]
                %737 = vst [vmem:[%s733 + $0x8] sm:$0xff] %v736
                %v738 = vld [vmem:[%s732 + $0x10] sm:$0xff]
                %739 = vst [vmem:[%s733 + $0x20] sm:$0xff] %v738
                %v740 = vld [vmem:[%s732 + $0x18] sm:$0xff]
                %741 = vst [vmem:[%s733 + $0x28] sm:$0xff] %v740
                %v742 = vld [vmem:[%s732 + $0x20] sm:$0xff]
                %743 = vst [vmem:[%s733 + $0x40] sm:$0xff] %v742
                %v744 = vld [vmem:[%s732 + $0x28] sm:$0xff]
                %745 = vst [vmem:[%s733 + $0x48] sm:$0xff] %v744
                %v746 = vld [vmem:[%s732 + $0x30] sm:$0xff]
                %747 = vst [vmem:[%s733 + $0x60] sm:$0xff] %v746
                %v748 = vld [vmem:[%s732 + $0x38] sm:$0xff]
                %749 = vst [vmem:[%s733 + $0x68] sm:$0xff] %v748
              $region80: #{transformer_forward.12} parent=74 // loop_footer
                %s731 = sadd.s32 1, %s727
              $region81: #{transformer_forward.12} parent=74 // loop_footer_branch
                %726 = sbr.rel target = $region77
              $region82: #{transformer_forward.12} parent=74 // loop_exit
                _
            $region75: #{transformer_forward.12} parent=70 // pred_fallthru
              _
            // Predicated region
            $region83: #{transformer_forward.12} parent=70 // pred_check
              _
            $region84: #{transformer_forward.12} parent=70 // pred_check_branch
              %751 = sbr.rel target = $region86
            $region85: #{transformer_forward.12} parent=70 // pred_region
              _
            $region86: #{transformer_forward.12} parent=70 // pred_fallthru
              _
          $region71: #{transformer_forward.12} parent=66 // pred_fallthru
            _
          %752 = vnop
        $region67: #{transformer_forward.12} parent=50 // pred_fallthru
          _
      $region51: #{transformer_forward.12} parent=5 // pred_fallthru
        _
      %p753 = scmp.le.s32.totalorder 2, %s9
      // Predicated region
      $region87: #{transformer_forward.12} parent=5 // pred_check
        %p754 = pneg %p753
      $region88: #{transformer_forward.12} parent=5 // pred_check_branch
        %756 = sbr.rel (%p754) target = $region90
      $region89: #{transformer_forward.12} parent=5 // pred_region
        %s757 = ssub.s32 %s9, 2
        // Predicated region
        $region91: #{transformer_forward.12} parent=89 // pred_check
          %p758 = pneg %p141
        $region92: #{transformer_forward.12} parent=89 // pred_check_branch
          %760 = sbr.rel (%p758) target = $region94
        $region93: #{transformer_forward.12} parent=89 // pred_region
          %s761 = sand.u32 %s126, 1
          %s762 = sand.u32 %s126, 1
          %s763 = smul.addr %s762, 64
          %s764 = scalar_lea.vmem [#allocation4], %s763
        $region94: #{transformer_forward.12} parent=89 // pred_fallthru
          _
      $region90: #{transformer_forward.12} parent=5 // pred_fallthru
        _
    $region6: #{transformer_forward.12} parent=1 // loop_footer
      %s13 = sadd.s32 1, %s9
    $region7: #{transformer_forward.12} parent=1 // loop_footer_branch
      %8 = sbr.rel target = $region3
    $region8: #{transformer_forward.12} parent=1 // loop_exit
      _

// kernel: transformer_forward.13
$region0: #{transformer_forward.13}
  #allocation0 [shape = 'u32[]', space=smem, size = 0x4, offset = 0x4, fixed_abs, tag = 'smem constant byte address 0x4 - core index']
  #allocation1 [shape = 'u32[144,128]{1,0:T(1,128)}', space=vmem, size = 0x12000, scoped, tag = 'internal scratch']
  #allocation2 [shape = 'f32[32,256]{1,0:T(8,128)}', space=vmem, size = 0x8000, scoped, tag = 'scratch operand']
  %s0 = inlined_call_operand.vmem [shape: f32[32,512], index: 0, kind: input, shape index: {}]
  %s1 = inlined_call_operand.vmem [shape: f32[512,256], index: 1, kind: input, shape index: {}]
  %s2 = inlined_call_operand.vmem [shape: f32[1,256], index: 2, kind: input, shape index: {}]
  %s3 = inlined_call_operand.vmem [shape: f32[32,256], index: 3, kind: input, shape index: {}]
  %s4 = inlined_call_operand.hbm [shape: f32[32,256], index: 4, kind: output, shape index: {}]
  %s5 = sld [smem:[#allocation0]]
  $region34: #{transformer_forward.13} parent=0
    _
  %s7 = ssub.s32 1, %s5
  %s8 = scalar_select 0, %s7, %s5
  $region1: #{transformer_forward.13} parent=0
    #allocation3 [shape = 'u8[32768]{0}', space=vmem, size = 0x8000, scoped, tag = 'output window, operand 0, single buffered']
    #allocation4 [shape = 's32[1]{0}', space=sflag, size = 0x4, scoped, tag = 'scoped memory for transformer_forward.13']
    %9 = vsyncpa [#allocation4], 0
    // Predicated region
    $region2: #{transformer_forward.13} parent=1 // pred_check
      _
    $region3: #{transformer_forward.13} parent=1 // pred_check_branch
      %11 = sbr.rel (0) target = $region5
    $region4: #{transformer_forward.13} parent=1 // pred_region
      _
    $region5: #{transformer_forward.13} parent=1 // pred_fallthru
      _
    // Predicated region
    $region6: #{transformer_forward.13} parent=1 // pred_check
      _
    $region7: #{transformer_forward.13} parent=1 // pred_check_branch
      %13 = sbr.rel (0) target = $region9
    $region8: #{transformer_forward.13} parent=1 // pred_region
      _
    $region9: #{transformer_forward.13} parent=1 // pred_fallthru
      _
    // Predicated region
    $region10: #{transformer_forward.13} parent=1 // pred_check
      _
    $region11: #{transformer_forward.13} parent=1 // pred_check_branch
      %15 = sbr.rel (0) target = $region13
    $region12: #{transformer_forward.13} parent=1 // pred_region
      _
    $region13: #{transformer_forward.13} parent=1 // pred_fallthru
      _
    // Predicated region
    $region14: #{transformer_forward.13} parent=1 // pred_check
      _
    $region15: #{transformer_forward.13} parent=1 // pred_check_branch
      %17 = sbr.rel (0) target = $region17
    $region16: #{transformer_forward.13} parent=1 // pred_region
      _
    $region17: #{transformer_forward.13} parent=1 // pred_fallthru
      _
    %p18 = scmp.eq.s32.totalorder 0, 0
    // Predicated region
    $region18: #{transformer_forward.13} parent=1 // pred_check
      %p19 = pneg %p18
    $region19: #{transformer_forward.13} parent=1 // pred_check_branch
      %21 = sbr.rel (%p19) target = $region21
    $region20: #{transformer_forward.13} parent=1 // pred_region
      %22 = vst [vmem:[#allocation2] sm:$0xff] 0.0
      %23 = vst [vmem:[#allocation2 + $0x8] sm:$0xff] 0.0
      %24 = vst [vmem:[#allocation2 + $0x10] sm:$0xff] 0.0
      %25 = vst [vmem:[#allocation2 + $0x18] sm:$0xff] 0.0
      %26 = vst [vmem:[#allocation2 + $0x20] sm:$0xff] 0.0
      %27 = vst [vmem:[#allocation2 + $0x28] sm:$0xff] 0.0
      %28 = vst [vmem:[#allocation2 + $0x30] sm:$0xff] 0.0
      %29 = vst [vmem:[#allocation2 + $0x38] sm:$0xff] 0.0
    $region21: #{transformer_forward.13} parent=1 // pred_fallthru
      _
    %v30 = vld [vmem:[#allocation2] sm:$0xff]
    %v31 = vld [vmem:[#allocation2 + $0x8] sm:$0xff]
    %v32 = vld [vmem:[#allocation2 + $0x10] sm:$0xff]
    %v33 = vld [vmem:[#allocation2 + $0x18] sm:$0xff]
    %v34 = vld [vmem:[#allocation2 + $0x20] sm:$0xff]
    %v35 = vld [vmem:[#allocation2 + $0x28] sm:$0xff]
    %v36 = vld [vmem:[#allocation2 + $0x30] sm:$0xff]
    %v37 = vld [vmem:[#allocation2 + $0x38] sm:$0xff]
    %v38 = vld [vmem:[%s0] sm:$0xff]
    %v39 = vld [vmem:[%s0 + $0x8] sm:$0xff]
    %v40 = vld [vmem:[%s0 + $0x10] sm:$0xff]
    %v41 = vld [vmem:[%s0 + $0x18] sm:$0xff]
    %v42 = vld [vmem:[%s0 + $0x20] sm:$0xff]
    %v43 = vld [vmem:[%s0 + $0x28] sm:$0xff]
    %v44 = vld [vmem:[%s0 + $0x30] sm:$0xff]
    %v45 = vld [vmem:[%s0 + $0x38] sm:$0xff]
    %v46 = vld [vmem:[%s0 + $0x40] sm:$0xff]
    %v47 = vld [vmem:[%s0 + $0x48] sm:$0xff]
    %v48 = vld [vmem:[%s0 + $0x50] sm:$0xff]
    %v49 = vld [vmem:[%s0 + $0x58] sm:$0xff]
    %v50 = vld [vmem:[%s0 + $0x60] sm:$0xff]
    %v51 = vld [vmem:[%s0 + $0x68] sm:$0xff]
    %v52 = vld [vmem:[%s0 + $0x70] sm:$0xff]
    %v53 = vld [vmem:[%s0 + $0x78] sm:$0xff]
    %v54 = vld [vmem:[%s1] sm:$0xff]
    %v55 = vld [vmem:[%s1 + $0x8] sm:$0xff]
    %v56 = vld [vmem:[%s1 + $0x10] sm:$0xff]
    %v57 = vld [vmem:[%s1 + $0x18] sm:$0xff]
    %v58 = vld [vmem:[%s1 + $0x20] sm:$0xff]
    %v59 = vld [vmem:[%s1 + $0x28] sm:$0xff]
    %v60 = vld [vmem:[%s1 + $0x30] sm:$0xff]
    %v61 = vld [vmem:[%s1 + $0x38] sm:$0xff]
    %v62 = vld [vmem:[%s1 + $0x40] sm:$0xff]
    %v63 = vld [vmem:[%s1 + $0x48] sm:$0xff]
    %v64 = vld [vmem:[%s1 + $0x50] sm:$0xff]
    %v65 = vld [vmem:[%s1 + $0x58] sm:$0xff]
    %v66 = vld [vmem:[%s1 + $0x60] sm:$0xff]
    %v67 = vld [vmem:[%s1 + $0x68] sm:$0xff]
    %v68 = vld [vmem:[%s1 + $0x70] sm:$0xff]
    %v69 = vld [vmem:[%s1 + $0x78] sm:$0xff]
    %v70 = vld [vmem:[%s1 + $0x80] sm:$0xff]
    %v71 = vld [vmem:[%s1 + $0x88] sm:$0xff]
    %v72 = vld [vmem:[%s1 + $0x90] sm:$0xff]
    %v73 = vld [vmem:[%s1 + $0x98] sm:$0xff]
    %v74 = vld [vmem:[%s1 + $0xa0] sm:$0xff]
    %v75 = vld [vmem:[%s1 + $0xa8] sm:$0xff]
    %v76 = vld [vmem:[%s1 + $0xb0] sm:$0xff]
    %v77 = vld [vmem:[%s1 + $0xb8] sm:$0xff]
    %v78 = vld [vmem:[%s1 + $0xc0] sm:$0xff]
    %v79 = vld [vmem:[%s1 + $0xc8] sm:$0xff]
    %v80 = vld [vmem:[%s1 + $0xd0] sm:$0xff]
    %v81 = vld [vmem:[%s1 + $0xd8] sm:$0xff]
    %v82 = vld [vmem:[%s1 + $0xe0] sm:$0xff]
    %v83 = vld [vmem:[%s1 + $0xe8] sm:$0xff]
    %v84 = vld [vmem:[%s1 + $0xf0] sm:$0xff]
    %v85 = vld [vmem:[%s1 + $0xf8] sm:$0xff]
    %v86 = vld [vmem:[%s1 + $0x100] sm:$0xff]
    %v87 = vld [vmem:[%s1 + $0x108] sm:$0xff]
    %v88 = vld [vmem:[%s1 + $0x110] sm:$0xff]
    %v89 = vld [vmem:[%s1 + $0x118] sm:$0xff]
    %v90 = vld [vmem:[%s1 + $0x120] sm:$0xff]
    %v91 = vld [vmem:[%s1 + $0x128] sm:$0xff]
    %v92 = vld [vmem:[%s1 + $0x130] sm:$0xff]
    %v93 = vld [vmem:[%s1 + $0x138] sm:$0xff]
    %v94 = vld [vmem:[%s1 + $0x140] sm:$0xff]
    %v95 = vld [vmem:[%s1 + $0x148] sm:$0xff]
    %v96 = vld [vmem:[%s1 + $0x150] sm:$0xff]
    %v97 = vld [vmem:[%s1 + $0x158] sm:$0xff]
    %v98 = vld [vmem:[%s1 + $0x160] sm:$0xff]
    %v99 = vld [vmem:[%s1 + $0x168] sm:$0xff]
    %v100 = vld [vmem:[%s1 + $0x170] sm:$0xff]
    %v101 = vld [vmem:[%s1 + $0x178] sm:$0xff]
    %v102 = vld [vmem:[%s1 + $0x180] sm:$0xff]
    %v103 = vld [vmem:[%s1 + $0x188] sm:$0xff]
    %v104 = vld [vmem:[%s1 + $0x190] sm:$0xff]
    %v105 = vld [vmem:[%s1 + $0x198] sm:$0xff]
    %v106 = vld [vmem:[%s1 + $0x1a0] sm:$0xff]
    %v107 = vld [vmem:[%s1 + $0x1a8] sm:$0xff]
    %v108 = vld [vmem:[%s1 + $0x1b0] sm:$0xff]
    %v109 = vld [vmem:[%s1 + $0x1b8] sm:$0xff]
    %v110 = vld [vmem:[%s1 + $0x1c0] sm:$0xff]
    %v111 = vld [vmem:[%s1 + $0x1c8] sm:$0xff]
    %v112 = vld [vmem:[%s1 + $0x1d0] sm:$0xff]
    %v113 = vld [vmem:[%s1 + $0x1d8] sm:$0xff]
    %v114 = vld [vmem:[%s1 + $0x1e0] sm:$0xff]
    %v115 = vld [vmem:[%s1 + $0x1e8] sm:$0xff]
    %v116 = vld [vmem:[%s1 + $0x1f0] sm:$0xff]
    %v117 = vld [vmem:[%s1 + $0x1f8] sm:$0xff]
    %v118 = vld [vmem:[%s1 + $0x200] sm:$0xff]
    %v119 = vld [vmem:[%s1 + $0x208] sm:$0xff]
    %v120 = vld [vmem:[%s1 + $0x210] sm:$0xff]
    %v121 = vld [vmem:[%s1 + $0x218] sm:$0xff]
    %v122 = vld [vmem:[%s1 + $0x220] sm:$0xff]
    %v123 = vld [vmem:[%s1 + $0x228] sm:$0xff]
    %v124 = vld [vmem:[%s1 + $0x230] sm:$0xff]
    %v125 = vld [vmem:[%s1 + $0x238] sm:$0xff]
    %v126 = vld [vmem:[%s1 + $0x240] sm:$0xff]
    %v127 = vld [vmem:[%s1 + $0x248] sm:$0xff]
    %v128 = vld [vmem:[%s1 + $0x250] sm:$0xff]
    %v129 = vld [vmem:[%s1 + $0x258] sm:$0xff]
    %v130 = vld [vmem:[%s1 + $0x260] sm:$0xff]
    %v131 = vld [vmem:[%s1 + $0x268] sm:$0xff]
    %v132 = vld [vmem:[%s1 + $0x270] sm:$0xff]
    %v133 = vld [vmem:[%s1 + $0x278] sm:$0xff]
    %v134 = vld [vmem:[%s1 + $0x280] sm:$0xff]
    %v135 = vld [vmem:[%s1 + $0x288] sm:$0xff]
    %v136 = vld [vmem:[%s1 + $0x290] sm:$0xff]
    %v137 = vld [vmem:[%s1 + $0x298] sm:$0xff]
    %v138 = vld [vmem:[%s1 + $0x2a0] sm:$0xff]
    %v139 = vld [vmem:[%s1 + $0x2a8] sm:$0xff]
    %v140 = vld [vmem:[%s1 + $0x2b0] sm:$0xff]
    %v141 = vld [vmem:[%s1 + $0x2b8] sm:$0xff]
    %v142 = vld [vmem:[%s1 + $0x2c0] sm:$0xff]
    %v143 = vld [vmem:[%s1 + $0x2c8] sm:$0xff]
    %v144 = vld [vmem:[%s1 + $0x2d0] sm:$0xff]
    %v145 = vld [vmem:[%s1 + $0x2d8] sm:$0xff]
    %v146 = vld [vmem:[%s1 + $0x2e0] sm:$0xff]
    %v147 = vld [vmem:[%s1 + $0x2e8] sm:$0xff]
    %v148 = vld [vmem:[%s1 + $0x2f0] sm:$0xff]
    %v149 = vld [vmem:[%s1 + $0x2f8] sm:$0xff]
    %v150 = vld [vmem:[%s1 + $0x300] sm:$0xff]
    %v151 = vld [vmem:[%s1 + $0x308] sm:$0xff]
    %v152 = vld [vmem:[%s1 + $0x310] sm:$0xff]
    %v153 = vld [vmem:[%s1 + $0x318] sm:$0xff]
    %v154 = vld [vmem:[%s1 + $0x320] sm:$0xff]
    %v155 = vld [vmem:[%s1 + $0x328] sm:$0xff]
    %v156 = vld [vmem:[%s1 + $0x330] sm:$0xff]
    %v157 = vld [vmem:[%s1 + $0x338] sm:$0xff]
    %v158 = vld [vmem:[%s1 + $0x340] sm:$0xff]
    %v159 = vld [vmem:[%s1 + $0x348] sm:$0xff]
    %v160 = vld [vmem:[%s1 + $0x350] sm:$0xff]
    %v161 = vld [vmem:[%s1 + $0x358] sm:$0xff]
    %v162 = vld [vmem:[%s1 + $0x360] sm:$0xff]
    %v163 = vld [vmem:[%s1 + $0x368] sm:$0xff]
    %v164 = vld [vmem:[%s1 + $0x370] sm:$0xff]
    %v165 = vld [vmem:[%s1 + $0x378] sm:$0xff]
    %v166 = vld [vmem:[%s1 + $0x380] sm:$0xff]
    %v167 = vld [vmem:[%s1 + $0x388] sm:$0xff]
    %v168 = vld [vmem:[%s1 + $0x390] sm:$0xff]
    %v169 = vld [vmem:[%s1 + $0x398] sm:$0xff]
    %v170 = vld [vmem:[%s1 + $0x3a0] sm:$0xff]
    %v171 = vld [vmem:[%s1 + $0x3a8] sm:$0xff]
    %v172 = vld [vmem:[%s1 + $0x3b0] sm:$0xff]
    %v173 = vld [vmem:[%s1 + $0x3b8] sm:$0xff]
    %v174 = vld [vmem:[%s1 + $0x3c0] sm:$0xff]
    %v175 = vld [vmem:[%s1 + $0x3c8] sm:$0xff]
    %v176 = vld [vmem:[%s1 + $0x3d0] sm:$0xff]
    %v177 = vld [vmem:[%s1 + $0x3d8] sm:$0xff]
    %v178 = vld [vmem:[%s1 + $0x3e0] sm:$0xff]
    %v179 = vld [vmem:[%s1 + $0x3e8] sm:$0xff]
    %v180 = vld [vmem:[%s1 + $0x3f0] sm:$0xff]
    %v181 = vld [vmem:[%s1 + $0x3f8] sm:$0xff]
    %182 = vmatprep.subr.mxu0 %v55
    %183 = vmatpush1.msra.mxu0 %v54
    %184 = vmatprep.subr.mxu0 %v57
    %185 = vmatpush1.msra.mxu0 %v56
    %186 = vmatprep.subr.mxu0 %v59
    %187 = vmatpush1.msra.mxu0 %v58
    %188 = vmatprep.subr.mxu0 %v61
    %189 = vmatpush1.msra.mxu0 %v60
    %190 = vmatprep.subr.mxu0 %v63
    %191 = vmatpush1.msra.mxu0 %v62
    %192 = vmatprep.subr.mxu0 %v65
    %193 = vmatpush1.msra.mxu0 %v64
    %194 = vmatprep.subr.mxu0 %v67
    %195 = vmatpush1.msra.mxu0 %v66
    %196 = vmatprep.subr.mxu0 %v69
    %197 = vmatpush1.msra.mxu0 %v68
    %198 = vmatprep.subr.mxu0 %v71
    %199 = vmatpush1.msra.mxu0 %v70
    %200 = vmatprep.subr.mxu0 %v73
    %201 = vmatpush1.msra.mxu0 %v72
    %202 = vmatprep.subr.mxu0 %v75
    %203 = vmatpush1.msra.mxu0 %v74
    %204 = vmatprep.subr.mxu0 %v77
    %205 = vmatpush1.msra.mxu0 %v76
    %206 = vmatprep.subr.mxu0 %v79
    %207 = vmatpush1.msra.mxu0 %v78
    %208 = vmatprep.subr.mxu0 %v81
    %209 = vmatpush1.msra.mxu0 %v80
    %210 = vmatprep.subr.mxu0 %v83
    %211 = vmatpush1.msra.mxu0 %v82
    %212 = vmatprep.subr.mxu0 %v85
    %213 = vmatpush1.msra.mxu0 %v84
    %214 = vmatprep.subr.mxu0 %v87
    %215 = vmatpush1.msra.mxu0 %v86
    %216 = vmatprep.subr.mxu0 %v89
    %217 = vmatpush1.msra.mxu0 %v88
    %218 = vmatprep.subr.mxu0 %v91
    %219 = vmatpush1.msra.mxu0 %v90
    %220 = vmatprep.subr.mxu0 %v93
    %221 = vmatpush1.msra.mxu0 %v92
    %222 = vmatprep.subr.mxu0 %v95
    %223 = vmatpush1.msra.mxu0 %v94
    %224 = vmatprep.subr.mxu0 %v97
    %225 = vmatpush1.msra.mxu0 %v96
    %226 = vmatprep.subr.mxu0 %v99
    %227 = vmatpush1.msra.mxu0 %v98
    %228 = vmatprep.subr.mxu0 %v101
    %229 = vmatpush1.msra.mxu0 %v100
    %230 = vmatprep.subr.mxu0 %v103
    %231 = vmatpush1.msra.mxu0 %v102
    %232 = vmatprep.subr.mxu0 %v105
    %233 = vmatpush1.msra.mxu0 %v104
    %234 = vmatprep.subr.mxu0 %v107
    %235 = vmatpush1.msra.mxu0 %v106
    %236 = vmatprep.subr.mxu0 %v109
    %237 = vmatpush1.msra.mxu0 %v108
    %238 = vmatprep.subr.mxu0 %v111
    %239 = vmatpush1.msra.mxu0 %v110
    %240 = vmatprep.subr.mxu0 %v113
    %241 = vmatpush1.msra.mxu0 %v112
    %242 = vmatprep.subr.mxu0 %v115
    %243 = vmatpush1.msra.mxu0 %v114
    %244 = vmatprep.subr.mxu0 %v117
    %245 = vmatpush1.msra.mxu0 %v116
    %246 = vmatprep.mubr.f32.mxu0 %v39
    %247 = vmatmul.mubr.f32.gmra.mrb[0].mxu0 %v38
    %v248 = vpop.f32.mrb[0].mxu0
    %v249 = vadd.f32 0.0, %v248
    %v250 = vpop.f32.mrb[0].mxu0
    %v251 = vadd.f32 0.0, %v250
    %252 = vmatprep.mubr.f32.mxu0 %v43
    %253 = vmatmul.mubr.f32.gmra.mrb[0].mxu0 %v42
    %v254 = vpop.f32.mrb[0].mxu0
    %v255 = vadd.f32 0.0, %v254
    %v256 = vpop.f32.mrb[0].mxu0
    %v257 = vadd.f32 0.0, %v256
    %258 = vmatprep.mubr.f32.mxu0 %v47
    %259 = vmatmul.mubr.f32.gmra.mrb[0].mxu0 %v46
    %v260 = vpop.f32.mrb[0].mxu0
    %v261 = vadd.f32 0.0, %v260
    %v262 = vpop.f32.mrb[0].mxu0
    %v263 = vadd.f32 0.0, %v262
    %264 = vmatprep.mubr.f32.mxu0 %v51
    %265 = vmatmul.mubr.f32.gmra.mrb[0].mxu0 %v50
    %v266 = vpop.f32.mrb[0].mxu0
    %v267 = vadd.f32 0.0, %v266
    %v268 = vpop.f32.mrb[0].mxu0
    %v269 = vadd.f32 0.0, %v268
    %270 = vdwg.mxu0
    %271 = vmatprep.subr.mxu0 %v119
    %272 = vmatpush1.msra.mxu0 %v118
    %273 = vmatprep.subr.mxu0 %v121
    %274 = vmatpush1.msra.mxu0 %v120
    %275 = vmatprep.subr.mxu0 %v123
    %276 = vmatpush1.msra.mxu0 %v122
    %277 = vmatprep.subr.mxu0 %v125
    %278 = vmatpush1.msra.mxu0 %v124
    %279 = vmatprep.subr.mxu0 %v127
    %280 = vmatpush1.msra.mxu0 %v126
    %281 = vmatprep.subr.mxu0 %v129
    %282 = vmatpush1.msra.mxu0 %v128
    %283 = vmatprep.subr.mxu0 %v131
    %284 = vmatpush1.msra.mxu0 %v130
    %285 = vmatprep.subr.mxu0 %v133
    %286 = vmatpush1.msra.mxu0 %v132
    %287 = vmatprep.subr.mxu0 %v135
    %288 = vmatpush1.msra.mxu0 %v134
    %289 = vmatprep.subr.mxu0 %v137
    %290 = vmatpush1.msra.mxu0 %v136
    %291 = vmatprep.subr.mxu0 %v139
    %292 = vmatpush1.msra.mxu0 %v138
    %293 = vmatprep.subr.mxu0 %v141
    %294 = vmatpush1.msra.mxu0 %v140
    %295 = vmatprep.subr.mxu0 %v143
    %296 = vmatpush1.msra.mxu0 %v142
    %297 = vmatprep.subr.mxu0 %v145
    %298 = vmatpush1.msra.mxu0 %v144
    %299 = vmatprep.subr.mxu0 %v147
    %300 = vmatpush1.msra.mxu0 %v146
    %301 = vmatprep.subr.mxu0 %v149
    %302 = vmatpush1.msra.mxu0 %v148
    %303 = vmatprep.subr.mxu0 %v151
    %304 = vmatpush1.msra.mxu0 %v150
    %305 = vmatprep.subr.mxu0 %v153
    %306 = vmatpush1.msra.mxu0 %v152
    %307 = vmatprep.subr.mxu0 %v155
    %308 = vmatpush1.msra.mxu0 %v154
    %309 = vmatprep.subr.mxu0 %v157
    %310 = vmatpush1.msra.mxu0 %v156
    %311 = vmatprep.subr.mxu0 %v159
    %312 = vmatpush1.msra.mxu0 %v158
    %313 = vmatprep.subr.mxu0 %v161
    %314 = vmatpush1.msra.mxu0 %v160
    %315 = vmatprep.subr.mxu0 %v163
    %316 = vmatpush1.msra.mxu0 %v162
    %317 = vmatprep.subr.mxu0 %v165
    %318 = vmatpush1.msra.mxu0 %v164
    %319 = vmatprep.subr.mxu0 %v167
    %320 = vmatpush1.msra.mxu0 %v166
    %321 = vmatprep.subr.mxu0 %v169
    %322 = vmatpush1.msra.mxu0 %v168
    %323 = vmatprep.subr.mxu0 %v171
    %324 = vmatpush1.msra.mxu0 %v170
    %325 = vmatprep.subr.mxu0 %v173
    %326 = vmatpush1.msra.mxu0 %v172
    %327 = vmatprep.subr.mxu0 %v175
    %328 = vmatpush1.msra.mxu0 %v174
    %329 = vmatprep.subr.mxu0 %v177
    %330 = vmatpush1.msra.mxu0 %v176
    %331 = vmatprep.subr.mxu0 %v179
    %332 = vmatpush1.msra.mxu0 %v178
    %333 = vmatprep.subr.mxu0 %v181
    %334 = vmatpush1.msra.mxu0 %v180
    %335 = vmatprep.mubr.f32.mxu0 %v41
    %336 = vmatmul.mubr.f32.gmra.mrb[0].mxu0 %v40
    %v337 = vpop.f32.mrb[0].mxu0
    %v338 = vadd.f32 %v249, %v337
    %v339 = vpop.f32.mrb[0].mxu0
    %v340 = vadd.f32 %v251, %v339
    %341 = vmatprep.mubr.f32.mxu0 %v45
    %342 = vmatmul.mubr.f32.gmra.mrb[0].mxu0 %v44
    %v343 = vpop.f32.mrb[0].mxu0
    %v344 = vadd.f32 %v255, %v343
    %v345 = vpop.f32.mrb[0].mxu0
    %v346 = vadd.f32 %v257, %v345
    %347 = vmatprep.mubr.f32.mxu0 %v49
    %348 = vmatmul.mubr.f32.gmra.mrb[0].mxu0 %v48
    %v349 = vpop.f32.mrb[0].mxu0
    %v350 = vadd.f32 %v261, %v349
    %v351 = vpop.f32.mrb[0].mxu0
    %v352 = vadd.f32 %v263, %v351
    %353 = vmatprep.mubr.f32.mxu0 %v53
    %354 = vmatmul.mubr.f32.gmra.mrb[0].mxu0 %v52
    %v355 = vpop.f32.mrb[0].mxu0
    %v356 = vadd.f32 %v267, %v355
    %v357 = vpop.f32.mrb[0].mxu0
    %v358 = vadd.f32 %v269, %v357
    %359 = vdwg.mxu0
    %v360 = vadd.f32 %v30, %v338
    %v361 = vadd.f32 %v31, %v340
    %v362 = vadd.f32 %v32, %v344
    %v363 = vadd.f32 %v33, %v346
    %v364 = vadd.f32 %v34, %v350
    %v365 = vadd.f32 %v35, %v352
    %v366 = vadd.f32 %v36, %v356
    %v367 = vadd.f32 %v37, %v358
    %368 = vst [vmem:[#allocation2] sm:$0xff] %v360
    %369 = vst [vmem:[#allocation2 + $0x8] sm:$0xff] %v361
    %370 = vst [vmem:[#allocation2 + $0x10] sm:$0xff] %v362
    %371 = vst [vmem:[#allocation2 + $0x18] sm:$0xff] %v363
    %372 = vst [vmem:[#allocation2 + $0x20] sm:$0xff] %v364
    %373 = vst [vmem:[#allocation2 + $0x28] sm:$0xff] %v365
    %374 = vst [vmem:[#allocation2 + $0x30] sm:$0xff] %v366
    %375 = vst [vmem:[#allocation2 + $0x38] sm:$0xff] %v367
    // Predicated region
    $region22: #{transformer_forward.13} parent=1 // pred_check
      %p376 = pneg %p18
    $region23: #{transformer_forward.13} parent=1 // pred_check_branch
      %378 = sbr.rel (%p376) target = $region25
    $region24: #{transformer_forward.13} parent=1 // pred_region
      %v379 = vld [vmem:[#allocation2] sm:$0xff]
      %v380 = vld [vmem:[#allocation2 + $0x8] sm:$0xff]
      %v381 = vld [vmem:[#allocation2 + $0x10] sm:$0xff]
      %v382 = vld [vmem:[#allocation2 + $0x18] sm:$0xff]
      %v383 = vld [vmem:[#allocation2 + $0x20] sm:$0xff]
      %v384 = vld [vmem:[#allocation2 + $0x28] sm:$0xff]
      %v385 = vld [vmem:[#allocation2 + $0x30] sm:$0xff]
      %v386 = vld [vmem:[#allocation2 + $0x38] sm:$0xff]
      %v387 = vld [vmem:[%s2] sm:$0x3]
      %v389 = vlaneseq
      %v390 = vshrl.u32 %v389, 7
      %v391 = vsub.s32 0, %v390
      %v392 = vrot.slane %v387, %v391
      %v393 = vlaneseq
      %v394 = vshrl.u32 %v393, 7
      %v395 = vsub.s32 1, %v394
      %v396 = vrot.slane %v387, %v395
      %v399 = vadd.f32 %v379, %v392
      %v400 = vadd.f32 %v380, %v396
      %v401 = vadd.f32 %v381, %v392
      %v402 = vadd.f32 %v382, %v396
      %v403 = vadd.f32 %v383, %v392
      %v404 = vadd.f32 %v384, %v396
      %v405 = vadd.f32 %v385, %v392
      %v406 = vadd.f32 %v386, %v396
      %v407 = vld [vmem:[%s3] sm:$0xff]
      %v408 = vld [vmem:[%s3 + $0x8] sm:$0xff]
      %v409 = vld [vmem:[%s3 + $0x10] sm:$0xff]
      %v410 = vld [vmem:[%s3 + $0x18] sm:$0xff]
      %v411 = vld [vmem:[%s3 + $0x20] sm:$0xff]
      %v412 = vld [vmem:[%s3 + $0x28] sm:$0xff]
      %v413 = vld [vmem:[%s3 + $0x30] sm:$0xff]
      %v414 = vld [vmem:[%s3 + $0x38] sm:$0xff]
      %v415 = vadd.f32 %v399, %v407
      %v416 = vadd.f32 %v400, %v408
      %v417 = vadd.f32 %v401, %v409
      %v418 = vadd.f32 %v402, %v410
      %v419 = vadd.f32 %v403, %v411
      %v420 = vadd.f32 %v404, %v412
      %v421 = vadd.f32 %v405, %v413
      %v422 = vadd.f32 %v406, %v414
      %423 = vst [vmem:[#allocation3] sm:$0xff] %v415
      %424 = vst [vmem:[#allocation3 + $0x8] sm:$0xff] %v416
      %425 = vst [vmem:[#allocation3 + $0x10] sm:$0xff] %v417
      %426 = vst [vmem:[#allocation3 + $0x18] sm:$0xff] %v418
      %427 = vst [vmem:[#allocation3 + $0x20] sm:$0xff] %v419
      %428 = vst [vmem:[#allocation3 + $0x28] sm:$0xff] %v420
      %429 = vst [vmem:[#allocation3 + $0x30] sm:$0xff] %v421
      %430 = vst [vmem:[#allocation3 + $0x38] sm:$0xff] %v422
    $region25: #{transformer_forward.13} parent=1 // pred_fallthru
      _
    // Predicated region
    $region26: #{transformer_forward.13} parent=1 // pred_check
      _
    $region27: #{transformer_forward.13} parent=1 // pred_check_branch
      %432 = sbr.rel (0) target = $region29
    $region28: #{transformer_forward.13} parent=1 // pred_region
      %s434 = ssub.s32 1024, 1024
      %435 = vsyncadd [#allocation4], %s434
      %s436 = sshll.u32 [#allocation3], 4
      %s437 = int_to_ptr.vmem [resolvable:$true] %s436
      %442 = dma.vmem_to_hbm [thread:$0]  %s437, 1024, %s4, [#allocation4], 256, 256, 16
    $region29: #{transformer_forward.13} parent=1 // pred_fallthru
      _
    // Predicated region
    $region30: #{transformer_forward.13} parent=1 // pred_check
      _
    $region31: #{transformer_forward.13} parent=1 // pred_check_branch
      %444 = sbr.rel (0) target = $region33
    $region32: #{transformer_forward.13} parent=1 // pred_region
      %445 = dma.done [#allocation4], 1024
    $region33: #{transformer_forward.13} parent=1 // pred_fallthru
      _
    %446 = vsyncpa [#allocation4], 1

</llo_original>
